<compile_context>
chip_gen: v7x
topology: tpu7x:2x2x1
jax: 0.10.0
libtpu: 0.0.40
codegen_flags: <defaults>
</compile_context>

<pallas_src>
import jax
import jax.numpy as jnp
from jax.experimental import pallas as pl
from jax.experimental.pallas import tpu as pltpu


def _round_up(x: int, m: int) -> int:
    return ((x + m - 1) // m) * m


def make_fcnet_kernel(n_layers: int):
    """Fused MLP kernel: refs = (x, w0, b0, ..., w_{L-1}, b_{L-1}, out).

    x / weights are bf16 (MXU-friendly); accumulation, bias-add and ReLU are f32.
    The layer loop is a Python loop -> fully unrolled straight-line MXU chain.
    """

    def kernel(*refs):
        x_ref = refs[0]
        o_ref = refs[-1]
        p = refs[1:-1]                       # interleaved weight / bias refs
        h = x_ref[...]                       # (tb, in_pad) bf16
        for i in range(n_layers):
            w = p[2 * i][...]                # (d_in_pad, d_out_pad) bf16
            b = p[2 * i + 1][...]            # (1, d_out_pad) f32
            acc = jnp.dot(h, w, preferred_element_type=jnp.float32) + b
            if i < n_layers - 1:             # ReLU on all layers but the last
                h = jnp.maximum(acc, 0.0).astype(jnp.bfloat16)
            else:
                o_ref[...] = acc.astype(o_ref.dtype)

    return kernel


def _pick_batch_tile(B: int, requested: int) -> int:
    """Pick a batch tile: big tiles for throughput, but avoid gross padding waste."""
    requested = max(8, int(requested))
    if B <= 128:
        return max(8, _round_up(B, 8))       # single grid step, minimal padding
    # Choose between the requested tile and 128 by padded-row count (ties -> bigger tile).
    candidates = sorted({requested, 128}, reverse=True)
    best = candidates[0]
    best_pad = _round_up(B, best)
    for tb in candidates[1:]:
        pad = _round_up(B, tb)
        if pad < best_pad:
            best, best_pad = tb, pad
    return best


def fcnet_forward(x, params, *, batch_tile=256, single_buffer_weights=True):
    """x: (B, C, H, W) or (B, in_dim). params: list of (w, b), w (in, out), b (1, out)."""
    B = x.shape[0]
    x2d = x.reshape(B, -1).astype(jnp.float32)      # flatten(start_dim=1)
    in_dim = x2d.shape[1]
    out_dim = params[-1][0].shape[1]
    n_layers = len(params)
    lane = 128

    # --- pad feature dims to lane width; cast weights to bf16 (biases stay f32) ---
    in_pad = _round_up(in_dim, lane)
    feat_pads = [in_pad]
    padded = []
    for (w, b) in params:
        fi, fo = w.shape
        fi_pad = feat_pads[-1]                      # == round_up(prev fo, 128)
        fo_pad = _round_up(fo, lane)
        wp = jnp.zeros((fi_pad, fo_pad), jnp.bfloat16).at[:fi, :fo].set(
            w.astype(jnp.bfloat16))
        bp = jnp.zeros((1, fo_pad), jnp.float32).at[:, :fo].set(
            b.astype(jnp.float32))
        padded.append((wp, bp))
        feat_pads.append(fo_pad)
    out_pad = feat_pads[-1]

    # --- pad batch to a multiple of the tile; stream the input in bf16 ---
    tb = _pick_batch_tile(B, batch_tile)
    B_pad = _round_up(B, tb)
    xp = jnp.zeros((B_pad, in_pad), jnp.bfloat16).at[:B, :in_dim].set(
        x2d.astype(jnp.bfloat16))
    grid = (B_pad // tb,)

    # --- VMEM budget: resident weights (+biases) + pipelined activation tiles ---
    bytes_w = sum(int(wp.size) * 2 + int(bp.size) * 4 for wp, bp in padded)
    w_bufs = 1 if single_buffer_weights else 2
    bytes_x = 2 * tb * in_pad * 2                   # double-buffered bf16 input tile
    bytes_o = 2 * tb * out_pad * 4                  # double-buffered f32 output tile
    bytes_act = 4 * tb * max(feat_pads) * 4         # headroom for live f32 activations
    est = w_bufs * bytes_w + bytes_x + bytes_o + bytes_act
    vmem_limit = int(min(max(2 * est, 32 * 1024 * 1024), 48 * 1024 * 1024))
    # TODO(synk): if bf16 weights ever exceed ~48 MiB (v7x), switch to a K-tiled
    # grid axis ('arbitrary') with an f32 VMEM accumulator instead of all-resident.

    def run(single_buffer: bool):
        def const_spec(shape):
            if single_buffer:
                # Constant-index resident operand: one VMEM buffer, no re-fetch.
                return pl.BlockSpec(shape, lambda i: (0, 0),
                                    pipeline_mode=pl.Buffered(1))
            return pl.BlockSpec(shape, lambda i: (0, 0))

        in_specs = [pl.BlockSpec((tb, in_pad), lambda i: (i, 0))]
        flat = []
        for wp, bp in padded:
            in_specs.append(const_spec(wp.shape))
            in_specs.append(const_spec(bp.shape))
            flat.extend([wp, bp])
        out_spec = pl.BlockSpec((tb, out_pad), lambda i: (i, 0))

        return pl.pallas_call(
            make_fcnet_kernel(n_layers),
            out_shape=jax.ShapeDtypeStruct((B_pad, out_pad), jnp.float32),
            grid_spec=pltpu.PrefetchScalarGridSpec(
                num_scalar_prefetch=0,
                grid=grid,
                in_specs=in_specs,
                out_specs=out_spec,
            ),
            compiler_params=pltpu.CompilerParams(
                dimension_semantics=("parallel",),
                vmem_limit_bytes=vmem_limit,
            ),
        )(xp, *flat)

    if single_buffer_weights:
        try:
            out_padded = run(True)
        except Exception:
            # pipeline_mode / Buffered(1) not accepted on this build: keep defaults.
            out_padded = run(False)
    else:
        out_padded = run(False)

    return out_padded[:B, :out_dim]


def init_fcnet_params(key, in_dim, hidden_dim, n_hidden, out_dim=10):
    """Deterministic init mimicking torch.nn.Linear defaults (U(-1/sqrt(fan_in), +))."""
    dims = [in_dim] + [hidden_dim] * (n_hidden + 1) + [out_dim]
    params = []
    for fan_in, fan_out in zip(dims[:-1], dims[1:]):
        key, kw, kb = jax.random.split(key, 3)
        bound = 1.0 / jnp.sqrt(jnp.float32(fan_in))
        w = jax.random.uniform(kw, (fan_in, fan_out), jnp.float32, -bound, bound)
        b = jax.random.uniform(kb, (1, fan_out), jnp.float32, -bound, bound)
        params.append((w, b))
    return params


def fcnet_reference(x, params):
    """Pure-JAX f32 reference of the same forward (for correctness check)."""
    h = x.reshape(x.shape[0], -1)
    for i, (w, b) in enumerate(params):
        h = h @ w + b
        if i < len(params) - 1:
            h = jnp.maximum(h, 0.0)
    return h


if __name__ == "__main__":
    # Small shapes consistent with the module: in_dim = C*H*W, hidden_dim, n_hidden=2, out=10.
    # B is intentionally NOT a multiple of the batch tile (exercises pad/slice) and the
    # feature dims are intentionally not lane-aligned (exercises 128-padding).
    B, C, H, W = 300, 3, 10, 10          # in_dim = 300 -> padded to 384
    hidden_dim, n_hidden = 96, 2         # hidden 96 -> padded to 128; out 10 -> padded to 128

    key = jax.random.PRNGKey(0)
    key, kx = jax.random.split(key)
    x = jax.random.normal(kx, (B, C, H, W), jnp.float32)

    params = init_fcnet_params(key, C * H * W, hidden_dim, n_hidden, out_dim=10)

    out = fcnet_forward(x, params, batch_tile=256)
    out = jax.block_until_ready(out)

    ref = fcnet_reference(x, params)
    assert out.shape == (B, 10)
    # bf16 weights/activations with f32 accumulation: compare at relaxed tolerance.
    assert jnp.allclose(out, ref, atol=3e-2, rtol=3e-2), "mismatch vs reference"

    # TODO(synk): functional path (weights_and_biases != None: per-sample bmm with
    # leaky_relu) not exercised; only the default self.seq(x) path is implemented.
    print("KERNEL_OK")
</pallas_src>

<mosaic_0001>
module attributes {stable_mosaic.version = 11 : i64} {
  func.func @kernel(%arg0: i32, %arg1: memref<128x384xbf16, #tpu.memory_space<vmem>>, %arg2: memref<384x128xbf16, #tpu.memory_space<vmem>>, %arg3: memref<1x128xf32, #tpu.memory_space<vmem>>, %arg4: memref<128x128xbf16, #tpu.memory_space<vmem>>, %arg5: memref<1x128xf32, #tpu.memory_space<vmem>>, %arg6: memref<128x128xbf16, #tpu.memory_space<vmem>>, %arg7: memref<1x128xf32, #tpu.memory_space<vmem>>, %arg8: memref<128x128xbf16, #tpu.memory_space<vmem>>, %arg9: memref<1x128xf32, #tpu.memory_space<vmem>>, %arg10: memref<128x128xf32, #tpu.memory_space<vmem>>) attributes {dimension_semantics = [#tpu.dimension_semantics<parallel>], iteration_bounds = array<i64: 3>, scalar_prefetch = 0 : i64, scratch_operands = 0 : i64, tpu.core_type = #tpu.core_type<tc>, window_params = [{transform_indices = @transform_0, window_bounds = array<i64: 128, 384>}, {pipeline_mode = #tpu.pipeline_mode<synchronous>, transform_indices = @transform_1, window_bounds = array<i64: 384, 128>}, {pipeline_mode = #tpu.pipeline_mode<synchronous>, transform_indices = @transform_2, window_bounds = array<i64: 1, 128>}, {pipeline_mode = #tpu.pipeline_mode<synchronous>, transform_indices = @transform_3, window_bounds = array<i64: 128, 128>}, {pipeline_mode = #tpu.pipeline_mode<synchronous>, transform_indices = @transform_4, window_bounds = array<i64: 1, 128>}, {pipeline_mode = #tpu.pipeline_mode<synchronous>, transform_indices = @transform_5, window_bounds = array<i64: 128, 128>}, {pipeline_mode = #tpu.pipeline_mode<synchronous>, transform_indices = @transform_6, window_bounds = array<i64: 1, 128>}, {pipeline_mode = #tpu.pipeline_mode<synchronous>, transform_indices = @transform_7, window_bounds = array<i64: 128, 128>}, {pipeline_mode = #tpu.pipeline_mode<synchronous>, transform_indices = @transform_8, window_bounds = array<i64: 1, 128>}, {transform_indices = @transform_9, window_bounds = array<i64: 128, 128>}]} {
    %c0 = arith.constant 0 : index
    %c0_0 = arith.constant 0 : index
    %0 = vector.load %arg1[%c0, %c0_0] : memref<128x384xbf16, #tpu.memory_space<vmem>>, vector<128x384xbf16>
    %c0_1 = arith.constant 0 : index
    %c0_2 = arith.constant 0 : index
    %1 = vector.load %arg2[%c0_1, %c0_2] : memref<384x128xbf16, #tpu.memory_space<vmem>>, vector<384x128xbf16>
    %c0_3 = arith.constant 0 : index
    %c0_4 = arith.constant 0 : index
    %2 = vector.load %arg3[%c0_3, %c0_4] : memref<1x128xf32, #tpu.memory_space<vmem>>, vector<1x128xf32>
    %cst = arith.constant dense<0.000000e+00> : vector<128x128xf32>
    %3 = tpu.matmul %0, %1, %cst {dimension_numbers = #tpu.dot_dimension_numbers<[1], [0], [0], [1], [0, 0, 1, 1], [], []>} : vector<128x384xbf16>, vector<384x128xbf16>, vector<128x128xf32> -> vector<128x128xf32>
    %4 = vector.broadcast %2 : vector<1x128xf32> to vector<128x128xf32>
    %5 = arith.addf %3, %4 : vector<128x128xf32>
    %cst_5 = arith.constant 0.000000e+00 : f32
    %6 = vector.broadcast %cst_5 : f32 to vector<128x128xf32>
    %7 = arith.maximumf %5, %6 : vector<128x128xf32>
    %8 = arith.truncf %7 : vector<128x128xf32> to vector<128x128xbf16>
    %c0_6 = arith.constant 0 : index
    %c0_7 = arith.constant 0 : index
    %9 = vector.load %arg4[%c0_6, %c0_7] : memref<128x128xbf16, #tpu.memory_space<vmem>>, vector<128x128xbf16>
    %c0_8 = arith.constant 0 : index
    %c0_9 = arith.constant 0 : index
    %10 = vector.load %arg5[%c0_8, %c0_9] : memref<1x128xf32, #tpu.memory_space<vmem>>, vector<1x128xf32>
    %cst_10 = arith.constant dense<0.000000e+00> : vector<128x128xf32>
    %11 = tpu.matmul %8, %9, %cst_10 {dimension_numbers = #tpu.dot_dimension_numbers<[1], [0], [0], [1], [0, 0, 1, 1], [], []>} : vector<128x128xbf16>, vector<128x128xbf16>, vector<128x128xf32> -> vector<128x128xf32>
    %12 = vector.broadcast %10 : vector<1x128xf32> to vector<128x128xf32>
    %13 = arith.addf %11, %12 : vector<128x128xf32>
    %cst_11 = arith.constant 0.000000e+00 : f32
    %14 = vector.broadcast %cst_11 : f32 to vector<128x128xf32>
    %15 = arith.maximumf %13, %14 : vector<128x128xf32>
    %16 = arith.truncf %15 : vector<128x128xf32> to vector<128x128xbf16>
    %c0_12 = arith.constant 0 : index
    %c0_13 = arith.constant 0 : index
    %17 = vector.load %arg6[%c0_12, %c0_13] : memref<128x128xbf16, #tpu.memory_space<vmem>>, vector<128x128xbf16>
    %c0_14 = arith.constant 0 : index
    %c0_15 = arith.constant 0 : index
    %18 = vector.load %arg7[%c0_14, %c0_15] : memref<1x128xf32, #tpu.memory_space<vmem>>, vector<1x128xf32>
    %cst_16 = arith.constant dense<0.000000e+00> : vector<128x128xf32>
    %19 = tpu.matmul %16, %17, %cst_16 {dimension_numbers = #tpu.dot_dimension_numbers<[1], [0], [0], [1], [0, 0, 1, 1], [], []>} : vector<128x128xbf16>, vector<128x128xbf16>, vector<128x128xf32> -> vector<128x128xf32>
    %20 = vector.broadcast %18 : vector<1x128xf32> to vector<128x128xf32>
    %21 = arith.addf %19, %20 : vector<128x128xf32>
    %cst_17 = arith.constant 0.000000e+00 : f32
    %22 = vector.broadcast %cst_17 : f32 to vector<128x128xf32>
    %23 = arith.maximumf %21, %22 : vector<128x128xf32>
    %24 = arith.truncf %23 : vector<128x128xf32> to vector<128x128xbf16>
    %c0_18 = arith.constant 0 : index
    %c0_19 = arith.constant 0 : index
    %25 = vector.load %arg8[%c0_18, %c0_19] : memref<128x128xbf16, #tpu.memory_space<vmem>>, vector<128x128xbf16>
    %c0_20 = arith.constant 0 : index
    %c0_21 = arith.constant 0 : index
    %26 = vector.load %arg9[%c0_20, %c0_21] : memref<1x128xf32, #tpu.memory_space<vmem>>, vector<1x128xf32>
    %cst_22 = arith.constant dense<0.000000e+00> : vector<128x128xf32>
    %27 = tpu.matmul %24, %25, %cst_22 {dimension_numbers = #tpu.dot_dimension_numbers<[1], [0], [0], [1], [0, 0, 1, 1], [], []>} : vector<128x128xbf16>, vector<128x128xbf16>, vector<128x128xf32> -> vector<128x128xf32>
    %28 = vector.broadcast %26 : vector<1x128xf32> to vector<128x128xf32>
    %29 = arith.addf %27, %28 : vector<128x128xf32>
    %c0_23 = arith.constant 0 : index
    %c0_24 = arith.constant 0 : index
    %30 = vector.load %arg10[%c0_23, %c0_24] : memref<128x128xf32, #tpu.memory_space<vmem>>, vector<128x128xf32>
    tpu.vector_store %arg10[%c0_23, %c0_24], %29 {strides = array<i32>} : memref<128x128xf32, #tpu.memory_space<vmem>>, vector<128x128xf32>,
    return
  }
  func.func @transform_0(%arg0: i32) -> (i32, i32) {
    %c0_i32 = arith.constant 0 : i32
    %c0_i32_0 = arith.constant 0 : i32
    return %arg0, %c0_i32 : i32, i32
  }
  func.func @transform_1(%arg0: i32) -> (i32, i32) {
    %c0_i32 = arith.constant 0 : i32
    %c0_i32_0 = arith.constant 0 : i32
    %c0_i32_1 = arith.constant 0 : i32
    return %c0_i32, %c0_i32_0 : i32, i32
  }
  func.func @transform_2(%arg0: i32) -> (i32, i32) {
    %c0_i32 = arith.constant 0 : i32
    %c0_i32_0 = arith.constant 0 : i32
    %c0_i32_1 = arith.constant 0 : i32
    return %c0_i32, %c0_i32_0 : i32, i32
  }
  func.func @transform_3(%arg0: i32) -> (i32, i32) {
    %c0_i32 = arith.constant 0 : i32
    %c0_i32_0 = arith.constant 0 : i32
    %c0_i32_1 = arith.constant 0 : i32
    return %c0_i32, %c0_i32_0 : i32, i32
  }
  func.func @transform_4(%arg0: i32) -> (i32, i32) {
    %c0_i32 = arith.constant 0 : i32
    %c0_i32_0 = arith.constant 0 : i32
    %c0_i32_1 = arith.constant 0 : i32
    return %c0_i32, %c0_i32_0 : i32, i32
  }
  func.func @transform_5(%arg0: i32) -> (i32, i32) {
    %c0_i32 = arith.constant 0 : i32
    %c0_i32_0 = arith.constant 0 : i32
    %c0_i32_1 = arith.constant 0 : i32
    return %c0_i32, %c0_i32_0 : i32, i32
  }
  func.func @transform_6(%arg0: i32) -> (i32, i32) {
    %c0_i32 = arith.constant 0 : i32
    %c0_i32_0 = arith.constant 0 : i32
    %c0_i32_1 = arith.constant 0 : i32
    return %c0_i32, %c0_i32_0 : i32, i32
  }
  func.func @transform_7(%arg0: i32) -> (i32, i32) {
    %c0_i32 = arith.constant 0 : i32
    %c0_i32_0 = arith.constant 0 : i32
    %c0_i32_1 = arith.constant 0 : i32
    return %c0_i32, %c0_i32_0 : i32, i32
  }
  func.func @transform_8(%arg0: i32) -> (i32, i32) {
    %c0_i32 = arith.constant 0 : i32
    %c0_i32_0 = arith.constant 0 : i32
    %c0_i32_1 = arith.constant 0 : i32
    return %c0_i32, %c0_i32_0 : i32, i32
  }
  func.func @transform_9(%arg0: i32) -> (i32, i32) {
    %c0_i32 = arith.constant 0 : i32
    %c0_i32_0 = arith.constant 0 : i32
    return %arg0, %c0_i32 : i32, i32
  }
}

module attributes {stable_mosaic.version = 11 : i64} {
  func.func @kernel(%arg0: i32, %arg1: memref<128x384xbf16, #tpu.memory_space<vmem>>, %arg2: memref<384x128xbf16, #tpu.memory_space<vmem>>, %arg3: memref<1x128xf32, #tpu.memory_space<vmem>>, %arg4: memref<128x128xbf16, #tpu.memory_space<vmem>>, %arg5: memref<1x128xf32, #tpu.memory_space<vmem>>, %arg6: memref<128x128xbf16, #tpu.memory_space<vmem>>, %arg7: memref<1x128xf32, #tpu.memory_space<vmem>>, %arg8: memref<128x128xbf16, #tpu.memory_space<vmem>>, %arg9: memref<1x128xf32, #tpu.memory_space<vmem>>, %arg10: memref<128x128xf32, #tpu.memory_space<vmem>>) attributes {dimension_semantics = [#tpu.dimension_semantics<parallel>], iteration_bounds = array<i64: 3>, scalar_prefetch = 0 : i64, scratch_operands = 0 : i64, tpu.core_type = #tpu.core_type<tc>, window_params = [{transform_indices = @transform_0, window_bounds = array<i64: 128, 384>}, {pipeline_mode = #tpu.pipeline_mode<synchronous>, transform_indices = @transform_1, window_bounds = array<i64: 384, 128>}, {pipeline_mode = #tpu.pipeline_mode<synchronous>, transform_indices = @transform_2, window_bounds = array<i64: 1, 128>}, {pipeline_mode = #tpu.pipeline_mode<synchronous>, transform_indices = @transform_3, window_bounds = array<i64: 128, 128>}, {pipeline_mode = #tpu.pipeline_mode<synchronous>, transform_indices = @transform_4, window_bounds = array<i64: 1, 128>}, {pipeline_mode = #tpu.pipeline_mode<synchronous>, transform_indices = @transform_5, window_bounds = array<i64: 128, 128>}, {pipeline_mode = #tpu.pipeline_mode<synchronous>, transform_indices = @transform_6, window_bounds = array<i64: 1, 128>}, {pipeline_mode = #tpu.pipeline_mode<synchronous>, transform_indices = @transform_7, window_bounds = array<i64: 128, 128>}, {pipeline_mode = #tpu.pipeline_mode<synchronous>, transform_indices = @transform_8, window_bounds = array<i64: 1, 128>}, {transform_indices = @transform_9, window_bounds = array<i64: 128, 128>}]} {
    %c0 = arith.constant 0 : index
    %c0_0 = arith.constant 0 : index
    %0 = vector.load %arg1[%c0, %c0_0] : memref<128x384xbf16, #tpu.memory_space<vmem>>, vector<128x384xbf16>
    %c0_1 = arith.constant 0 : index
    %c0_2 = arith.constant 0 : index
    %1 = vector.load %arg2[%c0_1, %c0_2] : memref<384x128xbf16, #tpu.memory_space<vmem>>, vector<384x128xbf16>
    %c0_3 = arith.constant 0 : index
    %c0_4 = arith.constant 0 : index
    %2 = vector.load %arg3[%c0_3, %c0_4] : memref<1x128xf32, #tpu.memory_space<vmem>>, vector<1x128xf32>
    %cst = arith.constant dense<0.000000e+00> : vector<128x128xf32>
    %3 = tpu.matmul %0, %1, %cst {dimension_numbers = #tpu.dot_dimension_numbers<[1], [0], [0], [1], [0, 0, 1, 1], [], []>} : vector<128x384xbf16>, vector<384x128xbf16>, vector<128x128xf32> -> vector<128x128xf32>
    %4 = vector.broadcast %2 : vector<1x128xf32> to vector<128x128xf32>
    %5 = arith.addf %3, %4 : vector<128x128xf32>
    %cst_5 = arith.constant 0.000000e+00 : f32
    %6 = vector.broadcast %cst_5 : f32 to vector<128x128xf32>
    %7 = arith.maximumf %5, %6 : vector<128x128xf32>
    %8 = arith.truncf %7 : vector<128x128xf32> to vector<128x128xbf16>
    %c0_6 = arith.constant 0 : index
    %c0_7 = arith.constant 0 : index
    %9 = vector.load %arg4[%c0_6, %c0_7] : memref<128x128xbf16, #tpu.memory_space<vmem>>, vector<128x128xbf16>
    %c0_8 = arith.constant 0 : index
    %c0_9 = arith.constant 0 : index
    %10 = vector.load %arg5[%c0_8, %c0_9] : memref<1x128xf32, #tpu.memory_space<vmem>>, vector<1x128xf32>
    %cst_10 = arith.constant dense<0.000000e+00> : vector<128x128xf32>
    %11 = tpu.matmul %8, %9, %cst_10 {dimension_numbers = #tpu.dot_dimension_numbers<[1], [0], [0], [1], [0, 0, 1, 1], [], []>} : vector<128x128xbf16>, vector<128x128xbf16>, vector<128x128xf32> -> vector<128x128xf32>
    %12 = vector.broadcast %10 : vector<1x128xf32> to vector<128x128xf32>
    %13 = arith.addf %11, %12 : vector<128x128xf32>
    %cst_11 = arith.constant 0.000000e+00 : f32
    %14 = vector.broadcast %cst_11 : f32 to vector<128x128xf32>
    %15 = arith.maximumf %13, %14 : vector<128x128xf32>
    %16 = arith.truncf %15 : vector<128x128xf32> to vector<128x128xbf16>
    %c0_12 = arith.constant 0 : index
    %c0_13 = arith.constant 0 : index
    %17 = vector.load %arg6[%c0_12, %c0_13] : memref<128x128xbf16, #tpu.memory_space<vmem>>, vector<128x128xbf16>
    %c0_14 = arith.constant 0 : index
    %c0_15 = arith.constant 0 : index
    %18 = vector.load %arg7[%c0_14, %c0_15] : memref<1x128xf32, #tpu.memory_space<vmem>>, vector<1x128xf32>
    %cst_16 = arith.constant dense<0.000000e+00> : vector<128x128xf32>
    %19 = tpu.matmul %16, %17, %cst_16 {dimension_numbers = #tpu.dot_dimension_numbers<[1], [0], [0], [1], [0, 0, 1, 1], [], []>} : vector<128x128xbf16>, vector<128x128xbf16>, vector<128x128xf32> -> vector<128x128xf32>
    %20 = vector.broadcast %18 : vector<1x128xf32> to vector<128x128xf32>
    %21 = arith.addf %19, %20 : vector<128x128xf32>
    %cst_17 = arith.constant 0.000000e+00 : f32
    %22 = vector.broadcast %cst_17 : f32 to vector<128x128xf32>
    %23 = arith.maximumf %21, %22 : vector<128x128xf32>
    %24 = arith.truncf %23 : vector<128x128xf32> to vector<128x128xbf16>
    %c0_18 = arith.constant 0 : index
    %c0_19 = arith.constant 0 : index
    %25 = vector.load %arg8[%c0_18, %c0_19] : memref<128x128xbf16, #tpu.memory_space<vmem>>, vector<128x128xbf16>
    %c0_20 = arith.constant 0 : index
    %c0_21 = arith.constant 0 : index
    %26 = vector.load %arg9[%c0_20, %c0_21] : memref<1x128xf32, #tpu.memory_space<vmem>>, vector<1x128xf32>
    %cst_22 = arith.constant dense<0.000000e+00> : vector<128x128xf32>
    %27 = tpu.matmul %24, %25, %cst_22 {dimension_numbers = #tpu.dot_dimension_numbers<[1], [0], [0], [1], [0, 0, 1, 1], [], []>} : vector<128x128xbf16>, vector<128x128xbf16>, vector<128x128xf32> -> vector<128x128xf32>
    %28 = vector.broadcast %26 : vector<1x128xf32> to vector<128x128xf32>
    %29 = arith.addf %27, %28 : vector<128x128xf32>
    %c0_23 = arith.constant 0 : index
    %c0_24 = arith.constant 0 : index
    %30 = vector.load %arg10[%c0_23, %c0_24] : memref<128x128xf32, #tpu.memory_space<vmem>>, vector<128x128xf32>
    tpu.vector_store %arg10[%c0_23, %c0_24], %29 {strides = array<i32>} : memref<128x128xf32, #tpu.memory_space<vmem>>, vector<128x128xf32>,
    return
  }
  func.func @transform_0(%arg0: i32) -> (i32, i32) {
    %c0_i32 = arith.constant 0 : i32
    %c0_i32_0 = arith.constant 0 : i32
    return %arg0, %c0_i32 : i32, i32
  }
  func.func @transform_1(%arg0: i32) -> (i32, i32) {
    %c0_i32 = arith.constant 0 : i32
    %c0_i32_0 = arith.constant 0 : i32
    %c0_i32_1 = arith.constant 0 : i32
    return %c0_i32, %c0_i32_0 : i32, i32
  }
  func.func @transform_2(%arg0: i32) -> (i32, i32) {
    %c0_i32 = arith.constant 0 : i32
    %c0_i32_0 = arith.constant 0 : i32
    %c0_i32_1 = arith.constant 0 : i32
    return %c0_i32, %c0_i32_0 : i32, i32
  }
  func.func @transform_3(%arg0: i32) -> (i32, i32) {
    %c0_i32 = arith.constant 0 : i32
    %c0_i32_0 = arith.constant 0 : i32
    %c0_i32_1 = arith.constant 0 : i32
    return %c0_i32, %c0_i32_0 : i32, i32
  }
  func.func @transform_4(%arg0: i32) -> (i32, i32) {
    %c0_i32 = arith.constant 0 : i32
    %c0_i32_0 = arith.constant 0 : i32
    %c0_i32_1 = arith.constant 0 : i32
    return %c0_i32, %c0_i32_0 : i32, i32
  }
  func.func @transform_5(%arg0: i32) -> (i32, i32) {
    %c0_i32 = arith.constant 0 : i32
    %c0_i32_0 = arith.constant 0 : i32
    %c0_i32_1 = arith.constant 0 : i32
    return %c0_i32, %c0_i32_0 : i32, i32
  }
  func.func @transform_6(%arg0: i32) -> (i32, i32) {
    %c0_i32 = arith.constant 0 : i32
    %c0_i32_0 = arith.constant 0 : i32
    %c0_i32_1 = arith.constant 0 : i32
    return %c0_i32, %c0_i32_0 : i32, i32
  }
  func.func @transform_7(%arg0: i32) -> (i32, i32) {
    %c0_i32 = arith.constant 0 : i32
    %c0_i32_0 = arith.constant 0 : i32
    %c0_i32_1 = arith.constant 0 : i32
    return %c0_i32, %c0_i32_0 : i32, i32
  }
  func.func @transform_8(%arg0: i32) -> (i32, i32) {
    %c0_i32 = arith.constant 0 : i32
    %c0_i32_0 = arith.constant 0 : i32
    %c0_i32_1 = arith.constant 0 : i32
    return %c0_i32, %c0_i32_0 : i32, i32
  }
  func.func @transform_9(%arg0: i32) -> (i32, i32) {
    %c0_i32 = arith.constant 0 : i32
    %c0_i32_0 = arith.constant 0 : i32
    return %arg0, %c0_i32 : i32, i32
  }
}

</mosaic_0001>

<llo_original>
// kernel: tpu_custom_call.1
$region0: #{tpu_custom_call.1}
  #allocation0 [shape = 'u32[]', space=smem, size = 0x4, offset = 0x4, fixed_abs, tag = 'smem constant byte address 0x4 - core index']
  #allocation1 [shape = 'u32[144,128]{1,0:T(1,128)}', space=vmem, size = 0x12000, scoped, tag = 'internal scratch']
  %s0 = inlined_call_operand.hbm [shape: bf16[384,384], index: 0, kind: input, shape index: {}]
  %s1 = inlined_call_operand.hbm [shape: bf16[384,128], index: 1, kind: input, shape index: {}]
  %s2 = inlined_call_operand.vmem [shape: f32[1,128], index: 2, kind: input, shape index: {}]
  %s3 = inlined_call_operand.hbm [shape: bf16[128,128], index: 3, kind: input, shape index: {}]
  %s4 = inlined_call_operand.vmem [shape: f32[1,128], index: 4, kind: input, shape index: {}]
  %s5 = inlined_call_operand.hbm [shape: bf16[128,128], index: 5, kind: input, shape index: {}]
  %s6 = inlined_call_operand.vmem [shape: f32[1,128], index: 6, kind: input, shape index: {}]
  %s7 = inlined_call_operand.hbm [shape: bf16[128,128], index: 7, kind: input, shape index: {}]
  %s8 = inlined_call_operand.vmem [shape: f32[1,128], index: 8, kind: input, shape index: {}]
  %s9 = inlined_call_operand.hbm [shape: f32[384,128], index: 9, kind: output, shape index: {}]
  %s10 = sld [smem:[#allocation0]]
  $region89: #{tpu_custom_call.1} parent=0
    _
  %s12 = ssub.s32 1, %s10
  %s13 = scalar_select 0, %s12, %s10
  $region1: #{tpu_custom_call.1} parent=0
    #allocation2 [shape = 'u8[196608]{0}', space=vmem, size = 0x30000, scoped, tag = 'input window, operand 0']
    #allocation3 [shape = 's32[2]{0}', space=sflag, size = 0x8, scoped, tag = 'scoped memory for tpu_custom_call.1']
    #allocation4 [shape = 's32[2]{0}', space=sflag, size = 0x8, scoped, tag = 'scoped memory for tpu_custom_call.1']
    #allocation5 [shape = 'u8[98304]{0}', space=vmem, size = 0x18000, scoped, tag = 'input window, operand 1, single buffered']
    #allocation6 [shape = 's32[1]{0}', space=sflag, size = 0x4, scoped, tag = 'scoped memory for tpu_custom_call.1']
    #allocation7 [shape = 'u8[32768]{0}', space=vmem, size = 0x8000, scoped, tag = 'input window, operand 3, single buffered']
    #allocation8 [shape = 'u8[32768]{0}', space=vmem, size = 0x8000, scoped, tag = 'input window, operand 5, single buffered']
    #allocation9 [shape = 's32[1]{0}', space=sflag, size = 0x4, scoped, tag = 'scoped memory for tpu_custom_call.1']
    #allocation10 [shape = 'u8[32768]{0}', space=vmem, size = 0x8000, scoped, tag = 'input window, operand 7, single buffered']
    #allocation11 [shape = 'u8[131072]{0}', space=vmem, size = 0x20000, scoped, tag = 'output window, operand 0']
    %14 = vsyncpa [#allocation3], 0
    %s15 = scalar_lea.sflag [#allocation3], 1
    %16 = vsyncpa %s15, 0
    %17 = vsyncpa [#allocation6], 0
    %18 = vsyncpa [#allocation9], 0
    %19 = vsyncpa [#allocation4], 0
    %s20 = scalar_lea.sflag [#allocation4], 1
    %21 = vsyncpa %s20, 0
    loop: start=0, step=1, limit=5
    $region2: #{tpu_custom_call.1} parent=1 // loop_pre_header
      _
    $region3: #{tpu_custom_call.1} parent=1 // loop_header
      %s23 = sphi 0, %s27
      %p24 = scmp.ge.s32.totalorder %s23, 5
      %s33 = sphi 0, %s35
      %s36 = sphi 0, %s33
      %s37 = sphi 0, %s36
      %s53 = sphi 0, %s37
      %s57 = sphi 0, %s57
      %s59 = sphi 0, %s57
      %s60 = sphi 0, %s59
      %s74 = sphi 0, %s60
      %s78 = sphi 0, %s78
      %s80 = sphi 0, %s78
      %s81 = sphi 0, %s80
      %s95 = sphi 0, %s81
      %s99 = sphi 0, %s99
      %s101 = sphi 0, %s99
      %s102 = sphi 0, %s101
      %s116 = sphi 0, %s102
      %s120 = sphi 0, %s120
      %s122 = sphi 0, %s120
      %s123 = sphi 0, %s122
      %s137 = sphi 0, %s123
      %s141 = sphi 0, %s141
      %s143 = sphi 0, %s141
      %s144 = sphi 0, %s143
      %s158 = sphi 0, %s144
      %s162 = sphi 0, %s162
      %s164 = sphi 0, %s162
      %s165 = sphi 0, %s164
      %s179 = sphi 0, %s165
      %s183 = sphi 0, %s183
      %s185 = sphi 0, %s183
      %s186 = sphi 0, %s185
      %s200 = sphi 0, %s186
      %s204 = sphi 0, %s204
      %s206 = sphi 0, %s204
      %s207 = sphi 0, %s206
      %s221 = sphi 0, %s207
      %s227 = sphi 0, %s229
      %s230 = sphi 0, %s227
      %s231 = sphi 0, %s230
      %s247 = sphi 0, %s231
    $region4: #{tpu_custom_call.1} parent=1 // loop_header_branch
      %26 = sbr.rel (%p24) target = $region8
    $region5: #{tpu_custom_call.1} parent=1 // loop_body
      %s28 = ssub.s32 %s23, 1
      %s29 = ssub.s32 %s23, 2
      %s30 = sadd.s32 %s23, 1
      %s31 = ssub.s32 %s23, %s30
      %p32 = scmp.eq.s32.totalorder %s31, 0
      %s34 = sadd.s32 %s33, 1
      %s35 = scalar_select %p32, %s33, %s34
      %p38 = pneg %p32
      %p39 = scmp.eq.s32.totalorder %s23, 2
      %p40 = por %p38, %p39
      %p41 = scmp.ne.s32.totalorder %s33, %s36
      %p42 = scmp.eq.s32.totalorder %s23, 0
      %p43 = por %p41, %p42
      %p44 = scmp.ne.s32.totalorder %s33, %s36
      %p45 = scmp.eq.s32.totalorder %s28, 2
      %p46 = por %p44, %p45
      %p47 = scmp.ne.s32.totalorder %s36, %s37
      %p48 = scmp.eq.s32.totalorder %s28, 0
      %p49 = por %p47, %p48
      %p50 = scmp.ne.s32.totalorder %s36, %s37
      %p51 = scmp.eq.s32.totalorder %s29, 2
      %p52 = por %p50, %p51
      %p54 = scmp.ne.s32.totalorder %s37, %s53
      %p55 = scmp.eq.s32.totalorder %s29, 0
      %p56 = por %p54, %p55
      %s58 = sadd.s32 %s57, 1
      %p61 = scmp.eq.s32.totalorder %s23, 2
      %p62 = scmp.ne.s32.totalorder %s57, %s59
      %p63 = scmp.eq.s32.totalorder %s23, 0
      %p64 = por %p62, %p63
      %p65 = scmp.ne.s32.totalorder %s57, %s59
      %p66 = scmp.eq.s32.totalorder %s28, 2
      %p67 = por %p65, %p66
      %p68 = scmp.ne.s32.totalorder %s59, %s60
      %p69 = scmp.eq.s32.totalorder %s28, 0
      %p70 = por %p68, %p69
      %p71 = scmp.ne.s32.totalorder %s59, %s60
      %p72 = scmp.eq.s32.totalorder %s29, 2
      %p73 = por %p71, %p72
      %p75 = scmp.ne.s32.totalorder %s60, %s74
      %p76 = scmp.eq.s32.totalorder %s29, 0
      %p77 = por %p75, %p76
      %s79 = sadd.s32 %s78, 1
      %p82 = scmp.eq.s32.totalorder %s23, 2
      %p83 = scmp.ne.s32.totalorder %s78, %s80
      %p84 = scmp.eq.s32.totalorder %s23, 0
      %p85 = por %p83, %p84
      %p86 = scmp.ne.s32.totalorder %s78, %s80
      %p87 = scmp.eq.s32.totalorder %s28, 2
      %p88 = por %p86, %p87
      %p89 = scmp.ne.s32.totalorder %s80, %s81
      %p90 = scmp.eq.s32.totalorder %s28, 0
      %p91 = por %p89, %p90
      %p92 = scmp.ne.s32.totalorder %s80, %s81
      %p93 = scmp.eq.s32.totalorder %s29, 2
      %p94 = por %p92, %p93
      %p96 = scmp.ne.s32.totalorder %s81, %s95
      %p97 = scmp.eq.s32.totalorder %s29, 0
      %p98 = por %p96, %p97
      %s100 = sadd.s32 %s99, 1
      %p103 = scmp.eq.s32.totalorder %s23, 2
      %p104 = scmp.ne.s32.totalorder %s99, %s101
      %p105 = scmp.eq.s32.totalorder %s23, 0
      %p106 = por %p104, %p105
      %p107 = scmp.ne.s32.totalorder %s99, %s101
      %p108 = scmp.eq.s32.totalorder %s28, 2
      %p109 = por %p107, %p108
      %p110 = scmp.ne.s32.totalorder %s101, %s102
      %p111 = scmp.eq.s32.totalorder %s28, 0
      %p112 = por %p110, %p111
      %p113 = scmp.ne.s32.totalorder %s101, %s102
      %p114 = scmp.eq.s32.totalorder %s29, 2
      %p115 = por %p113, %p114
      %p117 = scmp.ne.s32.totalorder %s102, %s116
      %p118 = scmp.eq.s32.totalorder %s29, 0
      %p119 = por %p117, %p118
      %s121 = sadd.s32 %s120, 1
      %p124 = scmp.eq.s32.totalorder %s23, 2
      %p125 = scmp.ne.s32.totalorder %s120, %s122
      %p126 = scmp.eq.s32.totalorder %s23, 0
      %p127 = por %p125, %p126
      %p128 = scmp.ne.s32.totalorder %s120, %s122
      %p129 = scmp.eq.s32.totalorder %s28, 2
      %p130 = por %p128, %p129
      %p131 = scmp.ne.s32.totalorder %s122, %s123
      %p132 = scmp.eq.s32.totalorder %s28, 0
      %p133 = por %p131, %p132
      %p134 = scmp.ne.s32.totalorder %s122, %s123
      %p135 = scmp.eq.s32.totalorder %s29, 2
      %p136 = por %p134, %p135
      %p138 = scmp.ne.s32.totalorder %s123, %s137
      %p139 = scmp.eq.s32.totalorder %s29, 0
      %p140 = por %p138, %p139
      %s142 = sadd.s32 %s141, 1
      %p145 = scmp.eq.s32.totalorder %s23, 2
      %p146 = scmp.ne.s32.totalorder %s141, %s143
      %p147 = scmp.eq.s32.totalorder %s23, 0
      %p148 = por %p146, %p147
      %p149 = scmp.ne.s32.totalorder %s141, %s143
      %p150 = scmp.eq.s32.totalorder %s28, 2
      %p151 = por %p149, %p150
      %p152 = scmp.ne.s32.totalorder %s143, %s144
      %p153 = scmp.eq.s32.totalorder %s28, 0
      %p154 = por %p152, %p153
      %p155 = scmp.ne.s32.totalorder %s143, %s144
      %p156 = scmp.eq.s32.totalorder %s29, 2
      %p157 = por %p155, %p156
      %p159 = scmp.ne.s32.totalorder %s144, %s158
      %p160 = scmp.eq.s32.totalorder %s29, 0
      %p161 = por %p159, %p160
      %s163 = sadd.s32 %s162, 1
      %p166 = scmp.eq.s32.totalorder %s23, 2
      %p167 = scmp.ne.s32.totalorder %s162, %s164
      %p168 = scmp.eq.s32.totalorder %s23, 0
      %p169 = por %p167, %p168
      %p170 = scmp.ne.s32.totalorder %s162, %s164
      %p171 = scmp.eq.s32.totalorder %s28, 2
      %p172 = por %p170, %p171
      %p173 = scmp.ne.s32.totalorder %s164, %s165
      %p174 = scmp.eq.s32.totalorder %s28, 0
      %p175 = por %p173, %p174
      %p176 = scmp.ne.s32.totalorder %s164, %s165
      %p177 = scmp.eq.s32.totalorder %s29, 2
      %p178 = por %p176, %p177
      %p180 = scmp.ne.s32.totalorder %s165, %s179
      %p181 = scmp.eq.s32.totalorder %s29, 0
      %p182 = por %p180, %p181
      %s184 = sadd.s32 %s183, 1
      %p187 = scmp.eq.s32.totalorder %s23, 2
      %p188 = scmp.ne.s32.totalorder %s183, %s185
      %p189 = scmp.eq.s32.totalorder %s23, 0
      %p190 = por %p188, %p189
      %p191 = scmp.ne.s32.totalorder %s183, %s185
      %p192 = scmp.eq.s32.totalorder %s28, 2
      %p193 = por %p191, %p192
      %p194 = scmp.ne.s32.totalorder %s185, %s186
      %p195 = scmp.eq.s32.totalorder %s28, 0
      %p196 = por %p194, %p195
      %p197 = scmp.ne.s32.totalorder %s185, %s186
      %p198 = scmp.eq.s32.totalorder %s29, 2
      %p199 = por %p197, %p198
      %p201 = scmp.ne.s32.totalorder %s186, %s200
      %p202 = scmp.eq.s32.totalorder %s29, 0
      %p203 = por %p201, %p202
      %s205 = sadd.s32 %s204, 1
      %p208 = scmp.eq.s32.totalorder %s23, 2
      %p209 = scmp.ne.s32.totalorder %s204, %s206
      %p210 = scmp.eq.s32.totalorder %s23, 0
      %p211 = por %p209, %p210
      %p212 = scmp.ne.s32.totalorder %s204, %s206
      %p213 = scmp.eq.s32.totalorder %s28, 2
      %p214 = por %p212, %p213
      %p215 = scmp.ne.s32.totalorder %s206, %s207
      %p216 = scmp.eq.s32.totalorder %s28, 0
      %p217 = por %p215, %p216
      %p218 = scmp.ne.s32.totalorder %s206, %s207
      %p219 = scmp.eq.s32.totalorder %s29, 2
      %p220 = por %p218, %p219
      %p222 = scmp.ne.s32.totalorder %s207, %s221
      %p223 = scmp.eq.s32.totalorder %s29, 0
      %p224 = por %p222, %p223
      %s225 = ssub.s32 %s23, %s30
      %p226 = scmp.eq.s32.totalorder %s225, 0
      %s228 = sadd.s32 %s227, 1
      %s229 = scalar_select %p226, %s227, %s228
      %p232 = pneg %p226
      %p233 = scmp.eq.s32.totalorder %s23, 2
      %p234 = por %p232, %p233
      %p235 = scmp.ne.s32.totalorder %s227, %s230
      %p236 = scmp.eq.s32.totalorder %s23, 0
      %p237 = por %p235, %p236
      %p238 = scmp.ne.s32.totalorder %s227, %s230
      %p239 = scmp.eq.s32.totalorder %s28, 2
      %p240 = por %p238, %p239
      %p241 = scmp.ne.s32.totalorder %s230, %s231
      %p242 = scmp.eq.s32.totalorder %s28, 0
      %p243 = por %p241, %p242
      %p244 = scmp.ne.s32.totalorder %s230, %s231
      %p245 = scmp.eq.s32.totalorder %s29, 2
      %p246 = por %p244, %p245
      %p248 = scmp.ne.s32.totalorder %s231, %s247
      %p249 = scmp.eq.s32.totalorder %s29, 0
      %p250 = por %p248, %p249
      %p251 = scmp.le.s32.totalorder 1, %s23
      %p252 = scmp.lt.s32.totalorder %s23, 4
      %p253 = pnand %p251, %p252
      %p254 = pneg %p253
      // Predicated region
      $region9: #{tpu_custom_call.1} parent=5 // pred_check
        _
      $region10: #{tpu_custom_call.1} parent=5 // pred_check_branch
        %256 = sbr.rel (%p253) target = $region12
      $region11: #{tpu_custom_call.1} parent=5 // pred_region
        %s257 = ssub.s32 %s23, 1
        // Predicated region
        $region13: #{tpu_custom_call.1} parent=11 // pred_check
          %p258 = pneg %p70
        $region14: #{tpu_custom_call.1} parent=11 // pred_check_branch
          %260 = sbr.rel (%p258) target = $region16
        $region15: #{tpu_custom_call.1} parent=11 // pred_region
          %s262 = ssub.s32 3072, 3072
          %263 = vsyncadd [#allocation6], %s262
          %s264 = sshll.u32 [#allocation5], 4
          %s265 = int_to_ptr.vmem [resolvable:$true] %s264
          %270 = dma.hbm_to_vmem [thread:$0]  %s1, 3072, %s265, [#allocation6], 64, 64, 4
        $region16: #{tpu_custom_call.1} parent=11 // pred_fallthru
          _
        // Predicated region
        $region17: #{tpu_custom_call.1} parent=11 // pred_check
          %p271 = pneg %p91
        $region18: #{tpu_custom_call.1} parent=11 // pred_check_branch
          %273 = sbr.rel (%p271) target = $region20
        $region19: #{tpu_custom_call.1} parent=11 // pred_region
          _
        $region20: #{tpu_custom_call.1} parent=11 // pred_fallthru
          _
        // Predicated region
        $region21: #{tpu_custom_call.1} parent=11 // pred_check
          %p274 = pneg %p112
        $region22: #{tpu_custom_call.1} parent=11 // pred_check_branch
          %276 = sbr.rel (%p274) target = $region24
        $region23: #{tpu_custom_call.1} parent=11 // pred_region
          %s278 = ssub.s32 1024, 1024
          %279 = vsyncadd [#allocation6], %s278
          %s280 = sshll.u32 [#allocation7], 4
          %s281 = int_to_ptr.vmem [resolvable:$true] %s280
          %286 = dma.hbm_to_vmem [thread:$0]  %s3, 1024, %s281, [#allocation6], 64, 64, 4
        $region24: #{tpu_custom_call.1} parent=11 // pred_fallthru
          _
        // Predicated region
        $region25: #{tpu_custom_call.1} parent=11 // pred_check
          %p287 = pneg %p133
        $region26: #{tpu_custom_call.1} parent=11 // pred_check_branch
          %289 = sbr.rel (%p287) target = $region28
        $region27: #{tpu_custom_call.1} parent=11 // pred_region
          _
        $region28: #{tpu_custom_call.1} parent=11 // pred_fallthru
          _
        // Predicated region
        $region29: #{tpu_custom_call.1} parent=11 // pred_check
          %p290 = pneg %p154
        $region30: #{tpu_custom_call.1} parent=11 // pred_check_branch
          %292 = sbr.rel (%p290) target = $region32
        $region31: #{tpu_custom_call.1} parent=11 // pred_region
          %s294 = ssub.s32 1024, 1024
          %295 = vsyncadd [#allocation9], %s294
          %s296 = sshll.u32 [#allocation8], 4
          %s297 = int_to_ptr.vmem [resolvable:$true] %s296
          %302 = dma.hbm_to_vmem [thread:$0]  %s5, 1024, %s297, [#allocation9], 64, 64, 4
        $region32: #{tpu_custom_call.1} parent=11 // pred_fallthru
          _
        // Predicated region
        $region33: #{tpu_custom_call.1} parent=11 // pred_check
          %p303 = pneg %p175
        $region34: #{tpu_custom_call.1} parent=11 // pred_check_branch
          %305 = sbr.rel (%p303) target = $region36
        $region35: #{tpu_custom_call.1} parent=11 // pred_region
          _
        $region36: #{tpu_custom_call.1} parent=11 // pred_fallthru
          _
        // Predicated region
        $region37: #{tpu_custom_call.1} parent=11 // pred_check
          %p306 = pneg %p196
        $region38: #{tpu_custom_call.1} parent=11 // pred_check_branch
          %308 = sbr.rel (%p306) target = $region40
        $region39: #{tpu_custom_call.1} parent=11 // pred_region
          %s310 = ssub.s32 1024, 1024
          %311 = vsyncadd [#allocation9], %s310
          %s312 = sshll.u32 [#allocation10], 4
          %s313 = int_to_ptr.vmem [resolvable:$true] %s312
          %318 = dma.hbm_to_vmem [thread:$0]  %s7, 1024, %s313, [#allocation9], 64, 64, 4
        $region40: #{tpu_custom_call.1} parent=11 // pred_fallthru
          _
        // Predicated region
        $region41: #{tpu_custom_call.1} parent=11 // pred_check
          %p319 = pneg %p217
        $region42: #{tpu_custom_call.1} parent=11 // pred_check_branch
          %321 = sbr.rel (%p319) target = $region44
        $region43: #{tpu_custom_call.1} parent=11 // pred_region
          _
        $region44: #{tpu_custom_call.1} parent=11 // pred_fallthru
          _
      $region12: #{tpu_custom_call.1} parent=5 // pred_fallthru
        _
      %p322 = scmp.lt.s32.totalorder %s23, 3
      // Predicated region
      $region45: #{tpu_custom_call.1} parent=5 // pred_check
        %p323 = pneg %p322
      $region46: #{tpu_custom_call.1} parent=5 // pred_check_branch
        %325 = sbr.rel (%p323) target = $region48
      $region47: #{tpu_custom_call.1} parent=5 // pred_region
        // Predicated region
        $region49: #{tpu_custom_call.1} parent=47 // pred_check
          %p326 = pneg %p43
        $region50: #{tpu_custom_call.1} parent=47 // pred_check_branch
          %328 = sbr.rel (%p326) target = $region52
        $region51: #{tpu_custom_call.1} parent=47 // pred_region
          %s329 = sand.u32 %s33, 1
          %s330 = scalar_lea.sflag [#allocation3], %s329
          %s331 = sand.u32 %s33, 1
          %s332 = smul.addr %s331, 192
          %s333 = scalar_lea.vmem [#allocation2], %s332
          %s334 = smul.u32 16, %s23
          %s336 = ssub.s32 3072, 3072
          %337 = vsyncadd %s330, %s336
          %s338 = smul.addr %s334, 3
          %s339 = smul.addr %s338, 64
          %s340 = scalar_lea.hbm %s0, %s339
          %s341 = sshll.u32 %s333, 4
          %s342 = int_to_ptr.vmem [resolvable:$true] %s341
          %347 = dma.hbm_to_vmem [thread:$0]  %s340, 3072, %s342, %s330, 192, 192, 12
        $region52: #{tpu_custom_call.1} parent=47 // pred_fallthru
          _
      $region48: #{tpu_custom_call.1} parent=5 // pred_fallthru
        _
      %p348 = scmp.le.s32.totalorder 1, %s23
      %p349 = scmp.lt.s32.totalorder %s23, 4
      %p350 = pnand %p348, %p349
      %p351 = pneg %p350
      // Predicated region
      $region53: #{tpu_custom_call.1} parent=5 // pred_check
        _
      $region54: #{tpu_custom_call.1} parent=5 // pred_check_branch
        %353 = sbr.rel (%p350) target = $region56
      $region55: #{tpu_custom_call.1} parent=5 // pred_region
        %s354 = ssub.s32 %s23, 1
        %s355 = sand.u32 %s36, 1
        %s356 = scalar_lea.sflag [#allocation3], %s355
        %s357 = sand.u32 %s36, 1
        %s358 = smul.addr %s357, 192
        %s359 = scalar_lea.vmem [#allocation2], %s358
        // Predicated region
        $region57: #{tpu_custom_call.1} parent=55 // pred_check
          %p360 = pneg %p49
        $region58: #{tpu_custom_call.1} parent=55 // pred_check_branch
          %362 = sbr.rel (%p360) target = $region60
        $region59: #{tpu_custom_call.1} parent=55 // pred_region
          %363 = dma.done %s356, 3072
        $region60: #{tpu_custom_call.1} parent=55 // pred_fallthru
          _
        // Predicated region
        $region61: #{tpu_custom_call.1} parent=55 // pred_check
          %p364 = pneg %p70
        $region62: #{tpu_custom_call.1} parent=55 // pred_check_branch
          %366 = sbr.rel (%p364) target = $region64
        $region63: #{tpu_custom_call.1} parent=55 // pred_region
          %367 = dma.done [#allocation6], 3072
        $region64: #{tpu_custom_call.1} parent=55 // pred_fallthru
          _
        // Predicated region
        $region65: #{tpu_custom_call.1} parent=55 // pred_check
          %p368 = pneg %p112
        $region66: #{tpu_custom_call.1} parent=55 // pred_check_branch
          %370 = sbr.rel (%p368) target = $region68
        $region67: #{tpu_custom_call.1} parent=55 // pred_region
          %371 = dma.done [#allocation6], 1024
        $region68: #{tpu_custom_call.1} parent=55 // pred_fallthru
          _
        // Predicated region
        $region69: #{tpu_custom_call.1} parent=55 // pred_check
          %p372 = pneg %p154
        $region70: #{tpu_custom_call.1} parent=55 // pred_check_branch
          %374 = sbr.rel (%p372) target = $region72
        $region71: #{tpu_custom_call.1} parent=55 // pred_region
          %375 = dma.done [#allocation9], 1024
        $region72: #{tpu_custom_call.1} parent=55 // pred_fallthru
          _
        // Predicated region
        $region73: #{tpu_custom_call.1} parent=55 // pred_check
          %p376 = pneg %p196
        $region74: #{tpu_custom_call.1} parent=55 // pred_check_branch
          %378 = sbr.rel (%p376) target = $region76
        $region75: #{tpu_custom_call.1} parent=55 // pred_region
          %379 = dma.done [#allocation9], 1024
        $region76: #{tpu_custom_call.1} parent=55 // pred_fallthru
          _
        %s380 = sand.u32 %s36, 1
        %s381 = scalar_lea.sflag [#allocation3], %s380
        %s382 = sand.u32 %s36, 1
        %s383 = smul.addr %s382, 192
        %s384 = scalar_lea.vmem [#allocation2], %s383
        %p385 = pneg %p49
        %p386 = pneg %p46
        %p387 = pneg %p70
        %p388 = pneg %p67
        %p389 = pneg %p91
        %p390 = pneg %p88
        %p391 = pneg %p112
        %p392 = pneg %p109
        %p393 = pneg %p133
        %p394 = pneg %p130
        %p395 = pneg %p154
        %p396 = pneg %p151
        %p397 = pneg %p175
        %p398 = pneg %p172
        %p399 = pneg %p196
        %p400 = pneg %p193
        %p401 = pneg %p217
        %p402 = pneg %p214
        %p403 = pneg %p243
        %p404 = pneg %p240
        %s405 = sand.u32 %s230, 1
        %s406 = scalar_lea.sflag [#allocation4], %s405
        %s407 = sand.u32 %s230, 1
        %s408 = smul.addr %s407, 128
        %s409 = scalar_lea.vmem [#allocation11], %s408
        %s410 = smul.u32 16, %s28
        %s411 = smul.u32 16, %s28
        %v413 = vld [vmem:[%s359] sm:$0xff]
        %v414 = vld [vmem:[%s359 + $0x8] sm:$0xf]
        %v415 = vld [vmem:[%s359 + $0xc] sm:$0xff]
        %v416 = vld [vmem:[%s359 + $0x14] sm:$0xf]
        %v417 = vld [vmem:[%s359 + $0x18] sm:$0xff]
        %v418 = vld [vmem:[%s359 + $0x20] sm:$0xf]
        %v419 = vld [vmem:[%s359 + $0x24] sm:$0xff]
        %v420 = vld [vmem:[%s359 + $0x2c] sm:$0xf]
        %v421 = vld [vmem:[%s359 + $0x30] sm:$0xff]
        %v422 = vld [vmem:[%s359 + $0x38] sm:$0xf]
        %v423 = vld [vmem:[%s359 + $0x3c] sm:$0xff]
        %v424 = vld [vmem:[%s359 + $0x44] sm:$0xf]
        %v425 = vld [vmem:[%s359 + $0x48] sm:$0xff]
        %v426 = vld [vmem:[%s359 + $0x50] sm:$0xf]
        %v427 = vld [vmem:[%s359 + $0x54] sm:$0xff]
        %v428 = vld [vmem:[%s359 + $0x5c] sm:$0xf]
        %v429 = vld [vmem:[%s359 + $0x60] sm:$0xff]
        %v430 = vld [vmem:[%s359 + $0x68] sm:$0xf]
        %v431 = vld [vmem:[%s359 + $0x6c] sm:$0xff]
        %v432 = vld [vmem:[%s359 + $0x74] sm:$0xf]
        %v433 = vld [vmem:[%s359 + $0x78] sm:$0xff]
        %v434 = vld [vmem:[%s359 + $0x80] sm:$0xf]
        %v435 = vld [vmem:[%s359 + $0x84] sm:$0xff]
        %v436 = vld [vmem:[%s359 + $0x8c] sm:$0xf]
        %v437 = vld [vmem:[%s359 + $0x90] sm:$0xff]
        %v438 = vld [vmem:[%s359 + $0x98] sm:$0xf]
        %v439 = vld [vmem:[%s359 + $0x9c] sm:$0xff]
        %v440 = vld [vmem:[%s359 + $0xa4] sm:$0xf]
        %v441 = vld [vmem:[%s359 + $0xa8] sm:$0xff]
        %v442 = vld [vmem:[%s359 + $0xb0] sm:$0xf]
        %v443 = vld [vmem:[%s359 + $0xb4] sm:$0xff]
        %v444 = vld [vmem:[%s359 + $0xbc] sm:$0xf]
        %v445 = vld [vmem:[#allocation5] sm:$0xf]
        %v446 = vld [vmem:[#allocation5 + $0x4] sm:$0xf]
        %v447 = vld [vmem:[#allocation5 + $0x8] sm:$0xf]
        %v448 = vld [vmem:[#allocation5 + $0xc] sm:$0xf]
        %v449 = vld [vmem:[#allocation5 + $0x10] sm:$0xf]
        %v450 = vld [vmem:[#allocation5 + $0x14] sm:$0xf]
        %v451 = vld [vmem:[#allocation5 + $0x18] sm:$0xf]
        %v452 = vld [vmem:[#allocation5 + $0x1c] sm:$0xf]
        %v453 = vld [vmem:[#allocation5 + $0x20] sm:$0xf]
        %v454 = vld [vmem:[#allocation5 + $0x24] sm:$0xf]
        %v455 = vld [vmem:[#allocation5 + $0x28] sm:$0xf]
        %v456 = vld [vmem:[#allocation5 + $0x2c] sm:$0xf]
        %v457 = vld [vmem:[#allocation5 + $0x30] sm:$0xf]
        %v458 = vld [vmem:[#allocation5 + $0x34] sm:$0xf]
        %v459 = vld [vmem:[#allocation5 + $0x38] sm:$0xf]
        %v460 = vld [vmem:[#allocation5 + $0x3c] sm:$0xf]
        %v461 = vld [vmem:[#allocation5 + $0x40] sm:$0xf]
        %v462 = vld [vmem:[#allocation5 + $0x44] sm:$0xf]
        %v463 = vld [vmem:[#allocation5 + $0x48] sm:$0xf]
        %v464 = vld [vmem:[#allocation5 + $0x4c] sm:$0xf]
        %v465 = vld [vmem:[#allocation5 + $0x50] sm:$0xf]
        %v466 = vld [vmem:[#allocation5 + $0x54] sm:$0xf]
        %v467 = vld [vmem:[#allocation5 + $0x58] sm:$0xf]
        %v468 = vld [vmem:[#allocation5 + $0x5c] sm:$0xf]
        %v469 = vld [vmem:[#allocation5 + $0x60] sm:$0xf]
        %v470 = vld [vmem:[#allocation5 + $0x64] sm:$0xf]
        %v471 = vld [vmem:[#allocation5 + $0x68] sm:$0xf]
        %v472 = vld [vmem:[#allocation5 + $0x6c] sm:$0xf]
        %v473 = vld [vmem:[#allocation5 + $0x70] sm:$0xf]
        %v474 = vld [vmem:[#allocation5 + $0x74] sm:$0xf]
        %v475 = vld [vmem:[#allocation5 + $0x78] sm:$0xf]
        %v476 = vld [vmem:[#allocation5 + $0x7c] sm:$0xf]
        %v477 = vld [vmem:[#allocation5 + $0x80] sm:$0xf]
        %v478 = vld [vmem:[#allocation5 + $0x84] sm:$0xf]
        %v479 = vld [vmem:[#allocation5 + $0x88] sm:$0xf]
        %v480 = vld [vmem:[#allocation5 + $0x8c] sm:$0xf]
        %v481 = vld [vmem:[#allocation5 + $0x90] sm:$0xf]
        %v482 = vld [vmem:[#allocation5 + $0x94] sm:$0xf]
        %v483 = vld [vmem:[#allocation5 + $0x98] sm:$0xf]
        %v484 = vld [vmem:[#allocation5 + $0x9c] sm:$0xf]
        %v485 = vld [vmem:[#allocation5 + $0xa0] sm:$0xf]
        %v486 = vld [vmem:[#allocation5 + $0xa4] sm:$0xf]
        %v487 = vld [vmem:[#allocation5 + $0xa8] sm:$0xf]
        %v488 = vld [vmem:[#allocation5 + $0xac] sm:$0xf]
        %v489 = vld [vmem:[#allocation5 + $0xb0] sm:$0xf]
        %v490 = vld [vmem:[#allocation5 + $0xb4] sm:$0xf]
        %v491 = vld [vmem:[#allocation5 + $0xb8] sm:$0xf]
        %v492 = vld [vmem:[#allocation5 + $0xbc] sm:$0xf]
        %v493 = vld [vmem:[%s2] sm:$0x1]
        %v495 = vlaneseq
        %v496 = vshrl.u32 %v495, 7
        %v497 = vsub.s32 0, %v496
        %v498 = vrot.slane %v493, %v497
        %v532 = vunpack.c.l.b16 %v413
        %v533 = vunpack.c.h.b16 %v413
        %v534 = vunpack.c.l.b16 %v414
        %v535 = vunpack.c.l.b16 %v415
        %v536 = vunpack.c.h.b16 %v415
        %v537 = vunpack.c.l.b16 %v416
        %v538 = vunpack.c.l.b16 %v417
        %v539 = vunpack.c.h.b16 %v417
        %v540 = vunpack.c.l.b16 %v418
        %v541 = vunpack.c.l.b16 %v419
        %v542 = vunpack.c.h.b16 %v419
        %v543 = vunpack.c.l.b16 %v420
        %v544 = vunpack.c.l.b16 %v421
        %v545 = vunpack.c.h.b16 %v421
        %v546 = vunpack.c.l.b16 %v422
        %v547 = vunpack.c.l.b16 %v423
        %v548 = vunpack.c.h.b16 %v423
        %v549 = vunpack.c.l.b16 %v424
        %v550 = vunpack.c.l.b16 %v425
        %v551 = vunpack.c.h.b16 %v425
        %v552 = vunpack.c.l.b16 %v426
        %v553 = vunpack.c.l.b16 %v427
        %v554 = vunpack.c.h.b16 %v427
        %v555 = vunpack.c.l.b16 %v428
        %v556 = vunpack.c.l.b16 %v429
        %v557 = vunpack.c.h.b16 %v429
        %v558 = vunpack.c.l.b16 %v430
        %v559 = vunpack.c.l.b16 %v431
        %v560 = vunpack.c.h.b16 %v431
        %v561 = vunpack.c.l.b16 %v432
        %v562 = vunpack.c.l.b16 %v433
        %v563 = vunpack.c.h.b16 %v433
        %v564 = vunpack.c.l.b16 %v434
        %v565 = vunpack.c.l.b16 %v435
        %v566 = vunpack.c.h.b16 %v435
        %v567 = vunpack.c.l.b16 %v436
        %v568 = vunpack.c.l.b16 %v437
        %v569 = vunpack.c.h.b16 %v437
        %v570 = vunpack.c.l.b16 %v438
        %v571 = vunpack.c.l.b16 %v439
        %v572 = vunpack.c.h.b16 %v439
        %v573 = vunpack.c.l.b16 %v440
        %v574 = vunpack.c.l.b16 %v441
        %v575 = vunpack.c.h.b16 %v441
        %v576 = vunpack.c.l.b16 %v442
        %v577 = vunpack.c.l.b16 %v443
        %v578 = vunpack.c.h.b16 %v443
        %v579 = vunpack.c.l.b16 %v444
        %v580 = vpack.c.b16 %v535, %v532
        %v581 = vpack.c.b16 %v536, %v533
        %v582 = vpack.c.b16 %v537, %v534
        %v583 = vpack.c.b16 %v541, %v538
        %v584 = vpack.c.b16 %v542, %v539
        %v585 = vpack.c.b16 %v543, %v540
        %v586 = vpack.c.b16 %v547, %v544
        %v587 = vpack.c.b16 %v548, %v545
        %v588 = vpack.c.b16 %v549, %v546
        %v589 = vpack.c.b16 %v553, %v550
        %v590 = vpack.c.b16 %v554, %v551
        %v591 = vpack.c.b16 %v555, %v552
        %v592 = vpack.c.b16 %v559, %v556
        %v593 = vpack.c.b16 %v560, %v557
        %v594 = vpack.c.b16 %v561, %v558
        %v595 = vpack.c.b16 %v565, %v562
        %v596 = vpack.c.b16 %v566, %v563
        %v597 = vpack.c.b16 %v567, %v564
        %v598 = vpack.c.b16 %v571, %v568
        %v599 = vpack.c.b16 %v572, %v569
        %v600 = vpack.c.b16 %v573, %v570
        %v601 = vpack.c.b16 %v577, %v574
        %v602 = vpack.c.b16 %v578, %v575
        %v603 = vpack.c.b16 %v579, %v576
        %v676 = vunpack.c.l.b16 %v445
        %v677 = vunpack.c.l.b16 %v446
        %v678 = vunpack.c.l.b16 %v447
        %v679 = vunpack.c.l.b16 %v448
        %v680 = vunpack.c.l.b16 %v449
        %v681 = vunpack.c.l.b16 %v450
        %v682 = vunpack.c.l.b16 %v451
        %v683 = vunpack.c.l.b16 %v452
        %v684 = vunpack.c.l.b16 %v453
        %v685 = vunpack.c.l.b16 %v454
        %v686 = vunpack.c.l.b16 %v455
        %v687 = vunpack.c.l.b16 %v456
        %v688 = vunpack.c.l.b16 %v457
        %v689 = vunpack.c.l.b16 %v458
        %v690 = vunpack.c.l.b16 %v459
        %v691 = vunpack.c.l.b16 %v460
        %v692 = vunpack.c.l.b16 %v461
        %v693 = vunpack.c.l.b16 %v462
        %v694 = vunpack.c.l.b16 %v463
        %v695 = vunpack.c.l.b16 %v464
        %v696 = vunpack.c.l.b16 %v465
        %v697 = vunpack.c.l.b16 %v466
        %v698 = vunpack.c.l.b16 %v467
        %v699 = vunpack.c.l.b16 %v468
        %v700 = vunpack.c.l.b16 %v469
        %v701 = vunpack.c.l.b16 %v470
        %v702 = vunpack.c.l.b16 %v471
        %v703 = vunpack.c.l.b16 %v472
        %v704 = vunpack.c.l.b16 %v473
        %v705 = vunpack.c.l.b16 %v474
        %v706 = vunpack.c.l.b16 %v475
        %v707 = vunpack.c.l.b16 %v476
        %v708 = vunpack.c.l.b16 %v477
        %v709 = vunpack.c.l.b16 %v478
        %v710 = vunpack.c.l.b16 %v479
        %v711 = vunpack.c.l.b16 %v480
        %v712 = vunpack.c.l.b16 %v481
        %v713 = vunpack.c.l.b16 %v482
        %v714 = vunpack.c.l.b16 %v483
        %v715 = vunpack.c.l.b16 %v484
        %v716 = vunpack.c.l.b16 %v485
        %v717 = vunpack.c.l.b16 %v486
        %v718 = vunpack.c.l.b16 %v487
        %v719 = vunpack.c.l.b16 %v488
        %v720 = vunpack.c.l.b16 %v489
        %v721 = vunpack.c.l.b16 %v490
        %v722 = vunpack.c.l.b16 %v491
        %v723 = vunpack.c.l.b16 %v492
        %v724 = vpack.c.b16 %v677, %v676
        %v725 = vpack.c.b16 %v679, %v678
        %v726 = vpack.c.b16 %v681, %v680
        %v727 = vpack.c.b16 %v683, %v682
        %v728 = vpack.c.b16 %v685, %v684
        %v729 = vpack.c.b16 %v687, %v686
        %v730 = vpack.c.b16 %v689, %v688
        %v731 = vpack.c.b16 %v691, %v690
        %v732 = vpack.c.b16 %v693, %v692
        %v733 = vpack.c.b16 %v695, %v694
        %v734 = vpack.c.b16 %v697, %v696
        %v735 = vpack.c.b16 %v699, %v698
        %v736 = vpack.c.b16 %v701, %v700
        %v737 = vpack.c.b16 %v703, %v702
        %v738 = vpack.c.b16 %v705, %v704
        %v739 = vpack.c.b16 %v707, %v706
        %v740 = vpack.c.b16 %v709, %v708
        %v741 = vpack.c.b16 %v711, %v710
        %v742 = vpack.c.b16 %v713, %v712
        %v743 = vpack.c.b16 %v715, %v714
        %v744 = vpack.c.b16 %v717, %v716
        %v745 = vpack.c.b16 %v719, %v718
        %v746 = vpack.c.b16 %v721, %v720
        %v747 = vpack.c.b16 %v723, %v722
        %772 = vmatprep.subr.bf16.mxu0 0
        %773 = vmatpush1.bf16.msra.mxu0 %v724
        %774 = vmatprep.subr.bf16.mxu0 0
        %775 = vmatpush1.bf16.msra.mxu0 %v725
        %776 = vmatprep.subr.bf16.mxu0 0
        %777 = vmatpush1.bf16.msra.mxu0 %v726
        %778 = vmatprep.subr.bf16.mxu0 0
        %779 = vmatpush1.bf16.msra.mxu0 %v727
        %780 = vmatprep.subr.bf16.mxu0 0
        %781 = vmatpush1.bf16.msra.mxu0 %v728
        %782 = vmatprep.subr.bf16.mxu0 0
        %783 = vmatpush1.bf16.msra.mxu0 %v729
        %784 = vmatprep.subr.bf16.mxu0 0
        %785 = vmatpush1.bf16.msra.mxu0 %v730
        %786 = vmatprep.subr.bf16.mxu0 0
        %787 = vmatpush1.bf16.msra.mxu0 %v731
        %788 = vmatprep.subr.bf16.mxu0 0
        %789 = vmatpush1.bf16.msra.mxu0 %v732
        %790 = vmatprep.subr.bf16.mxu0 0
        %791 = vmatpush1.bf16.msra.mxu0 %v733
        %792 = vmatprep.subr.bf16.mxu0 0
        %793 = vmatpush1.bf16.msra.mxu0 %v734
        %794 = vmatprep.subr.bf16.mxu0 0
        %795 = vmatpush1.bf16.msra.mxu0 %v735
        %796 = vmatprep.subr.bf16.mxu0 0
        %797 = vmatpush1.bf16.msra.mxu0 %v736
        %798 = vmatprep.subr.bf16.mxu0 0
        %799 = vmatpush1.bf16.msra.mxu0 %v737
        %800 = vmatprep.subr.bf16.mxu0 0
        %801 = vmatpush1.bf16.msra.mxu0 %v738
        %802 = vmatprep.subr.bf16.mxu0 0
        %803 = vmatpush1.bf16.msra.mxu0 %v739
        %804 = vmatprep.mubr.bf16.mxu0 %v581
        %805 = vmatmul.mubr.bf16.gmra.mrb[0].mxu0 %v580
        %v806 = vpop.f32.mrb[0].mxu0
        %v807 = vadd.f32 %v498, %v806
        %v808 = vpop.f32.mrb[0].mxu0
        %v809 = vpop.f32.mrb[0].mxu0
        %v810 = vadd.f32 %v498, %v809
        %v811 = vpop.f32.mrb[0].mxu0
        %812 = vmatprep.mubr.bf16.mxu0 %v584
        %813 = vmatmul.mubr.bf16.gmra.mrb[0].mxu0 %v583
        %v814 = vpop.f32.mrb[0].mxu0
        %v815 = vadd.f32 %v498, %v814
        %v816 = vpop.f32.mrb[0].mxu0
        %v817 = vpop.f32.mrb[0].mxu0
        %v818 = vadd.f32 %v498, %v817
        %v819 = vpop.f32.mrb[0].mxu0
        %820 = vmatprep.mubr.bf16.mxu0 %v587
        %821 = vmatmul.mubr.bf16.gmra.mrb[0].mxu0 %v586
        %v822 = vpop.f32.mrb[0].mxu0
        %v823 = vadd.f32 %v498, %v822
        %v824 = vpop.f32.mrb[0].mxu0
        %v825 = vpop.f32.mrb[0].mxu0
        %v826 = vadd.f32 %v498, %v825
        %v827 = vpop.f32.mrb[0].mxu0
        %828 = vmatprep.mubr.bf16.mxu0 %v590
        %829 = vmatmul.mubr.bf16.gmra.mrb[0].mxu0 %v589
        %v830 = vpop.f32.mrb[0].mxu0
        %v831 = vadd.f32 %v498, %v830
        %v832 = vpop.f32.mrb[0].mxu0
        %v833 = vpop.f32.mrb[0].mxu0
        %v834 = vadd.f32 %v498, %v833
        %v835 = vpop.f32.mrb[0].mxu0
        %836 = vmatprep.mubr.bf16.mxu0 %v593
        %837 = vmatmul.mubr.bf16.gmra.mrb[0].mxu0 %v592
        %v838 = vpop.f32.mrb[0].mxu0
        %v839 = vadd.f32 %v498, %v838
        %v840 = vpop.f32.mrb[0].mxu0
        %v841 = vpop.f32.mrb[0].mxu0
        %v842 = vadd.f32 %v498, %v841
        %v843 = vpop.f32.mrb[0].mxu0
        %844 = vmatprep.mubr.bf16.mxu0 %v596
        %845 = vmatmul.mubr.bf16.gmra.mrb[0].mxu0 %v595
        %v846 = vpop.f32.mrb[0].mxu0
        %v847 = vadd.f32 %v498, %v846
        %v848 = vpop.f32.mrb[0].mxu0
        %v849 = vpop.f32.mrb[0].mxu0
        %v850 = vadd.f32 %v498, %v849
        %v851 = vpop.f32.mrb[0].mxu0
        %852 = vmatprep.mubr.bf16.mxu0 %v599
        %853 = vmatmul.mubr.bf16.gmra.mrb[0].mxu0 %v598
        %v854 = vpop.f32.mrb[0].mxu0
        %v855 = vadd.f32 %v498, %v854
        %v856 = vpop.f32.mrb[0].mxu0
        %v857 = vpop.f32.mrb[0].mxu0
        %v858 = vadd.f32 %v498, %v857
        %v859 = vpop.f32.mrb[0].mxu0
        %860 = vmatprep.mubr.bf16.mxu0 %v602
        %861 = vmatmul.mubr.bf16.gmra.mrb[0].mxu0 %v601
        %v862 = vpop.f32.mrb[0].mxu0
        %v863 = vadd.f32 %v498, %v862
        %v864 = vpop.f32.mrb[0].mxu0
        %v865 = vpop.f32.mrb[0].mxu0
        %v866 = vadd.f32 %v498, %v865
        %v867 = vpop.f32.mrb[0].mxu0
        %868 = vdwg.mxu0
        %869 = vmatprep.subr.bf16.mxu0 0
        %870 = vmatpush1.bf16.msra.mxu0 %v740
        %871 = vmatprep.subr.bf16.mxu0 0
        %872 = vmatpush1.bf16.msra.mxu0 %v741
        %873 = vmatprep.subr.bf16.mxu0 0
        %874 = vmatpush1.bf16.msra.mxu0 %v742
        %875 = vmatprep.subr.bf16.mxu0 0
        %876 = vmatpush1.bf16.msra.mxu0 %v743
        %877 = vmatprep.subr.bf16.mxu0 0
        %878 = vmatpush1.bf16.msra.mxu0 %v744
        %879 = vmatprep.subr.bf16.mxu0 0
        %880 = vmatpush1.bf16.msra.mxu0 %v745
        %881 = vmatprep.subr.bf16.mxu0 0
        %882 = vmatpush1.bf16.msra.mxu0 %v746
        %883 = vmatprep.subr.bf16.mxu0 0
        %884 = vmatpush1.bf16.msra.mxu0 %v747
        %885 = vmatprep.subr.bf16.mxu0 0
        %886 = vmatpush1.bf16.msra.mxu0 0
        %887 = vmatprep.subr.bf16.mxu0 0
        %888 = vmatpush1.bf16.msra.mxu0 0
        %889 = vmatprep.subr.bf16.mxu0 0
        %890 = vmatpush1.bf16.msra.mxu0 0
        %891 = vmatprep.subr.bf16.mxu0 0
        %892 = vmatpush1.bf16.msra.mxu0 0
        %893 = vmatprep.subr.bf16.mxu0 0
        %894 = vmatpush1.bf16.msra.mxu0 0
        %895 = vmatprep.subr.bf16.mxu0 0
        %896 = vmatpush1.bf16.msra.mxu0 0
        %897 = vmatprep.subr.bf16.mxu0 0
        %898 = vmatpush1.bf16.msra.mxu0 0
        %899 = vmatprep.subr.bf16.mxu0 0
        %900 = vmatpush1.bf16.msra.mxu0 0
        %901 = vmatprep.mubr.bf16.mxu0 0
        %902 = vmatmul.mubr.bf16.gmra.mrb[0].mxu0 %v582
        %v903 = vpop.f32.mrb[0].mxu0
        %v904 = vadd.f32 %v807, %v903
        %v905 = vpop.f32.mrb[0].mxu0
        %v906 = vpop.f32.mrb[0].mxu0
        %v907 = vadd.f32 %v810, %v906
        %v908 = vpop.f32.mrb[0].mxu0
        %909 = vmatprep.mubr.bf16.mxu0 0
        %910 = vmatmul.mubr.bf16.gmra.mrb[0].mxu0 %v585
        %v911 = vpop.f32.mrb[0].mxu0
        %v912 = vadd.f32 %v815, %v911
        %v913 = vpop.f32.mrb[0].mxu0
        %v914 = vpop.f32.mrb[0].mxu0
        %v915 = vadd.f32 %v818, %v914
        %v916 = vpop.f32.mrb[0].mxu0
        %917 = vmatprep.mubr.bf16.mxu0 0
        %918 = vmatmul.mubr.bf16.gmra.mrb[0].mxu0 %v588
        %v919 = vpop.f32.mrb[0].mxu0
        %v920 = vadd.f32 %v823, %v919
        %v921 = vpop.f32.mrb[0].mxu0
        %v922 = vpop.f32.mrb[0].mxu0
        %v923 = vadd.f32 %v826, %v922
        %v924 = vpop.f32.mrb[0].mxu0
        %925 = vmatprep.mubr.bf16.mxu0 0
        %926 = vmatmul.mubr.bf16.gmra.mrb[0].mxu0 %v591
        %v927 = vpop.f32.mrb[0].mxu0
        %v928 = vadd.f32 %v831, %v927
        %v929 = vpop.f32.mrb[0].mxu0
        %v930 = vpop.f32.mrb[0].mxu0
        %v931 = vadd.f32 %v834, %v930
        %v932 = vpop.f32.mrb[0].mxu0
        %933 = vmatprep.mubr.bf16.mxu0 0
        %934 = vmatmul.mubr.bf16.gmra.mrb[0].mxu0 %v594
        %v935 = vpop.f32.mrb[0].mxu0
        %v936 = vadd.f32 %v839, %v935
        %v937 = vpop.f32.mrb[0].mxu0
        %v938 = vpop.f32.mrb[0].mxu0
        %v939 = vadd.f32 %v842, %v938
        %v940 = vpop.f32.mrb[0].mxu0
        %941 = vmatprep.mubr.bf16.mxu0 0
        %942 = vmatmul.mubr.bf16.gmra.mrb[0].mxu0 %v597
        %v943 = vpop.f32.mrb[0].mxu0
        %v944 = vadd.f32 %v847, %v943
        %v945 = vpop.f32.mrb[0].mxu0
        %v946 = vpop.f32.mrb[0].mxu0
        %v947 = vadd.f32 %v850, %v946
        %v948 = vpop.f32.mrb[0].mxu0
        %949 = vmatprep.mubr.bf16.mxu0 0
        %950 = vmatmul.mubr.bf16.gmra.mrb[0].mxu0 %v600
        %v951 = vpop.f32.mrb[0].mxu0
        %v952 = vadd.f32 %v855, %v951
        %v953 = vpop.f32.mrb[0].mxu0
        %v954 = vpop.f32.mrb[0].mxu0
        %v955 = vadd.f32 %v858, %v954
        %v956 = vpop.f32.mrb[0].mxu0
        %957 = vmatprep.mubr.bf16.mxu0 0
        %958 = vmatmul.mubr.bf16.gmra.mrb[0].mxu0 %v603
        %v959 = vpop.f32.mrb[0].mxu0
        %v960 = vadd.f32 %v863, %v959
        %v961 = vpop.f32.mrb[0].mxu0
        %v962 = vpop.f32.mrb[0].mxu0
        %v963 = vadd.f32 %v866, %v962
        %v964 = vpop.f32.mrb[0].mxu0
        %965 = vdwg.mxu0
        %v966 = vmax.f32 %v904, 0.0
        %v967 = vmax.f32 %v907, 0.0
        %v968 = vmax.f32 %v912, 0.0
        %v969 = vmax.f32 %v915, 0.0
        %v970 = vmax.f32 %v920, 0.0
        %v971 = vmax.f32 %v923, 0.0
        %v972 = vmax.f32 %v928, 0.0
        %v973 = vmax.f32 %v931, 0.0
        %v974 = vmax.f32 %v936, 0.0
        %v975 = vmax.f32 %v939, 0.0
        %v976 = vmax.f32 %v944, 0.0
        %v977 = vmax.f32 %v947, 0.0
        %v978 = vmax.f32 %v952, 0.0
        %v979 = vmax.f32 %v955, 0.0
        %v980 = vmax.f32 %v960, 0.0
        %v981 = vmax.f32 %v963, 0.0
        %v982 = vpack.c.bf16 %v967, %v966
        %v983 = vpack.c.bf16 %v969, %v968
        %v984 = vpack.c.bf16 %v971, %v970
        %v985 = vpack.c.bf16 %v973, %v972
        %v986 = vpack.c.bf16 %v975, %v974
        %v987 = vpack.c.bf16 %v977, %v976
        %v988 = vpack.c.bf16 %v979, %v978
        %v989 = vpack.c.bf16 %v981, %v980
        %v990 = vld [vmem:[#allocation7] sm:$0xf]
        %v991 = vld [vmem:[#allocation7 + $0x4] sm:$0xf]
        %v992 = vld [vmem:[#allocation7 + $0x8] sm:$0xf]
        %v993 = vld [vmem:[#allocation7 + $0xc] sm:$0xf]
        %v994 = vld [vmem:[#allocation7 + $0x10] sm:$0xf]
        %v995 = vld [vmem:[#allocation7 + $0x14] sm:$0xf]
        %v996 = vld [vmem:[#allocation7 + $0x18] sm:$0xf]
        %v997 = vld [vmem:[#allocation7 + $0x1c] sm:$0xf]
        %v998 = vld [vmem:[#allocation7 + $0x20] sm:$0xf]
        %v999 = vld [vmem:[#allocation7 + $0x24] sm:$0xf]
        %v1000 = vld [vmem:[#allocation7 + $0x28] sm:$0xf]
        %v1001 = vld [vmem:[#allocation7 + $0x2c] sm:$0xf]
        %v1002 = vld [vmem:[#allocation7 + $0x30] sm:$0xf]
        %v1003 = vld [vmem:[#allocation7 + $0x34] sm:$0xf]
        %v1004 = vld [vmem:[#allocation7 + $0x38] sm:$0xf]
        %v1005 = vld [vmem:[#allocation7 + $0x3c] sm:$0xf]
        %v1006 = vld [vmem:[%s4] sm:$0x1]
        %v1008 = vlaneseq
        %v1009 = vshrl.u32 %v1008, 7
        %v1010 = vsub.s32 0, %v1009
        %v1011 = vrot.slane %v1006, %v1010
        %v1029 = vunpack.c.l.b16 %v990
        %v1030 = vunpack.c.l.b16 %v991
        %v1031 = vunpack.c.l.b16 %v992
        %v1032 = vunpack.c.l.b16 %v993
        %v1033 = vunpack.c.l.b16 %v994
        %v1034 = vunpack.c.l.b16 %v995
        %v1035 = vunpack.c.l.b16 %v996
        %v1036 = vunpack.c.l.b16 %v997
        %v1037 = vunpack.c.l.b16 %v998
        %v1038 = vunpack.c.l.b16 %v999
        %v1039 = vunpack.c.l.b16 %v1000
        %v1040 = vunpack.c.l.b16 %v1001
        %v1041 = vunpack.c.l.b16 %v1002
        %v1042 = vunpack.c.l.b16 %v1003
        %v1043 = vunpack.c.l.b16 %v1004
        %v1044 = vunpack.c.l.b16 %v1005
        %v1045 = vpack.c.b16 %v1030, %v1029
        %v1046 = vpack.c.b16 %v1032, %v1031
        %v1047 = vpack.c.b16 %v1034, %v1033
        %v1048 = vpack.c.b16 %v1036, %v1035
        %v1049 = vpack.c.b16 %v1038, %v1037
        %v1050 = vpack.c.b16 %v1040, %v1039
        %v1051 = vpack.c.b16 %v1042, %v1041
        %v1052 = vpack.c.b16 %v1044, %v1043
        %1061 = vmatprep.subr.bf16.mxu0 0
        %1062 = vmatpush1.bf16.msra.mxu0 %v1045
        %1063 = vmatprep.subr.bf16.mxu0 0
        %1064 = vmatpush1.bf16.msra.mxu0 %v1046
        %1065 = vmatprep.subr.bf16.mxu0 0
        %1066 = vmatpush1.bf16.msra.mxu0 %v1047
        %1067 = vmatprep.subr.bf16.mxu0 0
        %1068 = vmatpush1.bf16.msra.mxu0 %v1048
        %1069 = vmatprep.subr.bf16.mxu0 0
        %1070 = vmatpush1.bf16.msra.mxu0 %v1049
        %1071 = vmatprep.subr.bf16.mxu0 0
        %1072 = vmatpush1.bf16.msra.mxu0 %v1050
        %1073 = vmatprep.subr.bf16.mxu0 0
        %1074 = vmatpush1.bf16.msra.mxu0 %v1051
        %1075 = vmatprep.subr.bf16.mxu0 0
        %1076 = vmatpush1.bf16.msra.mxu0 %v1052
        %1077 = vmatprep.subr.bf16.mxu0 0
        %1078 = vmatpush1.bf16.msra.mxu0 0
        %1079 = vmatprep.subr.bf16.mxu0 0
        %1080 = vmatpush1.bf16.msra.mxu0 0
        %1081 = vmatprep.subr.bf16.mxu0 0
        %1082 = vmatpush1.bf16.msra.mxu0 0
        %1083 = vmatprep.subr.bf16.mxu0 0
        %1084 = vmatpush1.bf16.msra.mxu0 0
        %1085 = vmatprep.subr.bf16.mxu0 0
        %1086 = vmatpush1.bf16.msra.mxu0 0
        %1087 = vmatprep.subr.bf16.mxu0 0
        %1088 = vmatpush1.bf16.msra.mxu0 0
        %1089 = vmatprep.subr.bf16.mxu0 0
        %1090 = vmatpush1.bf16.msra.mxu0 0
        %1091 = vmatprep.subr.bf16.mxu0 0
        %1092 = vmatpush1.bf16.msra.mxu0 0
        %1093 = vmatprep.mubr.bf16.mxu0 0
        %1094 = vmatmul.mubr.bf16.gmra.mrb[0].mxu0 %v982
        %v1095 = vpop.f32.mrb[0].mxu0
        %v1096 = vadd.f32 %v1011, %v1095
        %v1097 = vpop.f32.mrb[0].mxu0
        %v1098 = vpop.f32.mrb[0].mxu0
        %v1099 = vadd.f32 %v1011, %v1098
        %v1100 = vpop.f32.mrb[0].mxu0
        %1101 = vmatprep.mubr.bf16.mxu0 0
        %1102 = vmatmul.mubr.bf16.gmra.mrb[0].mxu0 %v983
        %v1103 = vpop.f32.mrb[0].mxu0
        %v1104 = vadd.f32 %v1011, %v1103
        %v1105 = vpop.f32.mrb[0].mxu0
        %v1106 = vpop.f32.mrb[0].mxu0
        %v1107 = vadd.f32 %v1011, %v1106
        %v1108 = vpop.f32.mrb[0].mxu0
        %1109 = vmatprep.mubr.bf16.mxu0 0
        %1110 = vmatmul.mubr.bf16.gmra.mrb[0].mxu0 %v984
        %v1111 = vpop.f32.mrb[0].mxu0
        %v1112 = vadd.f32 %v1011, %v1111
        %v1113 = vpop.f32.mrb[0].mxu0
        %v1114 = vpop.f32.mrb[0].mxu0
        %v1115 = vadd.f32 %v1011, %v1114
        %v1116 = vpop.f32.mrb[0].mxu0
        %1117 = vmatprep.mubr.bf16.mxu0 0
        %1118 = vmatmul.mubr.bf16.gmra.mrb[0].mxu0 %v985
        %v1119 = vpop.f32.mrb[0].mxu0
        %v1120 = vadd.f32 %v1011, %v1119
        %v1121 = vpop.f32.mrb[0].mxu0
        %v1122 = vpop.f32.mrb[0].mxu0
        %v1123 = vadd.f32 %v1011, %v1122
        %v1124 = vpop.f32.mrb[0].mxu0
        %1125 = vmatprep.mubr.bf16.mxu0 0
        %1126 = vmatmul.mubr.bf16.gmra.mrb[0].mxu0 %v986
        %v1127 = vpop.f32.mrb[0].mxu0
        %v1128 = vadd.f32 %v1011, %v1127
        %v1129 = vpop.f32.mrb[0].mxu0
        %v1130 = vpop.f32.mrb[0].mxu0
        %v1131 = vadd.f32 %v1011, %v1130
        %v1132 = vpop.f32.mrb[0].mxu0
        %1133 = vmatprep.mubr.bf16.mxu0 0
        %1134 = vmatmul.mubr.bf16.gmra.mrb[0].mxu0 %v987
        %v1135 = vpop.f32.mrb[0].mxu0
        %v1136 = vadd.f32 %v1011, %v1135
        %v1137 = vpop.f32.mrb[0].mxu0
        %v1138 = vpop.f32.mrb[0].mxu0
        %v1139 = vadd.f32 %v1011, %v1138
        %v1140 = vpop.f32.mrb[0].mxu0
        %1141 = vmatprep.mubr.bf16.mxu0 0
        %1142 = vmatmul.mubr.bf16.gmra.mrb[0].mxu0 %v988
        %v1143 = vpop.f32.mrb[0].mxu0
        %v1144 = vadd.f32 %v1011, %v1143
        %v1145 = vpop.f32.mrb[0].mxu0
        %v1146 = vpop.f32.mrb[0].mxu0
        %v1147 = vadd.f32 %v1011, %v1146
        %v1148 = vpop.f32.mrb[0].mxu0
        %1149 = vmatprep.mubr.bf16.mxu0 0
        %1150 = vmatmul.mubr.bf16.gmra.mrb[0].mxu0 %v989
        %v1151 = vpop.f32.mrb[0].mxu0
        %v1152 = vadd.f32 %v1011, %v1151
        %v1153 = vpop.f32.mrb[0].mxu0
        %v1154 = vpop.f32.mrb[0].mxu0
        %v1155 = vadd.f32 %v1011, %v1154
        %v1156 = vpop.f32.mrb[0].mxu0
        %1157 = vdwg.mxu0
        %v1158 = vmax.f32 %v1096, 0.0
        %v1159 = vmax.f32 %v1099, 0.0
        %v1160 = vmax.f32 %v1104, 0.0
        %v1161 = vmax.f32 %v1107, 0.0
        %v1162 = vmax.f32 %v1112, 0.0
        %v1163 = vmax.f32 %v1115, 0.0
        %v1164 = vmax.f32 %v1120, 0.0
        %v1165 = vmax.f32 %v1123, 0.0
        %v1166 = vmax.f32 %v1128, 0.0
        %v1167 = vmax.f32 %v1131, 0.0
        %v1168 = vmax.f32 %v1136, 0.0
        %v1169 = vmax.f32 %v1139, 0.0
        %v1170 = vmax.f32 %v1144, 0.0
        %v1171 = vmax.f32 %v1147, 0.0
        %v1172 = vmax.f32 %v1152, 0.0
        %v1173 = vmax.f32 %v1155, 0.0
        %v1174 = vpack.c.bf16 %v1159, %v1158
        %v1175 = vpack.c.bf16 %v1161, %v1160
        %v1176 = vpack.c.bf16 %v1163, %v1162
        %v1177 = vpack.c.bf16 %v1165, %v1164
        %v1178 = vpack.c.bf16 %v1167, %v1166
        %v1179 = vpack.c.bf16 %v1169, %v1168
        %v1180 = vpack.c.bf16 %v1171, %v1170
        %v1181 = vpack.c.bf16 %v1173, %v1172
        %v1182 = vld [vmem:[#allocation8] sm:$0xf]
        %v1183 = vld [vmem:[#allocation8 + $0x4] sm:$0xf]
        %v1184 = vld [vmem:[#allocation8 + $0x8] sm:$0xf]
        %v1185 = vld [vmem:[#allocation8 + $0xc] sm:$0xf]
        %v1186 = vld [vmem:[#allocation8 + $0x10] sm:$0xf]
        %v1187 = vld [vmem:[#allocation8 + $0x14] sm:$0xf]
        %v1188 = vld [vmem:[#allocation8 + $0x18] sm:$0xf]
        %v1189 = vld [vmem:[#allocation8 + $0x1c] sm:$0xf]
        %v1190 = vld [vmem:[#allocation8 + $0x20] sm:$0xf]
        %v1191 = vld [vmem:[#allocation8 + $0x24] sm:$0xf]
        %v1192 = vld [vmem:[#allocation8 + $0x28] sm:$0xf]
        %v1193 = vld [vmem:[#allocation8 + $0x2c] sm:$0xf]
        %v1194 = vld [vmem:[#allocation8 + $0x30] sm:$0xf]
        %v1195 = vld [vmem:[#allocation8 + $0x34] sm:$0xf]
        %v1196 = vld [vmem:[#allocation8 + $0x38] sm:$0xf]
        %v1197 = vld [vmem:[#allocation8 + $0x3c] sm:$0xf]
        %v1198 = vld [vmem:[%s6] sm:$0x1]
        %v1200 = vlaneseq
        %v1201 = vshrl.u32 %v1200, 7
        %v1202 = vsub.s32 0, %v1201
        %v1203 = vrot.slane %v1198, %v1202
        %v1221 = vunpack.c.l.b16 %v1182
        %v1222 = vunpack.c.l.b16 %v1183
        %v1223 = vunpack.c.l.b16 %v1184
        %v1224 = vunpack.c.l.b16 %v1185
        %v1225 = vunpack.c.l.b16 %v1186
        %v1226 = vunpack.c.l.b16 %v1187
        %v1227 = vunpack.c.l.b16 %v1188
        %v1228 = vunpack.c.l.b16 %v1189
        %v1229 = vunpack.c.l.b16 %v1190
        %v1230 = vunpack.c.l.b16 %v1191
        %v1231 = vunpack.c.l.b16 %v1192
        %v1232 = vunpack.c.l.b16 %v1193
        %v1233 = vunpack.c.l.b16 %v1194
        %v1234 = vunpack.c.l.b16 %v1195
        %v1235 = vunpack.c.l.b16 %v1196
        %v1236 = vunpack.c.l.b16 %v1197
        %v1237 = vpack.c.b16 %v1222, %v1221
        %v1238 = vpack.c.b16 %v1224, %v1223
        %v1239 = vpack.c.b16 %v1226, %v1225
        %v1240 = vpack.c.b16 %v1228, %v1227
        %v1241 = vpack.c.b16 %v1230, %v1229
        %v1242 = vpack.c.b16 %v1232, %v1231
        %v1243 = vpack.c.b16 %v1234, %v1233
        %v1244 = vpack.c.b16 %v1236, %v1235
        %1253 = vmatprep.subr.bf16.mxu0 0
        %1254 = vmatpush1.bf16.msra.mxu0 %v1237
        %1255 = vmatprep.subr.bf16.mxu0 0
        %1256 = vmatpush1.bf16.msra.mxu0 %v1238
        %1257 = vmatprep.subr.bf16.mxu0 0
        %1258 = vmatpush1.bf16.msra.mxu0 %v1239
        %1259 = vmatprep.subr.bf16.mxu0 0
        %1260 = vmatpush1.bf16.msra.mxu0 %v1240
        %1261 = vmatprep.subr.bf16.mxu0 0
        %1262 = vmatpush1.bf16.msra.mxu0 %v1241
        %1263 = vmatprep.subr.bf16.mxu0 0
        %1264 = vmatpush1.bf16.msra.mxu0 %v1242
        %1265 = vmatprep.subr.bf16.mxu0 0
        %1266 = vmatpush1.bf16.msra.mxu0 %v1243
        %1267 = vmatprep.subr.bf16.mxu0 0
        %1268 = vmatpush1.bf16.msra.mxu0 %v1244
        %1269 = vmatprep.subr.bf16.mxu0 0
        %1270 = vmatpush1.bf16.msra.mxu0 0
        %1271 = vmatprep.subr.bf16.mxu0 0
        %1272 = vmatpush1.bf16.msra.mxu0 0
        %1273 = vmatprep.subr.bf16.mxu0 0
        %1274 = vmatpush1.bf16.msra.mxu0 0
        %1275 = vmatprep.subr.bf16.mxu0 0
        %1276 = vmatpush1.bf16.msra.mxu0 0
        %1277 = vmatprep.subr.bf16.mxu0 0
        %1278 = vmatpush1.bf16.msra.mxu0 0
        %1279 = vmatprep.subr.bf16.mxu0 0
        %1280 = vmatpush1.bf16.msra.mxu0 0
        %1281 = vmatprep.subr.bf16.mxu0 0
        %1282 = vmatpush1.bf16.msra.mxu0 0
        %1283 = vmatprep.subr.bf16.mxu0 0
        %1284 = vmatpush1.bf16.msra.mxu0 0
        %1285 = vmatprep.mubr.bf16.mxu0 0
        %1286 = vmatmul.mubr.bf16.gmra.mrb[0].mxu0 %v1174
        %v1287 = vpop.f32.mrb[0].mxu0
        %v1288 = vadd.f32 %v1203, %v1287
        %v1289 = vpop.f32.mrb[0].mxu0
        %v1290 = vpop.f32.mrb[0].mxu0
        %v1291 = vadd.f32 %v1203, %v1290
        %v1292 = vpop.f32.mrb[0].mxu0
        %1293 = vmatprep.mubr.bf16.mxu0 0
        %1294 = vmatmul.mubr.bf16.gmra.mrb[0].mxu0 %v1175
        %v1295 = vpop.f32.mrb[0].mxu0
        %v1296 = vadd.f32 %v1203, %v1295
        %v1297 = vpop.f32.mrb[0].mxu0
        %v1298 = vpop.f32.mrb[0].mxu0
        %v1299 = vadd.f32 %v1203, %v1298
        %v1300 = vpop.f32.mrb[0].mxu0
        %1301 = vmatprep.mubr.bf16.mxu0 0
        %1302 = vmatmul.mubr.bf16.gmra.mrb[0].mxu0 %v1176
        %v1303 = vpop.f32.mrb[0].mxu0
        %v1304 = vadd.f32 %v1203, %v1303
        %v1305 = vpop.f32.mrb[0].mxu0
        %v1306 = vpop.f32.mrb[0].mxu0
        %v1307 = vadd.f32 %v1203, %v1306
        %v1308 = vpop.f32.mrb[0].mxu0
        %1309 = vmatprep.mubr.bf16.mxu0 0
        %1310 = vmatmul.mubr.bf16.gmra.mrb[0].mxu0 %v1177
        %v1311 = vpop.f32.mrb[0].mxu0
        %v1312 = vadd.f32 %v1203, %v1311
        %v1313 = vpop.f32.mrb[0].mxu0
        %v1314 = vpop.f32.mrb[0].mxu0
        %v1315 = vadd.f32 %v1203, %v1314
        %v1316 = vpop.f32.mrb[0].mxu0
        %1317 = vmatprep.mubr.bf16.mxu0 0
        %1318 = vmatmul.mubr.bf16.gmra.mrb[0].mxu0 %v1178
        %v1319 = vpop.f32.mrb[0].mxu0
        %v1320 = vadd.f32 %v1203, %v1319
        %v1321 = vpop.f32.mrb[0].mxu0
        %v1322 = vpop.f32.mrb[0].mxu0
        %v1323 = vadd.f32 %v1203, %v1322
        %v1324 = vpop.f32.mrb[0].mxu0
        %1325 = vmatprep.mubr.bf16.mxu0 0
        %1326 = vmatmul.mubr.bf16.gmra.mrb[0].mxu0 %v1179
        %v1327 = vpop.f32.mrb[0].mxu0
        %v1328 = vadd.f32 %v1203, %v1327
        %v1329 = vpop.f32.mrb[0].mxu0
        %v1330 = vpop.f32.mrb[0].mxu0
        %v1331 = vadd.f32 %v1203, %v1330
        %v1332 = vpop.f32.mrb[0].mxu0
        %1333 = vmatprep.mubr.bf16.mxu0 0
        %1334 = vmatmul.mubr.bf16.gmra.mrb[0].mxu0 %v1180
        %v1335 = vpop.f32.mrb[0].mxu0
        %v1336 = vadd.f32 %v1203, %v1335
        %v1337 = vpop.f32.mrb[0].mxu0
        %v1338 = vpop.f32.mrb[0].mxu0
        %v1339 = vadd.f32 %v1203, %v1338
        %v1340 = vpop.f32.mrb[0].mxu0
        %1341 = vmatprep.mubr.bf16.mxu0 0
        %1342 = vmatmul.mubr.bf16.gmra.mrb[0].mxu0 %v1181
        %v1343 = vpop.f32.mrb[0].mxu0
        %v1344 = vadd.f32 %v1203, %v1343
        %v1345 = vpop.f32.mrb[0].mxu0
        %v1346 = vpop.f32.mrb[0].mxu0
        %v1347 = vadd.f32 %v1203, %v1346
        %v1348 = vpop.f32.mrb[0].mxu0
        %1349 = vdwg.mxu0
        %v1350 = vmax.f32 %v1288, 0.0
        %v1351 = vmax.f32 %v1291, 0.0
        %v1352 = vmax.f32 %v1296, 0.0
        %v1353 = vmax.f32 %v1299, 0.0
        %v1354 = vmax.f32 %v1304, 0.0
        %v1355 = vmax.f32 %v1307, 0.0
        %v1356 = vmax.f32 %v1312, 0.0
        %v1357 = vmax.f32 %v1315, 0.0
        %v1358 = vmax.f32 %v1320, 0.0
        %v1359 = vmax.f32 %v1323, 0.0
        %v1360 = vmax.f32 %v1328, 0.0
        %v1361 = vmax.f32 %v1331, 0.0
        %v1362 = vmax.f32 %v1336, 0.0
        %v1363 = vmax.f32 %v1339, 0.0
        %v1364 = vmax.f32 %v1344, 0.0
        %v1365 = vmax.f32 %v1347, 0.0
        %v1366 = vpack.c.bf16 %v1351, %v1350
        %v1367 = vpack.c.bf16 %v1353, %v1352
        %v1368 = vpack.c.bf16 %v1355, %v1354
        %v1369 = vpack.c.bf16 %v1357, %v1356
        %v1370 = vpack.c.bf16 %v1359, %v1358
        %v1371 = vpack.c.bf16 %v1361, %v1360
        %v1372 = vpack.c.bf16 %v1363, %v1362
        %v1373 = vpack.c.bf16 %v1365, %v1364
        %v1374 = vld [vmem:[#allocation10] sm:$0xf]
        %v1375 = vld [vmem:[#allocation10 + $0x4] sm:$0xf]
        %v1376 = vld [vmem:[#allocation10 + $0x8] sm:$0xf]
        %v1377 = vld [vmem:[#allocation10 + $0xc] sm:$0xf]
        %v1378 = vld [vmem:[#allocation10 + $0x10] sm:$0xf]
        %v1379 = vld [vmem:[#allocation10 + $0x14] sm:$0xf]
        %v1380 = vld [vmem:[#allocation10 + $0x18] sm:$0xf]
        %v1381 = vld [vmem:[#allocation10 + $0x1c] sm:$0xf]
        %v1382 = vld [vmem:[#allocation10 + $0x20] sm:$0xf]
        %v1383 = vld [vmem:[#allocation10 + $0x24] sm:$0xf]
        %v1384 = vld [vmem:[#allocation10 + $0x28] sm:$0xf]
        %v1385 = vld [vmem:[#allocation10 + $0x2c] sm:$0xf]
        %v1386 = vld [vmem:[#allocation10 + $0x30] sm:$0xf]
        %v1387 = vld [vmem:[#allocation10 + $0x34] sm:$0xf]
        %v1388 = vld [vmem:[#allocation10 + $0x38] sm:$0xf]
        %v1389 = vld [vmem:[#allocation10 + $0x3c] sm:$0xf]
        %v1390 = vld [vmem:[%s8] sm:$0x1]
        %v1392 = vlaneseq
        %v1393 = vshrl.u32 %v1392, 7
        %v1394 = vsub.s32 0, %v1393
        %v1395 = vrot.slane %v1390, %v1394
        %v1413 = vunpack.c.l.b16 %v1374
        %v1414 = vunpack.c.l.b16 %v1375
        %v1415 = vunpack.c.l.b16 %v1376
        %v1416 = vunpack.c.l.b16 %v1377
        %v1417 = vunpack.c.l.b16 %v1378
        %v1418 = vunpack.c.l.b16 %v1379
        %v1419 = vunpack.c.l.b16 %v1380
        %v1420 = vunpack.c.l.b16 %v1381
        %v1421 = vunpack.c.l.b16 %v1382
        %v1422 = vunpack.c.l.b16 %v1383
        %v1423 = vunpack.c.l.b16 %v1384
        %v1424 = vunpack.c.l.b16 %v1385
        %v1425 = vunpack.c.l.b16 %v1386
        %v1426 = vunpack.c.l.b16 %v1387
        %v1427 = vunpack.c.l.b16 %v1388
        %v1428 = vunpack.c.l.b16 %v1389
        %v1429 = vpack.c.b16 %v1414, %v1413
        %v1430 = vpack.c.b16 %v1416, %v1415
        %v1431 = vpack.c.b16 %v1418, %v1417
        %v1432 = vpack.c.b16 %v1420, %v1419
        %v1433 = vpack.c.b16 %v1422, %v1421
        %v1434 = vpack.c.b16 %v1424, %v1423
        %v1435 = vpack.c.b16 %v1426, %v1425
        %v1436 = vpack.c.b16 %v1428, %v1427
        %1445 = vmatprep.subr.bf16.mxu0 0
        %1446 = vmatpush1.bf16.msra.mxu0 %v1429
        %1447 = vmatprep.subr.bf16.mxu0 0
        %1448 = vmatpush1.bf16.msra.mxu0 %v1430
        %1449 = vmatprep.subr.bf16.mxu0 0
        %1450 = vmatpush1.bf16.msra.mxu0 %v1431
        %1451 = vmatprep.subr.bf16.mxu0 0
        %1452 = vmatpush1.bf16.msra.mxu0 %v1432
        %1453 = vmatprep.subr.bf16.mxu0 0
        %1454 = vmatpush1.bf16.msra.mxu0 %v1433
        %1455 = vmatprep.subr.bf16.mxu0 0
        %1456 = vmatpush1.bf16.msra.mxu0 %v1434
        %1457 = vmatprep.subr.bf16.mxu0 0
        %1458 = vmatpush1.bf16.msra.mxu0 %v1435
        %1459 = vmatprep.subr.bf16.mxu0 0
        %1460 = vmatpush1.bf16.msra.mxu0 %v1436
        %1461 = vmatprep.subr.bf16.mxu0 0
        %1462 = vmatpush1.bf16.msra.mxu0 0
        %1463 = vmatprep.subr.bf16.mxu0 0
        %1464 = vmatpush1.bf16.msra.mxu0 0
        %1465 = vmatprep.subr.bf16.mxu0 0
        %1466 = vmatpush1.bf16.msra.mxu0 0
        %1467 = vmatprep.subr.bf16.mxu0 0
        %1468 = vmatpush1.bf16.msra.mxu0 0
        %1469 = vmatprep.subr.bf16.mxu0 0
        %1470 = vmatpush1.bf16.msra.mxu0 0
        %1471 = vmatprep.subr.bf16.mxu0 0
        %1472 = vmatpush1.bf16.msra.mxu0 0
        %1473 = vmatprep.subr.bf16.mxu0 0
        %1474 = vmatpush1.bf16.msra.mxu0 0
        %1475 = vmatprep.subr.bf16.mxu0 0
        %1476 = vmatpush1.bf16.msra.mxu0 0
        %1477 = vmatprep.mubr.bf16.mxu0 0
        %1478 = vmatmul.mubr.bf16.gmra.mrb[0].mxu0 %v1366
        %v1479 = vpop.f32.mrb[0].mxu0
        %v1480 = vadd.f32 %v1395, %v1479
        %v1481 = vpop.f32.mrb[0].mxu0
        %v1482 = vpop.f32.mrb[0].mxu0
        %v1483 = vadd.f32 %v1395, %v1482
        %v1484 = vpop.f32.mrb[0].mxu0
        %1485 = vmatprep.mubr.bf16.mxu0 0
        %1486 = vmatmul.mubr.bf16.gmra.mrb[0].mxu0 %v1367
        %v1487 = vpop.f32.mrb[0].mxu0
        %v1488 = vadd.f32 %v1395, %v1487
        %v1489 = vpop.f32.mrb[0].mxu0
        %v1490 = vpop.f32.mrb[0].mxu0
        %v1491 = vadd.f32 %v1395, %v1490
        %v1492 = vpop.f32.mrb[0].mxu0
        %1493 = vmatprep.mubr.bf16.mxu0 0
        %1494 = vmatmul.mubr.bf16.gmra.mrb[0].mxu0 %v1368
        %v1495 = vpop.f32.mrb[0].mxu0
        %v1496 = vadd.f32 %v1395, %v1495
        %v1497 = vpop.f32.mrb[0].mxu0
        %v1498 = vpop.f32.mrb[0].mxu0
        %v1499 = vadd.f32 %v1395, %v1498
        %v1500 = vpop.f32.mrb[0].mxu0
        %1501 = vmatprep.mubr.bf16.mxu0 0
        %1502 = vmatmul.mubr.bf16.gmra.mrb[0].mxu0 %v1369
        %v1503 = vpop.f32.mrb[0].mxu0
        %v1504 = vadd.f32 %v1395, %v1503
        %v1505 = vpop.f32.mrb[0].mxu0
        %v1506 = vpop.f32.mrb[0].mxu0
        %v1507 = vadd.f32 %v1395, %v1506
        %v1508 = vpop.f32.mrb[0].mxu0
        %1509 = vmatprep.mubr.bf16.mxu0 0
        %1510 = vmatmul.mubr.bf16.gmra.mrb[0].mxu0 %v1370
        %v1511 = vpop.f32.mrb[0].mxu0
        %v1512 = vadd.f32 %v1395, %v1511
        %v1513 = vpop.f32.mrb[0].mxu0
        %v1514 = vpop.f32.mrb[0].mxu0
        %v1515 = vadd.f32 %v1395, %v1514
        %v1516 = vpop.f32.mrb[0].mxu0
        %1517 = vmatprep.mubr.bf16.mxu0 0
        %1518 = vmatmul.mubr.bf16.gmra.mrb[0].mxu0 %v1371
        %v1519 = vpop.f32.mrb[0].mxu0
        %v1520 = vadd.f32 %v1395, %v1519
        %v1521 = vpop.f32.mrb[0].mxu0
        %v1522 = vpop.f32.mrb[0].mxu0
        %v1523 = vadd.f32 %v1395, %v1522
        %v1524 = vpop.f32.mrb[0].mxu0
        %1525 = vmatprep.mubr.bf16.mxu0 0
        %1526 = vmatmul.mubr.bf16.gmra.mrb[0].mxu0 %v1372
        %v1527 = vpop.f32.mrb[0].mxu0
        %v1528 = vadd.f32 %v1395, %v1527
        %v1529 = vpop.f32.mrb[0].mxu0
        %v1530 = vpop.f32.mrb[0].mxu0
        %v1531 = vadd.f32 %v1395, %v1530
        %v1532 = vpop.f32.mrb[0].mxu0
        %1533 = vmatprep.mubr.bf16.mxu0 0
        %1534 = vmatmul.mubr.bf16.gmra.mrb[0].mxu0 %v1373
        %v1535 = vpop.f32.mrb[0].mxu0
        %v1536 = vadd.f32 %v1395, %v1535
        %v1537 = vpop.f32.mrb[0].mxu0
        %v1538 = vpop.f32.mrb[0].mxu0
        %v1539 = vadd.f32 %v1395, %v1538
        %v1540 = vpop.f32.mrb[0].mxu0
        %1541 = vdwg.mxu0
        %1542 = vst [vmem:[%s409] sm:$0xff] %v1480
        %1543 = vst [vmem:[%s409 + $0x8] sm:$0xff] %v1483
        %1544 = vst [vmem:[%s409 + $0x10] sm:$0xff] %v1488
        %1545 = vst [vmem:[%s409 + $0x18] sm:$0xff] %v1491
        %1546 = vst [vmem:[%s409 + $0x20] sm:$0xff] %v1496
        %1547 = vst [vmem:[%s409 + $0x28] sm:$0xff] %v1499
        %1548 = vst [vmem:[%s409 + $0x30] sm:$0xff] %v1504
        %1549 = vst [vmem:[%s409 + $0x38] sm:$0xff] %v1507
        %1550 = vst [vmem:[%s409 + $0x40] sm:$0xff] %v1512
        %1551 = vst [vmem:[%s409 + $0x48] sm:$0xff] %v1515
        %1552 = vst [vmem:[%s409 + $0x50] sm:$0xff] %v1520
        %1553 = vst [vmem:[%s409 + $0x58] sm:$0xff] %v1523
        %1554 = vst [vmem:[%s409 + $0x60] sm:$0xff] %v1528
        %1555 = vst [vmem:[%s409 + $0x68] sm:$0xff] %v1531
        %1556 = vst [vmem:[%s409 + $0x70] sm:$0xff] %v1536
        %1557 = vst [vmem:[%s409 + $0x78] sm:$0xff] %v1539
        %s1558 = sand.u32 %s230, 1
        %s1559 = scalar_lea.sflag [#allocation4], %s1558
        %s1560 = sand.u32 %s230, 1
        %s1561 = smul.addr %s1560, 128
        %s1562 = scalar_lea.vmem [#allocation11], %s1561
        // Predicated region
        $region77: #{tpu_custom_call.1} parent=55 // pred_check
          %p1563 = pneg %p240
        $region78: #{tpu_custom_call.1} parent=55 // pred_check_branch
          %1565 = sbr.rel (%p1563) target = $region80
        $region79: #{tpu_custom_call.1} parent=55 // pred_region
          %s1566 = smul.u32 16, %s28
          %s1568 = ssub.s32 2048, 2048
          %1569 = vsyncadd %s1559, %s1568
          %s1570 = smul.addr %s1566, 128
          %s1571 = scalar_lea.hbm %s9, %s1570
          %s1572 = sshll.u32 %s1562, 4
          %s1573 = int_to_ptr.vmem [resolvable:$true] %s1572
          %1578 = dma.vmem_to_hbm [thread:$0]  %s1573, 2048, %s1571, %s1559, 128, 128, 8
        $region80: #{tpu_custom_call.1} parent=55 // pred_fallthru
          _
      $region56: #{tpu_custom_call.1} parent=5 // pred_fallthru
        _
      %p1579 = scmp.le.s32.totalorder 2, %s23
      // Predicated region
      $region81: #{tpu_custom_call.1} parent=5 // pred_check
        %p1580 = pneg %p1579
      $region82: #{tpu_custom_call.1} parent=5 // pred_check_branch
        %1582 = sbr.rel (%p1580) target = $region84
      $region83: #{tpu_custom_call.1} parent=5 // pred_region
        %s1583 = ssub.s32 %s23, 2
        // Predicated region
        $region85: #{tpu_custom_call.1} parent=83 // pred_check
          %p1584 = pneg %p246
        $region86: #{tpu_custom_call.1} parent=83 // pred_check_branch
          %1586 = sbr.rel (%p1584) target = $region88
        $region87: #{tpu_custom_call.1} parent=83 // pred_region
          %s1587 = sand.u32 %s231, 1
          %s1588 = scalar_lea.sflag [#allocation4], %s1587
          %s1589 = sand.u32 %s231, 1
          %s1590 = smul.addr %s1589, 128
          %s1591 = scalar_lea.vmem [#allocation11], %s1590
          %1592 = dma.done %s1588, 2048
        $region88: #{tpu_custom_call.1} parent=83 // pred_fallthru
          _
      $region84: #{tpu_custom_call.1} parent=5 // pred_fallthru
        _
    $region6: #{tpu_custom_call.1} parent=1 // loop_footer
      %s27 = sadd.s32 1, %s23
    $region7: #{tpu_custom_call.1} parent=1 // loop_footer_branch
      %22 = sbr.rel target = $region3
    $region8: #{tpu_custom_call.1} parent=1 // loop_exit
      _
    %1593 = vsyncpa [#allocation3], 1
    %s1594 = scalar_lea.sflag [#allocation3], 1
    %1595 = vsyncpa %s1594, 1
    %1596 = vsyncpa [#allocation6], 1
    %1597 = vsyncpa [#allocation9], 1
    %1598 = vsyncpa [#allocation4], 1
    %s1599 = scalar_lea.sflag [#allocation4], 1
    %1600 = vsyncpa %s1599, 1

// kernel: tpu_custom_call.1
$region0: #{tpu_custom_call.1}
  #allocation0 [shape = 'u32[]', space=smem, size = 0x4, offset = 0x4, fixed_abs, tag = 'smem constant byte address 0x4 - core index']
  #allocation1 [shape = 'u32[144,128]{1,0:T(1,128)}', space=vmem, size = 0x12000, scoped, tag = 'internal scratch']
  %s0 = inlined_call_operand.hbm [shape: bf16[384,384], index: 0, kind: input, shape index: {}]
  %s1 = inlined_call_operand.hbm [shape: bf16[384,128], index: 1, kind: input, shape index: {}]
  %s2 = inlined_call_operand.vmem [shape: f32[1,128], index: 2, kind: input, shape index: {}]
  %s3 = inlined_call_operand.hbm [shape: bf16[128,128], index: 3, kind: input, shape index: {}]
  %s4 = inlined_call_operand.vmem [shape: f32[1,128], index: 4, kind: input, shape index: {}]
  %s5 = inlined_call_operand.hbm [shape: bf16[128,128], index: 5, kind: input, shape index: {}]
  %s6 = inlined_call_operand.vmem [shape: f32[1,128], index: 6, kind: input, shape index: {}]
  %s7 = inlined_call_operand.hbm [shape: bf16[128,128], index: 7, kind: input, shape index: {}]
  %s8 = inlined_call_operand.vmem [shape: f32[1,128], index: 8, kind: input, shape index: {}]
  %s9 = inlined_call_operand.hbm [shape: f32[384,128], index: 9, kind: output, shape index: {}]
  %s10 = sld [smem:[#allocation0]]
  $region89: #{tpu_custom_call.1} parent=0
    _
  %s12 = ssub.s32 1, %s10
  %s13 = scalar_select 0, %s12, %s10
  $region1: #{tpu_custom_call.1} parent=0
    #allocation2 [shape = 'u8[196608]{0}', space=vmem, size = 0x30000, scoped, tag = 'input window, operand 0']
    #allocation3 [shape = 's32[2]{0}', space=sflag, size = 0x8, scoped, tag = 'scoped memory for tpu_custom_call.1']
    #allocation4 [shape = 's32[2]{0}', space=sflag, size = 0x8, scoped, tag = 'scoped memory for tpu_custom_call.1']
    #allocation5 [shape = 'u8[98304]{0}', space=vmem, size = 0x18000, scoped, tag = 'input window, operand 1, single buffered']
    #allocation6 [shape = 's32[1]{0}', space=sflag, size = 0x4, scoped, tag = 'scoped memory for tpu_custom_call.1']
    #allocation7 [shape = 'u8[32768]{0}', space=vmem, size = 0x8000, scoped, tag = 'input window, operand 3, single buffered']
    #allocation8 [shape = 'u8[32768]{0}', space=vmem, size = 0x8000, scoped, tag = 'input window, operand 5, single buffered']
    #allocation9 [shape = 's32[1]{0}', space=sflag, size = 0x4, scoped, tag = 'scoped memory for tpu_custom_call.1']
    #allocation10 [shape = 'u8[32768]{0}', space=vmem, size = 0x8000, scoped, tag = 'input window, operand 7, single buffered']
    #allocation11 [shape = 'u8[131072]{0}', space=vmem, size = 0x20000, scoped, tag = 'output window, operand 0']
    %14 = vsyncpa [#allocation3], 0
    %s15 = scalar_lea.sflag [#allocation3], 1
    %16 = vsyncpa %s15, 0
    %17 = vsyncpa [#allocation6], 0
    %18 = vsyncpa [#allocation9], 0
    %19 = vsyncpa [#allocation4], 0
    %s20 = scalar_lea.sflag [#allocation4], 1
    %21 = vsyncpa %s20, 0
    loop: start=0, step=1, limit=5
    $region2: #{tpu_custom_call.1} parent=1 // loop_pre_header
      _
    $region3: #{tpu_custom_call.1} parent=1 // loop_header
      %s23 = sphi 0, %s27
      %p24 = scmp.ge.s32.totalorder %s23, 5
      %s33 = sphi 0, %s35
      %s36 = sphi 0, %s33
      %s37 = sphi 0, %s36
      %s53 = sphi 0, %s37
      %s57 = sphi 0, %s57
      %s59 = sphi 0, %s57
      %s60 = sphi 0, %s59
      %s74 = sphi 0, %s60
      %s78 = sphi 0, %s78
      %s80 = sphi 0, %s78
      %s81 = sphi 0, %s80
      %s95 = sphi 0, %s81
      %s99 = sphi 0, %s99
      %s101 = sphi 0, %s99
      %s102 = sphi 0, %s101
      %s116 = sphi 0, %s102
      %s120 = sphi 0, %s120
      %s122 = sphi 0, %s120
      %s123 = sphi 0, %s122
      %s137 = sphi 0, %s123
      %s141 = sphi 0, %s141
      %s143 = sphi 0, %s141
      %s144 = sphi 0, %s143
      %s158 = sphi 0, %s144
      %s162 = sphi 0, %s162
      %s164 = sphi 0, %s162
      %s165 = sphi 0, %s164
      %s179 = sphi 0, %s165
      %s183 = sphi 0, %s183
      %s185 = sphi 0, %s183
      %s186 = sphi 0, %s185
      %s200 = sphi 0, %s186
      %s204 = sphi 0, %s204
      %s206 = sphi 0, %s204
      %s207 = sphi 0, %s206
      %s221 = sphi 0, %s207
      %s227 = sphi 0, %s229
      %s230 = sphi 0, %s227
      %s231 = sphi 0, %s230
      %s247 = sphi 0, %s231
    $region4: #{tpu_custom_call.1} parent=1 // loop_header_branch
      %26 = sbr.rel (%p24) target = $region8
    $region5: #{tpu_custom_call.1} parent=1 // loop_body
      %s28 = ssub.s32 %s23, 1
      %s29 = ssub.s32 %s23, 2
      %s30 = sadd.s32 %s23, 1
      %s31 = ssub.s32 %s23, %s30
      %p32 = scmp.eq.s32.totalorder %s31, 0
      %s34 = sadd.s32 %s33, 1
      %s35 = scalar_select %p32, %s33, %s34
      %p38 = pneg %p32
      %p39 = scmp.eq.s32.totalorder %s23, 2
      %p40 = por %p38, %p39
      %p41 = scmp.ne.s32.totalorder %s33, %s36
      %p42 = scmp.eq.s32.totalorder %s23, 0
      %p43 = por %p41, %p42
      %p44 = scmp.ne.s32.totalorder %s33, %s36
      %p45 = scmp.eq.s32.totalorder %s28, 2
      %p46 = por %p44, %p45
      %p47 = scmp.ne.s32.totalorder %s36, %s37
      %p48 = scmp.eq.s32.totalorder %s28, 0
      %p49 = por %p47, %p48
      %p50 = scmp.ne.s32.totalorder %s36, %s37
      %p51 = scmp.eq.s32.totalorder %s29, 2
      %p52 = por %p50, %p51
      %p54 = scmp.ne.s32.totalorder %s37, %s53
      %p55 = scmp.eq.s32.totalorder %s29, 0
      %p56 = por %p54, %p55
      %s58 = sadd.s32 %s57, 1
      %p61 = scmp.eq.s32.totalorder %s23, 2
      %p62 = scmp.ne.s32.totalorder %s57, %s59
      %p63 = scmp.eq.s32.totalorder %s23, 0
      %p64 = por %p62, %p63
      %p65 = scmp.ne.s32.totalorder %s57, %s59
      %p66 = scmp.eq.s32.totalorder %s28, 2
      %p67 = por %p65, %p66
      %p68 = scmp.ne.s32.totalorder %s59, %s60
      %p69 = scmp.eq.s32.totalorder %s28, 0
      %p70 = por %p68, %p69
      %p71 = scmp.ne.s32.totalorder %s59, %s60
      %p72 = scmp.eq.s32.totalorder %s29, 2
      %p73 = por %p71, %p72
      %p75 = scmp.ne.s32.totalorder %s60, %s74
      %p76 = scmp.eq.s32.totalorder %s29, 0
      %p77 = por %p75, %p76
      %s79 = sadd.s32 %s78, 1
      %p82 = scmp.eq.s32.totalorder %s23, 2
      %p83 = scmp.ne.s32.totalorder %s78, %s80
      %p84 = scmp.eq.s32.totalorder %s23, 0
      %p85 = por %p83, %p84
      %p86 = scmp.ne.s32.totalorder %s78, %s80
      %p87 = scmp.eq.s32.totalorder %s28, 2
      %p88 = por %p86, %p87
      %p89 = scmp.ne.s32.totalorder %s80, %s81
      %p90 = scmp.eq.s32.totalorder %s28, 0
      %p91 = por %p89, %p90
      %p92 = scmp.ne.s32.totalorder %s80, %s81
      %p93 = scmp.eq.s32.totalorder %s29, 2
      %p94 = por %p92, %p93
      %p96 = scmp.ne.s32.totalorder %s81, %s95
      %p97 = scmp.eq.s32.totalorder %s29, 0
      %p98 = por %p96, %p97
      %s100 = sadd.s32 %s99, 1
      %p103 = scmp.eq.s32.totalorder %s23, 2
      %p104 = scmp.ne.s32.totalorder %s99, %s101
      %p105 = scmp.eq.s32.totalorder %s23, 0
      %p106 = por %p104, %p105
      %p107 = scmp.ne.s32.totalorder %s99, %s101
      %p108 = scmp.eq.s32.totalorder %s28, 2
      %p109 = por %p107, %p108
      %p110 = scmp.ne.s32.totalorder %s101, %s102
      %p111 = scmp.eq.s32.totalorder %s28, 0
      %p112 = por %p110, %p111
      %p113 = scmp.ne.s32.totalorder %s101, %s102
      %p114 = scmp.eq.s32.totalorder %s29, 2
      %p115 = por %p113, %p114
      %p117 = scmp.ne.s32.totalorder %s102, %s116
      %p118 = scmp.eq.s32.totalorder %s29, 0
      %p119 = por %p117, %p118
      %s121 = sadd.s32 %s120, 1
      %p124 = scmp.eq.s32.totalorder %s23, 2
      %p125 = scmp.ne.s32.totalorder %s120, %s122
      %p126 = scmp.eq.s32.totalorder %s23, 0
      %p127 = por %p125, %p126
      %p128 = scmp.ne.s32.totalorder %s120, %s122
      %p129 = scmp.eq.s32.totalorder %s28, 2
      %p130 = por %p128, %p129
      %p131 = scmp.ne.s32.totalorder %s122, %s123
      %p132 = scmp.eq.s32.totalorder %s28, 0
      %p133 = por %p131, %p132
      %p134 = scmp.ne.s32.totalorder %s122, %s123
      %p135 = scmp.eq.s32.totalorder %s29, 2
      %p136 = por %p134, %p135
      %p138 = scmp.ne.s32.totalorder %s123, %s137
      %p139 = scmp.eq.s32.totalorder %s29, 0
      %p140 = por %p138, %p139
      %s142 = sadd.s32 %s141, 1
      %p145 = scmp.eq.s32.totalorder %s23, 2
      %p146 = scmp.ne.s32.totalorder %s141, %s143
      %p147 = scmp.eq.s32.totalorder %s23, 0
      %p148 = por %p146, %p147
      %p149 = scmp.ne.s32.totalorder %s141, %s143
      %p150 = scmp.eq.s32.totalorder %s28, 2
      %p151 = por %p149, %p150
      %p152 = scmp.ne.s32.totalorder %s143, %s144
      %p153 = scmp.eq.s32.totalorder %s28, 0
      %p154 = por %p152, %p153
      %p155 = scmp.ne.s32.totalorder %s143, %s144
      %p156 = scmp.eq.s32.totalorder %s29, 2
      %p157 = por %p155, %p156
      %p159 = scmp.ne.s32.totalorder %s144, %s158
      %p160 = scmp.eq.s32.totalorder %s29, 0
      %p161 = por %p159, %p160
      %s163 = sadd.s32 %s162, 1
      %p166 = scmp.eq.s32.totalorder %s23, 2
      %p167 = scmp.ne.s32.totalorder %s162, %s164
      %p168 = scmp.eq.s32.totalorder %s23, 0
      %p169 = por %p167, %p168
      %p170 = scmp.ne.s32.totalorder %s162, %s164
      %p171 = scmp.eq.s32.totalorder %s28, 2
      %p172 = por %p170, %p171
      %p173 = scmp.ne.s32.totalorder %s164, %s165
      %p174 = scmp.eq.s32.totalorder %s28, 0
      %p175 = por %p173, %p174
      %p176 = scmp.ne.s32.totalorder %s164, %s165
      %p177 = scmp.eq.s32.totalorder %s29, 2
      %p178 = por %p176, %p177
      %p180 = scmp.ne.s32.totalorder %s165, %s179
      %p181 = scmp.eq.s32.totalorder %s29, 0
      %p182 = por %p180, %p181
      %s184 = sadd.s32 %s183, 1
      %p187 = scmp.eq.s32.totalorder %s23, 2
      %p188 = scmp.ne.s32.totalorder %s183, %s185
      %p189 = scmp.eq.s32.totalorder %s23, 0
      %p190 = por %p188, %p189
      %p191 = scmp.ne.s32.totalorder %s183, %s185
      %p192 = scmp.eq.s32.totalorder %s28, 2
      %p193 = por %p191, %p192
      %p194 = scmp.ne.s32.totalorder %s185, %s186
      %p195 = scmp.eq.s32.totalorder %s28, 0
      %p196 = por %p194, %p195
      %p197 = scmp.ne.s32.totalorder %s185, %s186
      %p198 = scmp.eq.s32.totalorder %s29, 2
      %p199 = por %p197, %p198
      %p201 = scmp.ne.s32.totalorder %s186, %s200
      %p202 = scmp.eq.s32.totalorder %s29, 0
      %p203 = por %p201, %p202
      %s205 = sadd.s32 %s204, 1
      %p208 = scmp.eq.s32.totalorder %s23, 2
      %p209 = scmp.ne.s32.totalorder %s204, %s206
      %p210 = scmp.eq.s32.totalorder %s23, 0
      %p211 = por %p209, %p210
      %p212 = scmp.ne.s32.totalorder %s204, %s206
      %p213 = scmp.eq.s32.totalorder %s28, 2
      %p214 = por %p212, %p213
      %p215 = scmp.ne.s32.totalorder %s206, %s207
      %p216 = scmp.eq.s32.totalorder %s28, 0
      %p217 = por %p215, %p216
      %p218 = scmp.ne.s32.totalorder %s206, %s207
      %p219 = scmp.eq.s32.totalorder %s29, 2
      %p220 = por %p218, %p219
      %p222 = scmp.ne.s32.totalorder %s207, %s221
      %p223 = scmp.eq.s32.totalorder %s29, 0
      %p224 = por %p222, %p223
      %s225 = ssub.s32 %s23, %s30
      %p226 = scmp.eq.s32.totalorder %s225, 0
      %s228 = sadd.s32 %s227, 1
      %s229 = scalar_select %p226, %s227, %s228
      %p232 = pneg %p226
      %p233 = scmp.eq.s32.totalorder %s23, 2
      %p234 = por %p232, %p233
      %p235 = scmp.ne.s32.totalorder %s227, %s230
      %p236 = scmp.eq.s32.totalorder %s23, 0
      %p237 = por %p235, %p236
      %p238 = scmp.ne.s32.totalorder %s227, %s230
      %p239 = scmp.eq.s32.totalorder %s28, 2
      %p240 = por %p238, %p239
      %p241 = scmp.ne.s32.totalorder %s230, %s231
      %p242 = scmp.eq.s32.totalorder %s28, 0
      %p243 = por %p241, %p242
      %p244 = scmp.ne.s32.totalorder %s230, %s231
      %p245 = scmp.eq.s32.totalorder %s29, 2
      %p246 = por %p244, %p245
      %p248 = scmp.ne.s32.totalorder %s231, %s247
      %p249 = scmp.eq.s32.totalorder %s29, 0
      %p250 = por %p248, %p249
      %p251 = scmp.le.s32.totalorder 1, %s23
      %p252 = scmp.lt.s32.totalorder %s23, 4
      %p253 = pnand %p251, %p252
      %p254 = pneg %p253
      // Predicated region
      $region9: #{tpu_custom_call.1} parent=5 // pred_check
        _
      $region10: #{tpu_custom_call.1} parent=5 // pred_check_branch
        %256 = sbr.rel (%p253) target = $region12
      $region11: #{tpu_custom_call.1} parent=5 // pred_region
        %s257 = ssub.s32 %s23, 1
        // Predicated region
        $region13: #{tpu_custom_call.1} parent=11 // pred_check
          %p258 = pneg %p70
        $region14: #{tpu_custom_call.1} parent=11 // pred_check_branch
          %260 = sbr.rel (%p258) target = $region16
        $region15: #{tpu_custom_call.1} parent=11 // pred_region
          %s262 = ssub.s32 3072, 3072
          %263 = vsyncadd [#allocation6], %s262
          %s264 = sshll.u32 [#allocation5], 4
          %s265 = int_to_ptr.vmem [resolvable:$true] %s264
          %270 = dma.hbm_to_vmem [thread:$0]  %s1, 3072, %s265, [#allocation6], 64, 64, 4
        $region16: #{tpu_custom_call.1} parent=11 // pred_fallthru
          _
        // Predicated region
        $region17: #{tpu_custom_call.1} parent=11 // pred_check
          %p271 = pneg %p91
        $region18: #{tpu_custom_call.1} parent=11 // pred_check_branch
          %273 = sbr.rel (%p271) target = $region20
        $region19: #{tpu_custom_call.1} parent=11 // pred_region
          _
        $region20: #{tpu_custom_call.1} parent=11 // pred_fallthru
          _
        // Predicated region
        $region21: #{tpu_custom_call.1} parent=11 // pred_check
          %p274 = pneg %p112
        $region22: #{tpu_custom_call.1} parent=11 // pred_check_branch
          %276 = sbr.rel (%p274) target = $region24
        $region23: #{tpu_custom_call.1} parent=11 // pred_region
          %s278 = ssub.s32 1024, 1024
          %279 = vsyncadd [#allocation6], %s278
          %s280 = sshll.u32 [#allocation7], 4
          %s281 = int_to_ptr.vmem [resolvable:$true] %s280
          %286 = dma.hbm_to_vmem [thread:$0]  %s3, 1024, %s281, [#allocation6], 64, 64, 4
        $region24: #{tpu_custom_call.1} parent=11 // pred_fallthru
          _
        // Predicated region
        $region25: #{tpu_custom_call.1} parent=11 // pred_check
          %p287 = pneg %p133
        $region26: #{tpu_custom_call.1} parent=11 // pred_check_branch
          %289 = sbr.rel (%p287) target = $region28
        $region27: #{tpu_custom_call.1} parent=11 // pred_region
          _
        $region28: #{tpu_custom_call.1} parent=11 // pred_fallthru
          _
        // Predicated region
        $region29: #{tpu_custom_call.1} parent=11 // pred_check
          %p290 = pneg %p154
        $region30: #{tpu_custom_call.1} parent=11 // pred_check_branch
          %292 = sbr.rel (%p290) target = $region32
        $region31: #{tpu_custom_call.1} parent=11 // pred_region
          %s294 = ssub.s32 1024, 1024
          %295 = vsyncadd [#allocation9], %s294
          %s296 = sshll.u32 [#allocation8], 4
          %s297 = int_to_ptr.vmem [resolvable:$true] %s296
          %302 = dma.hbm_to_vmem [thread:$0]  %s5, 1024, %s297, [#allocation9], 64, 64, 4
        $region32: #{tpu_custom_call.1} parent=11 // pred_fallthru
          _
        // Predicated region
        $region33: #{tpu_custom_call.1} parent=11 // pred_check
          %p303 = pneg %p175
        $region34: #{tpu_custom_call.1} parent=11 // pred_check_branch
          %305 = sbr.rel (%p303) target = $region36
        $region35: #{tpu_custom_call.1} parent=11 // pred_region
          _
        $region36: #{tpu_custom_call.1} parent=11 // pred_fallthru
          _
        // Predicated region
        $region37: #{tpu_custom_call.1} parent=11 // pred_check
          %p306 = pneg %p196
        $region38: #{tpu_custom_call.1} parent=11 // pred_check_branch
          %308 = sbr.rel (%p306) target = $region40
        $region39: #{tpu_custom_call.1} parent=11 // pred_region
          %s310 = ssub.s32 1024, 1024
          %311 = vsyncadd [#allocation9], %s310
          %s312 = sshll.u32 [#allocation10], 4
          %s313 = int_to_ptr.vmem [resolvable:$true] %s312
          %318 = dma.hbm_to_vmem [thread:$0]  %s7, 1024, %s313, [#allocation9], 64, 64, 4
        $region40: #{tpu_custom_call.1} parent=11 // pred_fallthru
          _
        // Predicated region
        $region41: #{tpu_custom_call.1} parent=11 // pred_check
          %p319 = pneg %p217
        $region42: #{tpu_custom_call.1} parent=11 // pred_check_branch
          %321 = sbr.rel (%p319) target = $region44
        $region43: #{tpu_custom_call.1} parent=11 // pred_region
          _
        $region44: #{tpu_custom_call.1} parent=11 // pred_fallthru
          _
      $region12: #{tpu_custom_call.1} parent=5 // pred_fallthru
        _
      %p322 = scmp.lt.s32.totalorder %s23, 3
      // Predicated region
      $region45: #{tpu_custom_call.1} parent=5 // pred_check
        %p323 = pneg %p322
      $region46: #{tpu_custom_call.1} parent=5 // pred_check_branch
        %325 = sbr.rel (%p323) target = $region48
      $region47: #{tpu_custom_call.1} parent=5 // pred_region
        // Predicated region
        $region49: #{tpu_custom_call.1} parent=47 // pred_check
          %p326 = pneg %p43
        $region50: #{tpu_custom_call.1} parent=47 // pred_check_branch
          %328 = sbr.rel (%p326) target = $region52
        $region51: #{tpu_custom_call.1} parent=47 // pred_region
          %s329 = sand.u32 %s33, 1
          %s330 = scalar_lea.sflag [#allocation3], %s329
          %s331 = sand.u32 %s33, 1
          %s332 = smul.addr %s331, 192
          %s333 = scalar_lea.vmem [#allocation2], %s332
          %s334 = smul.u32 16, %s23
          %s336 = ssub.s32 3072, 3072
          %337 = vsyncadd %s330, %s336
          %s338 = smul.addr %s334, 3
          %s339 = smul.addr %s338, 64
          %s340 = scalar_lea.hbm %s0, %s339
          %s341 = sshll.u32 %s333, 4
          %s342 = int_to_ptr.vmem [resolvable:$true] %s341
          %347 = dma.hbm_to_vmem [thread:$0]  %s340, 3072, %s342, %s330, 192, 192, 12
        $region52: #{tpu_custom_call.1} parent=47 // pred_fallthru
          _
      $region48: #{tpu_custom_call.1} parent=5 // pred_fallthru
        _
      %p348 = scmp.le.s32.totalorder 1, %s23
      %p349 = scmp.lt.s32.totalorder %s23, 4
      %p350 = pnand %p348, %p349
      %p351 = pneg %p350
      // Predicated region
      $region53: #{tpu_custom_call.1} parent=5 // pred_check
        _
      $region54: #{tpu_custom_call.1} parent=5 // pred_check_branch
        %353 = sbr.rel (%p350) target = $region56
      $region55: #{tpu_custom_call.1} parent=5 // pred_region
        %s354 = ssub.s32 %s23, 1
        %s355 = sand.u32 %s36, 1
        %s356 = scalar_lea.sflag [#allocation3], %s355
        %s357 = sand.u32 %s36, 1
        %s358 = smul.addr %s357, 192
        %s359 = scalar_lea.vmem [#allocation2], %s358
        // Predicated region
        $region57: #{tpu_custom_call.1} parent=55 // pred_check
          %p360 = pneg %p49
        $region58: #{tpu_custom_call.1} parent=55 // pred_check_branch
          %362 = sbr.rel (%p360) target = $region60
        $region59: #{tpu_custom_call.1} parent=55 // pred_region
          %363 = dma.done %s356, 3072
        $region60: #{tpu_custom_call.1} parent=55 // pred_fallthru
          _
        // Predicated region
        $region61: #{tpu_custom_call.1} parent=55 // pred_check
          %p364 = pneg %p70
        $region62: #{tpu_custom_call.1} parent=55 // pred_check_branch
          %366 = sbr.rel (%p364) target = $region64
        $region63: #{tpu_custom_call.1} parent=55 // pred_region
          %367 = dma.done [#allocation6], 3072
        $region64: #{tpu_custom_call.1} parent=55 // pred_fallthru
          _
        // Predicated region
        $region65: #{tpu_custom_call.1} parent=55 // pred_check
          %p368 = pneg %p112
        $region66: #{tpu_custom_call.1} parent=55 // pred_check_branch
          %370 = sbr.rel (%p368) target = $region68
        $region67: #{tpu_custom_call.1} parent=55 // pred_region
          %371 = dma.done [#allocation6], 1024
        $region68: #{tpu_custom_call.1} parent=55 // pred_fallthru
          _
        // Predicated region
        $region69: #{tpu_custom_call.1} parent=55 // pred_check
          %p372 = pneg %p154
        $region70: #{tpu_custom_call.1} parent=55 // pred_check_branch
          %374 = sbr.rel (%p372) target = $region72
        $region71: #{tpu_custom_call.1} parent=55 // pred_region
          %375 = dma.done [#allocation9], 1024
        $region72: #{tpu_custom_call.1} parent=55 // pred_fallthru
          _
        // Predicated region
        $region73: #{tpu_custom_call.1} parent=55 // pred_check
          %p376 = pneg %p196
        $region74: #{tpu_custom_call.1} parent=55 // pred_check_branch
          %378 = sbr.rel (%p376) target = $region76
        $region75: #{tpu_custom_call.1} parent=55 // pred_region
          %379 = dma.done [#allocation9], 1024
        $region76: #{tpu_custom_call.1} parent=55 // pred_fallthru
          _
        %s380 = sand.u32 %s36, 1
        %s381 = scalar_lea.sflag [#allocation3], %s380
        %s382 = sand.u32 %s36, 1
        %s383 = smul.addr %s382, 192
        %s384 = scalar_lea.vmem [#allocation2], %s383
        %p385 = pneg %p49
        %p386 = pneg %p46
        %p387 = pneg %p70
        %p388 = pneg %p67
        %p389 = pneg %p91
        %p390 = pneg %p88
        %p391 = pneg %p112
        %p392 = pneg %p109
        %p393 = pneg %p133
        %p394 = pneg %p130
        %p395 = pneg %p154
        %p396 = pneg %p151
        %p397 = pneg %p175
        %p398 = pneg %p172
        %p399 = pneg %p196
        %p400 = pneg %p193
        %p401 = pneg %p217
        %p402 = pneg %p214
        %p403 = pneg %p243
        %p404 = pneg %p240
        %s405 = sand.u32 %s230, 1
        %s406 = scalar_lea.sflag [#allocation4], %s405
        %s407 = sand.u32 %s230, 1
        %s408 = smul.addr %s407, 128
        %s409 = scalar_lea.vmem [#allocation11], %s408
        %s410 = smul.u32 16, %s28
        %s411 = smul.u32 16, %s28
        %v413 = vld [vmem:[%s359] sm:$0xff]
        %v414 = vld [vmem:[%s359 + $0x8] sm:$0xf]
        %v415 = vld [vmem:[%s359 + $0xc] sm:$0xff]
        %v416 = vld [vmem:[%s359 + $0x14] sm:$0xf]
        %v417 = vld [vmem:[%s359 + $0x18] sm:$0xff]
        %v418 = vld [vmem:[%s359 + $0x20] sm:$0xf]
        %v419 = vld [vmem:[%s359 + $0x24] sm:$0xff]
        %v420 = vld [vmem:[%s359 + $0x2c] sm:$0xf]
        %v421 = vld [vmem:[%s359 + $0x30] sm:$0xff]
        %v422 = vld [vmem:[%s359 + $0x38] sm:$0xf]
        %v423 = vld [vmem:[%s359 + $0x3c] sm:$0xff]
        %v424 = vld [vmem:[%s359 + $0x44] sm:$0xf]
        %v425 = vld [vmem:[%s359 + $0x48] sm:$0xff]
        %v426 = vld [vmem:[%s359 + $0x50] sm:$0xf]
        %v427 = vld [vmem:[%s359 + $0x54] sm:$0xff]
        %v428 = vld [vmem:[%s359 + $0x5c] sm:$0xf]
        %v429 = vld [vmem:[%s359 + $0x60] sm:$0xff]
        %v430 = vld [vmem:[%s359 + $0x68] sm:$0xf]
        %v431 = vld [vmem:[%s359 + $0x6c] sm:$0xff]
        %v432 = vld [vmem:[%s359 + $0x74] sm:$0xf]
        %v433 = vld [vmem:[%s359 + $0x78] sm:$0xff]
        %v434 = vld [vmem:[%s359 + $0x80] sm:$0xf]
        %v435 = vld [vmem:[%s359 + $0x84] sm:$0xff]
        %v436 = vld [vmem:[%s359 + $0x8c] sm:$0xf]
        %v437 = vld [vmem:[%s359 + $0x90] sm:$0xff]
        %v438 = vld [vmem:[%s359 + $0x98] sm:$0xf]
        %v439 = vld [vmem:[%s359 + $0x9c] sm:$0xff]
        %v440 = vld [vmem:[%s359 + $0xa4] sm:$0xf]
        %v441 = vld [vmem:[%s359 + $0xa8] sm:$0xff]
        %v442 = vld [vmem:[%s359 + $0xb0] sm:$0xf]
        %v443 = vld [vmem:[%s359 + $0xb4] sm:$0xff]
        %v444 = vld [vmem:[%s359 + $0xbc] sm:$0xf]
        %v445 = vld [vmem:[#allocation5] sm:$0xf]
        %v446 = vld [vmem:[#allocation5 + $0x4] sm:$0xf]
        %v447 = vld [vmem:[#allocation5 + $0x8] sm:$0xf]
        %v448 = vld [vmem:[#allocation5 + $0xc] sm:$0xf]
        %v449 = vld [vmem:[#allocation5 + $0x10] sm:$0xf]
        %v450 = vld [vmem:[#allocation5 + $0x14] sm:$0xf]
        %v451 = vld [vmem:[#allocation5 + $0x18] sm:$0xf]
        %v452 = vld [vmem:[#allocation5 + $0x1c] sm:$0xf]
        %v453 = vld [vmem:[#allocation5 + $0x20] sm:$0xf]
        %v454 = vld [vmem:[#allocation5 + $0x24] sm:$0xf]
        %v455 = vld [vmem:[#allocation5 + $0x28] sm:$0xf]
        %v456 = vld [vmem:[#allocation5 + $0x2c] sm:$0xf]
        %v457 = vld [vmem:[#allocation5 + $0x30] sm:$0xf]
        %v458 = vld [vmem:[#allocation5 + $0x34] sm:$0xf]
        %v459 = vld [vmem:[#allocation5 + $0x38] sm:$0xf]
        %v460 = vld [vmem:[#allocation5 + $0x3c] sm:$0xf]
        %v461 = vld [vmem:[#allocation5 + $0x40] sm:$0xf]
        %v462 = vld [vmem:[#allocation5 + $0x44] sm:$0xf]
        %v463 = vld [vmem:[#allocation5 + $0x48] sm:$0xf]
        %v464 = vld [vmem:[#allocation5 + $0x4c] sm:$0xf]
        %v465 = vld [vmem:[#allocation5 + $0x50] sm:$0xf]
        %v466 = vld [vmem:[#allocation5 + $0x54] sm:$0xf]
        %v467 = vld [vmem:[#allocation5 + $0x58] sm:$0xf]
        %v468 = vld [vmem:[#allocation5 + $0x5c] sm:$0xf]
        %v469 = vld [vmem:[#allocation5 + $0x60] sm:$0xf]
        %v470 = vld [vmem:[#allocation5 + $0x64] sm:$0xf]
        %v471 = vld [vmem:[#allocation5 + $0x68] sm:$0xf]
        %v472 = vld [vmem:[#allocation5 + $0x6c] sm:$0xf]
        %v473 = vld [vmem:[#allocation5 + $0x70] sm:$0xf]
        %v474 = vld [vmem:[#allocation5 + $0x74] sm:$0xf]
        %v475 = vld [vmem:[#allocation5 + $0x78] sm:$0xf]
        %v476 = vld [vmem:[#allocation5 + $0x7c] sm:$0xf]
        %v477 = vld [vmem:[#allocation5 + $0x80] sm:$0xf]
        %v478 = vld [vmem:[#allocation5 + $0x84] sm:$0xf]
        %v479 = vld [vmem:[#allocation5 + $0x88] sm:$0xf]
        %v480 = vld [vmem:[#allocation5 + $0x8c] sm:$0xf]
        %v481 = vld [vmem:[#allocation5 + $0x90] sm:$0xf]
        %v482 = vld [vmem:[#allocation5 + $0x94] sm:$0xf]
        %v483 = vld [vmem:[#allocation5 + $0x98] sm:$0xf]
        %v484 = vld [vmem:[#allocation5 + $0x9c] sm:$0xf]
        %v485 = vld [vmem:[#allocation5 + $0xa0] sm:$0xf]
        %v486 = vld [vmem:[#allocation5 + $0xa4] sm:$0xf]
        %v487 = vld [vmem:[#allocation5 + $0xa8] sm:$0xf]
        %v488 = vld [vmem:[#allocation5 + $0xac] sm:$0xf]
        %v489 = vld [vmem:[#allocation5 + $0xb0] sm:$0xf]
        %v490 = vld [vmem:[#allocation5 + $0xb4] sm:$0xf]
        %v491 = vld [vmem:[#allocation5 + $0xb8] sm:$0xf]
        %v492 = vld [vmem:[#allocation5 + $0xbc] sm:$0xf]
        %v493 = vld [vmem:[%s2] sm:$0x1]
        %v495 = vlaneseq
        %v496 = vshrl.u32 %v495, 7
        %v497 = vsub.s32 0, %v496
        %v498 = vrot.slane %v493, %v497
        %v532 = vunpack.c.l.b16 %v413
        %v533 = vunpack.c.h.b16 %v413
        %v534 = vunpack.c.l.b16 %v414
        %v535 = vunpack.c.l.b16 %v415
        %v536 = vunpack.c.h.b16 %v415
        %v537 = vunpack.c.l.b16 %v416
        %v538 = vunpack.c.l.b16 %v417
        %v539 = vunpack.c.h.b16 %v417
        %v540 = vunpack.c.l.b16 %v418
        %v541 = vunpack.c.l.b16 %v419
        %v542 = vunpack.c.h.b16 %v419
        %v543 = vunpack.c.l.b16 %v420
        %v544 = vunpack.c.l.b16 %v421
        %v545 = vunpack.c.h.b16 %v421
        %v546 = vunpack.c.l.b16 %v422
        %v547 = vunpack.c.l.b16 %v423
        %v548 = vunpack.c.h.b16 %v423
        %v549 = vunpack.c.l.b16 %v424
        %v550 = vunpack.c.l.b16 %v425
        %v551 = vunpack.c.h.b16 %v425
        %v552 = vunpack.c.l.b16 %v426
        %v553 = vunpack.c.l.b16 %v427
        %v554 = vunpack.c.h.b16 %v427
        %v555 = vunpack.c.l.b16 %v428
        %v556 = vunpack.c.l.b16 %v429
        %v557 = vunpack.c.h.b16 %v429
        %v558 = vunpack.c.l.b16 %v430
        %v559 = vunpack.c.l.b16 %v431
        %v560 = vunpack.c.h.b16 %v431
        %v561 = vunpack.c.l.b16 %v432
        %v562 = vunpack.c.l.b16 %v433
        %v563 = vunpack.c.h.b16 %v433
        %v564 = vunpack.c.l.b16 %v434
        %v565 = vunpack.c.l.b16 %v435
        %v566 = vunpack.c.h.b16 %v435
        %v567 = vunpack.c.l.b16 %v436
        %v568 = vunpack.c.l.b16 %v437
        %v569 = vunpack.c.h.b16 %v437
        %v570 = vunpack.c.l.b16 %v438
        %v571 = vunpack.c.l.b16 %v439
        %v572 = vunpack.c.h.b16 %v439
        %v573 = vunpack.c.l.b16 %v440
        %v574 = vunpack.c.l.b16 %v441
        %v575 = vunpack.c.h.b16 %v441
        %v576 = vunpack.c.l.b16 %v442
        %v577 = vunpack.c.l.b16 %v443
        %v578 = vunpack.c.h.b16 %v443
        %v579 = vunpack.c.l.b16 %v444
        %v580 = vpack.c.b16 %v535, %v532
        %v581 = vpack.c.b16 %v536, %v533
        %v582 = vpack.c.b16 %v537, %v534
        %v583 = vpack.c.b16 %v541, %v538
        %v584 = vpack.c.b16 %v542, %v539
        %v585 = vpack.c.b16 %v543, %v540
        %v586 = vpack.c.b16 %v547, %v544
        %v587 = vpack.c.b16 %v548, %v545
        %v588 = vpack.c.b16 %v549, %v546
        %v589 = vpack.c.b16 %v553, %v550
        %v590 = vpack.c.b16 %v554, %v551
        %v591 = vpack.c.b16 %v555, %v552
        %v592 = vpack.c.b16 %v559, %v556
        %v593 = vpack.c.b16 %v560, %v557
        %v594 = vpack.c.b16 %v561, %v558
        %v595 = vpack.c.b16 %v565, %v562
        %v596 = vpack.c.b16 %v566, %v563
        %v597 = vpack.c.b16 %v567, %v564
        %v598 = vpack.c.b16 %v571, %v568
        %v599 = vpack.c.b16 %v572, %v569
        %v600 = vpack.c.b16 %v573, %v570
        %v601 = vpack.c.b16 %v577, %v574
        %v602 = vpack.c.b16 %v578, %v575
        %v603 = vpack.c.b16 %v579, %v576
        %v676 = vunpack.c.l.b16 %v445
        %v677 = vunpack.c.l.b16 %v446
        %v678 = vunpack.c.l.b16 %v447
        %v679 = vunpack.c.l.b16 %v448
        %v680 = vunpack.c.l.b16 %v449
        %v681 = vunpack.c.l.b16 %v450
        %v682 = vunpack.c.l.b16 %v451
        %v683 = vunpack.c.l.b16 %v452
        %v684 = vunpack.c.l.b16 %v453
        %v685 = vunpack.c.l.b16 %v454
        %v686 = vunpack.c.l.b16 %v455
        %v687 = vunpack.c.l.b16 %v456
        %v688 = vunpack.c.l.b16 %v457
        %v689 = vunpack.c.l.b16 %v458
        %v690 = vunpack.c.l.b16 %v459
        %v691 = vunpack.c.l.b16 %v460
        %v692 = vunpack.c.l.b16 %v461
        %v693 = vunpack.c.l.b16 %v462
        %v694 = vunpack.c.l.b16 %v463
        %v695 = vunpack.c.l.b16 %v464
        %v696 = vunpack.c.l.b16 %v465
        %v697 = vunpack.c.l.b16 %v466
        %v698 = vunpack.c.l.b16 %v467
        %v699 = vunpack.c.l.b16 %v468
        %v700 = vunpack.c.l.b16 %v469
        %v701 = vunpack.c.l.b16 %v470
        %v702 = vunpack.c.l.b16 %v471
        %v703 = vunpack.c.l.b16 %v472
        %v704 = vunpack.c.l.b16 %v473
        %v705 = vunpack.c.l.b16 %v474
        %v706 = vunpack.c.l.b16 %v475
        %v707 = vunpack.c.l.b16 %v476
        %v708 = vunpack.c.l.b16 %v477
        %v709 = vunpack.c.l.b16 %v478
        %v710 = vunpack.c.l.b16 %v479
        %v711 = vunpack.c.l.b16 %v480
        %v712 = vunpack.c.l.b16 %v481
        %v713 = vunpack.c.l.b16 %v482
        %v714 = vunpack.c.l.b16 %v483
        %v715 = vunpack.c.l.b16 %v484
        %v716 = vunpack.c.l.b16 %v485
        %v717 = vunpack.c.l.b16 %v486
        %v718 = vunpack.c.l.b16 %v487
        %v719 = vunpack.c.l.b16 %v488
        %v720 = vunpack.c.l.b16 %v489
        %v721 = vunpack.c.l.b16 %v490
        %v722 = vunpack.c.l.b16 %v491
        %v723 = vunpack.c.l.b16 %v492
        %v724 = vpack.c.b16 %v677, %v676
        %v725 = vpack.c.b16 %v679, %v678
        %v726 = vpack.c.b16 %v681, %v680
        %v727 = vpack.c.b16 %v683, %v682
        %v728 = vpack.c.b16 %v685, %v684
        %v729 = vpack.c.b16 %v687, %v686
        %v730 = vpack.c.b16 %v689, %v688
        %v731 = vpack.c.b16 %v691, %v690
        %v732 = vpack.c.b16 %v693, %v692
        %v733 = vpack.c.b16 %v695, %v694
        %v734 = vpack.c.b16 %v697, %v696
        %v735 = vpack.c.b16 %v699, %v698
        %v736 = vpack.c.b16 %v701, %v700
        %v737 = vpack.c.b16 %v703, %v702
        %v738 = vpack.c.b16 %v705, %v704
        %v739 = vpack.c.b16 %v707, %v706
        %v740 = vpack.c.b16 %v709, %v708
        %v741 = vpack.c.b16 %v711, %v710
        %v742 = vpack.c.b16 %v713, %v712
        %v743 = vpack.c.b16 %v715, %v714
        %v744 = vpack.c.b16 %v717, %v716
        %v745 = vpack.c.b16 %v719, %v718
        %v746 = vpack.c.b16 %v721, %v720
        %v747 = vpack.c.b16 %v723, %v722
        %772 = vmatprep.subr.bf16.mxu0 0
        %773 = vmatpush1.bf16.msra.mxu0 %v724
        %774 = vmatprep.subr.bf16.mxu0 0
        %775 = vmatpush1.bf16.msra.mxu0 %v725
        %776 = vmatprep.subr.bf16.mxu0 0
        %777 = vmatpush1.bf16.msra.mxu0 %v726
        %778 = vmatprep.subr.bf16.mxu0 0
        %779 = vmatpush1.bf16.msra.mxu0 %v727
        %780 = vmatprep.subr.bf16.mxu0 0
        %781 = vmatpush1.bf16.msra.mxu0 %v728
        %782 = vmatprep.subr.bf16.mxu0 0
        %783 = vmatpush1.bf16.msra.mxu0 %v729
        %784 = vmatprep.subr.bf16.mxu0 0
        %785 = vmatpush1.bf16.msra.mxu0 %v730
        %786 = vmatprep.subr.bf16.mxu0 0
        %787 = vmatpush1.bf16.msra.mxu0 %v731
        %788 = vmatprep.subr.bf16.mxu0 0
        %789 = vmatpush1.bf16.msra.mxu0 %v732
        %790 = vmatprep.subr.bf16.mxu0 0
        %791 = vmatpush1.bf16.msra.mxu0 %v733
        %792 = vmatprep.subr.bf16.mxu0 0
        %793 = vmatpush1.bf16.msra.mxu0 %v734
        %794 = vmatprep.subr.bf16.mxu0 0
        %795 = vmatpush1.bf16.msra.mxu0 %v735
        %796 = vmatprep.subr.bf16.mxu0 0
        %797 = vmatpush1.bf16.msra.mxu0 %v736
        %798 = vmatprep.subr.bf16.mxu0 0
        %799 = vmatpush1.bf16.msra.mxu0 %v737
        %800 = vmatprep.subr.bf16.mxu0 0
        %801 = vmatpush1.bf16.msra.mxu0 %v738
        %802 = vmatprep.subr.bf16.mxu0 0
        %803 = vmatpush1.bf16.msra.mxu0 %v739
        %804 = vmatprep.mubr.bf16.mxu0 %v581
        %805 = vmatmul.mubr.bf16.gmra.mrb[0].mxu0 %v580
        %v806 = vpop.f32.mrb[0].mxu0
        %v807 = vadd.f32 %v498, %v806
        %v808 = vpop.f32.mrb[0].mxu0
        %v809 = vpop.f32.mrb[0].mxu0
        %v810 = vadd.f32 %v498, %v809
        %v811 = vpop.f32.mrb[0].mxu0
        %812 = vmatprep.mubr.bf16.mxu0 %v584
        %813 = vmatmul.mubr.bf16.gmra.mrb[0].mxu0 %v583
        %v814 = vpop.f32.mrb[0].mxu0
        %v815 = vadd.f32 %v498, %v814
        %v816 = vpop.f32.mrb[0].mxu0
        %v817 = vpop.f32.mrb[0].mxu0
        %v818 = vadd.f32 %v498, %v817
        %v819 = vpop.f32.mrb[0].mxu0
        %820 = vmatprep.mubr.bf16.mxu0 %v587
        %821 = vmatmul.mubr.bf16.gmra.mrb[0].mxu0 %v586
        %v822 = vpop.f32.mrb[0].mxu0
        %v823 = vadd.f32 %v498, %v822
        %v824 = vpop.f32.mrb[0].mxu0
        %v825 = vpop.f32.mrb[0].mxu0
        %v826 = vadd.f32 %v498, %v825
        %v827 = vpop.f32.mrb[0].mxu0
        %828 = vmatprep.mubr.bf16.mxu0 %v590
        %829 = vmatmul.mubr.bf16.gmra.mrb[0].mxu0 %v589
        %v830 = vpop.f32.mrb[0].mxu0
        %v831 = vadd.f32 %v498, %v830
        %v832 = vpop.f32.mrb[0].mxu0
        %v833 = vpop.f32.mrb[0].mxu0
        %v834 = vadd.f32 %v498, %v833
        %v835 = vpop.f32.mrb[0].mxu0
        %836 = vmatprep.mubr.bf16.mxu0 %v593
        %837 = vmatmul.mubr.bf16.gmra.mrb[0].mxu0 %v592
        %v838 = vpop.f32.mrb[0].mxu0
        %v839 = vadd.f32 %v498, %v838
        %v840 = vpop.f32.mrb[0].mxu0
        %v841 = vpop.f32.mrb[0].mxu0
        %v842 = vadd.f32 %v498, %v841
        %v843 = vpop.f32.mrb[0].mxu0
        %844 = vmatprep.mubr.bf16.mxu0 %v596
        %845 = vmatmul.mubr.bf16.gmra.mrb[0].mxu0 %v595
        %v846 = vpop.f32.mrb[0].mxu0
        %v847 = vadd.f32 %v498, %v846
        %v848 = vpop.f32.mrb[0].mxu0
        %v849 = vpop.f32.mrb[0].mxu0
        %v850 = vadd.f32 %v498, %v849
        %v851 = vpop.f32.mrb[0].mxu0
        %852 = vmatprep.mubr.bf16.mxu0 %v599
        %853 = vmatmul.mubr.bf16.gmra.mrb[0].mxu0 %v598
        %v854 = vpop.f32.mrb[0].mxu0
        %v855 = vadd.f32 %v498, %v854
        %v856 = vpop.f32.mrb[0].mxu0
        %v857 = vpop.f32.mrb[0].mxu0
        %v858 = vadd.f32 %v498, %v857
        %v859 = vpop.f32.mrb[0].mxu0
        %860 = vmatprep.mubr.bf16.mxu0 %v602
        %861 = vmatmul.mubr.bf16.gmra.mrb[0].mxu0 %v601
        %v862 = vpop.f32.mrb[0].mxu0
        %v863 = vadd.f32 %v498, %v862
        %v864 = vpop.f32.mrb[0].mxu0
        %v865 = vpop.f32.mrb[0].mxu0
        %v866 = vadd.f32 %v498, %v865
        %v867 = vpop.f32.mrb[0].mxu0
        %868 = vdwg.mxu0
        %869 = vmatprep.subr.bf16.mxu0 0
        %870 = vmatpush1.bf16.msra.mxu0 %v740
        %871 = vmatprep.subr.bf16.mxu0 0
        %872 = vmatpush1.bf16.msra.mxu0 %v741
        %873 = vmatprep.subr.bf16.mxu0 0
        %874 = vmatpush1.bf16.msra.mxu0 %v742
        %875 = vmatprep.subr.bf16.mxu0 0
        %876 = vmatpush1.bf16.msra.mxu0 %v743
        %877 = vmatprep.subr.bf16.mxu0 0
        %878 = vmatpush1.bf16.msra.mxu0 %v744
        %879 = vmatprep.subr.bf16.mxu0 0
        %880 = vmatpush1.bf16.msra.mxu0 %v745
        %881 = vmatprep.subr.bf16.mxu0 0
        %882 = vmatpush1.bf16.msra.mxu0 %v746
        %883 = vmatprep.subr.bf16.mxu0 0
        %884 = vmatpush1.bf16.msra.mxu0 %v747
        %885 = vmatprep.subr.bf16.mxu0 0
        %886 = vmatpush1.bf16.msra.mxu0 0
        %887 = vmatprep.subr.bf16.mxu0 0
        %888 = vmatpush1.bf16.msra.mxu0 0
        %889 = vmatprep.subr.bf16.mxu0 0
        %890 = vmatpush1.bf16.msra.mxu0 0
        %891 = vmatprep.subr.bf16.mxu0 0
        %892 = vmatpush1.bf16.msra.mxu0 0
        %893 = vmatprep.subr.bf16.mxu0 0
        %894 = vmatpush1.bf16.msra.mxu0 0
        %895 = vmatprep.subr.bf16.mxu0 0
        %896 = vmatpush1.bf16.msra.mxu0 0
        %897 = vmatprep.subr.bf16.mxu0 0
        %898 = vmatpush1.bf16.msra.mxu0 0
        %899 = vmatprep.subr.bf16.mxu0 0
        %900 = vmatpush1.bf16.msra.mxu0 0
        %901 = vmatprep.mubr.bf16.mxu0 0
        %902 = vmatmul.mubr.bf16.gmra.mrb[0].mxu0 %v582
        %v903 = vpop.f32.mrb[0].mxu0
        %v904 = vadd.f32 %v807, %v903
        %v905 = vpop.f32.mrb[0].mxu0
        %v906 = vpop.f32.mrb[0].mxu0
        %v907 = vadd.f32 %v810, %v906
        %v908 = vpop.f32.mrb[0].mxu0
        %909 = vmatprep.mubr.bf16.mxu0 0
        %910 = vmatmul.mubr.bf16.gmra.mrb[0].mxu0 %v585
        %v911 = vpop.f32.mrb[0].mxu0
        %v912 = vadd.f32 %v815, %v911
        %v913 = vpop.f32.mrb[0].mxu0
        %v914 = vpop.f32.mrb[0].mxu0
        %v915 = vadd.f32 %v818, %v914
        %v916 = vpop.f32.mrb[0].mxu0
        %917 = vmatprep.mubr.bf16.mxu0 0
        %918 = vmatmul.mubr.bf16.gmra.mrb[0].mxu0 %v588
        %v919 = vpop.f32.mrb[0].mxu0
        %v920 = vadd.f32 %v823, %v919
        %v921 = vpop.f32.mrb[0].mxu0
        %v922 = vpop.f32.mrb[0].mxu0
        %v923 = vadd.f32 %v826, %v922
        %v924 = vpop.f32.mrb[0].mxu0
        %925 = vmatprep.mubr.bf16.mxu0 0
        %926 = vmatmul.mubr.bf16.gmra.mrb[0].mxu0 %v591
        %v927 = vpop.f32.mrb[0].mxu0
        %v928 = vadd.f32 %v831, %v927
        %v929 = vpop.f32.mrb[0].mxu0
        %v930 = vpop.f32.mrb[0].mxu0
        %v931 = vadd.f32 %v834, %v930
        %v932 = vpop.f32.mrb[0].mxu0
        %933 = vmatprep.mubr.bf16.mxu0 0
        %934 = vmatmul.mubr.bf16.gmra.mrb[0].mxu0 %v594
        %v935 = vpop.f32.mrb[0].mxu0
        %v936 = vadd.f32 %v839, %v935
        %v937 = vpop.f32.mrb[0].mxu0
        %v938 = vpop.f32.mrb[0].mxu0
        %v939 = vadd.f32 %v842, %v938
        %v940 = vpop.f32.mrb[0].mxu0
        %941 = vmatprep.mubr.bf16.mxu0 0
        %942 = vmatmul.mubr.bf16.gmra.mrb[0].mxu0 %v597
        %v943 = vpop.f32.mrb[0].mxu0
        %v944 = vadd.f32 %v847, %v943
        %v945 = vpop.f32.mrb[0].mxu0
        %v946 = vpop.f32.mrb[0].mxu0
        %v947 = vadd.f32 %v850, %v946
        %v948 = vpop.f32.mrb[0].mxu0
        %949 = vmatprep.mubr.bf16.mxu0 0
        %950 = vmatmul.mubr.bf16.gmra.mrb[0].mxu0 %v600
        %v951 = vpop.f32.mrb[0].mxu0
        %v952 = vadd.f32 %v855, %v951
        %v953 = vpop.f32.mrb[0].mxu0
        %v954 = vpop.f32.mrb[0].mxu0
        %v955 = vadd.f32 %v858, %v954
        %v956 = vpop.f32.mrb[0].mxu0
        %957 = vmatprep.mubr.bf16.mxu0 0
        %958 = vmatmul.mubr.bf16.gmra.mrb[0].mxu0 %v603
        %v959 = vpop.f32.mrb[0].mxu0
        %v960 = vadd.f32 %v863, %v959
        %v961 = vpop.f32.mrb[0].mxu0
        %v962 = vpop.f32.mrb[0].mxu0
        %v963 = vadd.f32 %v866, %v962
        %v964 = vpop.f32.mrb[0].mxu0
        %965 = vdwg.mxu0
        %v966 = vmax.f32 %v904, 0.0
        %v967 = vmax.f32 %v907, 0.0
        %v968 = vmax.f32 %v912, 0.0
        %v969 = vmax.f32 %v915, 0.0
        %v970 = vmax.f32 %v920, 0.0
        %v971 = vmax.f32 %v923, 0.0
        %v972 = vmax.f32 %v928, 0.0
        %v973 = vmax.f32 %v931, 0.0
        %v974 = vmax.f32 %v936, 0.0
        %v975 = vmax.f32 %v939, 0.0
        %v976 = vmax.f32 %v944, 0.0
        %v977 = vmax.f32 %v947, 0.0
        %v978 = vmax.f32 %v952, 0.0
        %v979 = vmax.f32 %v955, 0.0
        %v980 = vmax.f32 %v960, 0.0
        %v981 = vmax.f32 %v963, 0.0
        %v982 = vpack.c.bf16 %v967, %v966
        %v983 = vpack.c.bf16 %v969, %v968
        %v984 = vpack.c.bf16 %v971, %v970
        %v985 = vpack.c.bf16 %v973, %v972
        %v986 = vpack.c.bf16 %v975, %v974
        %v987 = vpack.c.bf16 %v977, %v976
        %v988 = vpack.c.bf16 %v979, %v978
        %v989 = vpack.c.bf16 %v981, %v980
        %v990 = vld [vmem:[#allocation7] sm:$0xf]
        %v991 = vld [vmem:[#allocation7 + $0x4] sm:$0xf]
        %v992 = vld [vmem:[#allocation7 + $0x8] sm:$0xf]
        %v993 = vld [vmem:[#allocation7 + $0xc] sm:$0xf]
        %v994 = vld [vmem:[#allocation7 + $0x10] sm:$0xf]
        %v995 = vld [vmem:[#allocation7 + $0x14] sm:$0xf]
        %v996 = vld [vmem:[#allocation7 + $0x18] sm:$0xf]
        %v997 = vld [vmem:[#allocation7 + $0x1c] sm:$0xf]
        %v998 = vld [vmem:[#allocation7 + $0x20] sm:$0xf]
        %v999 = vld [vmem:[#allocation7 + $0x24] sm:$0xf]
        %v1000 = vld [vmem:[#allocation7 + $0x28] sm:$0xf]
        %v1001 = vld [vmem:[#allocation7 + $0x2c] sm:$0xf]
        %v1002 = vld [vmem:[#allocation7 + $0x30] sm:$0xf]
        %v1003 = vld [vmem:[#allocation7 + $0x34] sm:$0xf]
        %v1004 = vld [vmem:[#allocation7 + $0x38] sm:$0xf]
        %v1005 = vld [vmem:[#allocation7 + $0x3c] sm:$0xf]
        %v1006 = vld [vmem:[%s4] sm:$0x1]
        %v1008 = vlaneseq
        %v1009 = vshrl.u32 %v1008, 7
        %v1010 = vsub.s32 0, %v1009
        %v1011 = vrot.slane %v1006, %v1010
        %v1029 = vunpack.c.l.b16 %v990
        %v1030 = vunpack.c.l.b16 %v991
        %v1031 = vunpack.c.l.b16 %v992
        %v1032 = vunpack.c.l.b16 %v993
        %v1033 = vunpack.c.l.b16 %v994
        %v1034 = vunpack.c.l.b16 %v995
        %v1035 = vunpack.c.l.b16 %v996
        %v1036 = vunpack.c.l.b16 %v997
        %v1037 = vunpack.c.l.b16 %v998
        %v1038 = vunpack.c.l.b16 %v999
        %v1039 = vunpack.c.l.b16 %v1000
        %v1040 = vunpack.c.l.b16 %v1001
        %v1041 = vunpack.c.l.b16 %v1002
        %v1042 = vunpack.c.l.b16 %v1003
        %v1043 = vunpack.c.l.b16 %v1004
        %v1044 = vunpack.c.l.b16 %v1005
        %v1045 = vpack.c.b16 %v1030, %v1029
        %v1046 = vpack.c.b16 %v1032, %v1031
        %v1047 = vpack.c.b16 %v1034, %v1033
        %v1048 = vpack.c.b16 %v1036, %v1035
        %v1049 = vpack.c.b16 %v1038, %v1037
        %v1050 = vpack.c.b16 %v1040, %v1039
        %v1051 = vpack.c.b16 %v1042, %v1041
        %v1052 = vpack.c.b16 %v1044, %v1043
        %1061 = vmatprep.subr.bf16.mxu0 0
        %1062 = vmatpush1.bf16.msra.mxu0 %v1045
        %1063 = vmatprep.subr.bf16.mxu0 0
        %1064 = vmatpush1.bf16.msra.mxu0 %v1046
        %1065 = vmatprep.subr.bf16.mxu0 0
        %1066 = vmatpush1.bf16.msra.mxu0 %v1047
        %1067 = vmatprep.subr.bf16.mxu0 0
        %1068 = vmatpush1.bf16.msra.mxu0 %v1048
        %1069 = vmatprep.subr.bf16.mxu0 0
        %1070 = vmatpush1.bf16.msra.mxu0 %v1049
        %1071 = vmatprep.subr.bf16.mxu0 0
        %1072 = vmatpush1.bf16.msra.mxu0 %v1050
        %1073 = vmatprep.subr.bf16.mxu0 0
        %1074 = vmatpush1.bf16.msra.mxu0 %v1051
        %1075 = vmatprep.subr.bf16.mxu0 0
        %1076 = vmatpush1.bf16.msra.mxu0 %v1052
        %1077 = vmatprep.subr.bf16.mxu0 0
        %1078 = vmatpush1.bf16.msra.mxu0 0
        %1079 = vmatprep.subr.bf16.mxu0 0
        %1080 = vmatpush1.bf16.msra.mxu0 0
        %1081 = vmatprep.subr.bf16.mxu0 0
        %1082 = vmatpush1.bf16.msra.mxu0 0
        %1083 = vmatprep.subr.bf16.mxu0 0
        %1084 = vmatpush1.bf16.msra.mxu0 0
        %1085 = vmatprep.subr.bf16.mxu0 0
        %1086 = vmatpush1.bf16.msra.mxu0 0
        %1087 = vmatprep.subr.bf16.mxu0 0
        %1088 = vmatpush1.bf16.msra.mxu0 0
        %1089 = vmatprep.subr.bf16.mxu0 0
        %1090 = vmatpush1.bf16.msra.mxu0 0
        %1091 = vmatprep.subr.bf16.mxu0 0
        %1092 = vmatpush1.bf16.msra.mxu0 0
        %1093 = vmatprep.mubr.bf16.mxu0 0
        %1094 = vmatmul.mubr.bf16.gmra.mrb[0].mxu0 %v982
        %v1095 = vpop.f32.mrb[0].mxu0
        %v1096 = vadd.f32 %v1011, %v1095
        %v1097 = vpop.f32.mrb[0].mxu0
        %v1098 = vpop.f32.mrb[0].mxu0
        %v1099 = vadd.f32 %v1011, %v1098
        %v1100 = vpop.f32.mrb[0].mxu0
        %1101 = vmatprep.mubr.bf16.mxu0 0
        %1102 = vmatmul.mubr.bf16.gmra.mrb[0].mxu0 %v983
        %v1103 = vpop.f32.mrb[0].mxu0
        %v1104 = vadd.f32 %v1011, %v1103
        %v1105 = vpop.f32.mrb[0].mxu0
        %v1106 = vpop.f32.mrb[0].mxu0
        %v1107 = vadd.f32 %v1011, %v1106
        %v1108 = vpop.f32.mrb[0].mxu0
        %1109 = vmatprep.mubr.bf16.mxu0 0
        %1110 = vmatmul.mubr.bf16.gmra.mrb[0].mxu0 %v984
        %v1111 = vpop.f32.mrb[0].mxu0
        %v1112 = vadd.f32 %v1011, %v1111
        %v1113 = vpop.f32.mrb[0].mxu0
        %v1114 = vpop.f32.mrb[0].mxu0
        %v1115 = vadd.f32 %v1011, %v1114
        %v1116 = vpop.f32.mrb[0].mxu0
        %1117 = vmatprep.mubr.bf16.mxu0 0
        %1118 = vmatmul.mubr.bf16.gmra.mrb[0].mxu0 %v985
        %v1119 = vpop.f32.mrb[0].mxu0
        %v1120 = vadd.f32 %v1011, %v1119
        %v1121 = vpop.f32.mrb[0].mxu0
        %v1122 = vpop.f32.mrb[0].mxu0
        %v1123 = vadd.f32 %v1011, %v1122
        %v1124 = vpop.f32.mrb[0].mxu0
        %1125 = vmatprep.mubr.bf16.mxu0 0
        %1126 = vmatmul.mubr.bf16.gmra.mrb[0].mxu0 %v986
        %v1127 = vpop.f32.mrb[0].mxu0
        %v1128 = vadd.f32 %v1011, %v1127
        %v1129 = vpop.f32.mrb[0].mxu0
        %v1130 = vpop.f32.mrb[0].mxu0
        %v1131 = vadd.f32 %v1011, %v1130
        %v1132 = vpop.f32.mrb[0].mxu0
        %1133 = vmatprep.mubr.bf16.mxu0 0
        %1134 = vmatmul.mubr.bf16.gmra.mrb[0].mxu0 %v987
        %v1135 = vpop.f32.mrb[0].mxu0
        %v1136 = vadd.f32 %v1011, %v1135
        %v1137 = vpop.f32.mrb[0].mxu0
        %v1138 = vpop.f32.mrb[0].mxu0
        %v1139 = vadd.f32 %v1011, %v1138
        %v1140 = vpop.f32.mrb[0].mxu0
        %1141 = vmatprep.mubr.bf16.mxu0 0
        %1142 = vmatmul.mubr.bf16.gmra.mrb[0].mxu0 %v988
        %v1143 = vpop.f32.mrb[0].mxu0
        %v1144 = vadd.f32 %v1011, %v1143
        %v1145 = vpop.f32.mrb[0].mxu0
        %v1146 = vpop.f32.mrb[0].mxu0
        %v1147 = vadd.f32 %v1011, %v1146
        %v1148 = vpop.f32.mrb[0].mxu0
        %1149 = vmatprep.mubr.bf16.mxu0 0
        %1150 = vmatmul.mubr.bf16.gmra.mrb[0].mxu0 %v989
        %v1151 = vpop.f32.mrb[0].mxu0
        %v1152 = vadd.f32 %v1011, %v1151
        %v1153 = vpop.f32.mrb[0].mxu0
        %v1154 = vpop.f32.mrb[0].mxu0
        %v1155 = vadd.f32 %v1011, %v1154
        %v1156 = vpop.f32.mrb[0].mxu0
        %1157 = vdwg.mxu0
        %v1158 = vmax.f32 %v1096, 0.0
        %v1159 = vmax.f32 %v1099, 0.0
        %v1160 = vmax.f32 %v1104, 0.0
        %v1161 = vmax.f32 %v1107, 0.0
        %v1162 = vmax.f32 %v1112, 0.0
        %v1163 = vmax.f32 %v1115, 0.0
        %v1164 = vmax.f32 %v1120, 0.0
        %v1165 = vmax.f32 %v1123, 0.0
        %v1166 = vmax.f32 %v1128, 0.0
        %v1167 = vmax.f32 %v1131, 0.0
        %v1168 = vmax.f32 %v1136, 0.0
        %v1169 = vmax.f32 %v1139, 0.0
        %v1170 = vmax.f32 %v1144, 0.0
        %v1171 = vmax.f32 %v1147, 0.0
        %v1172 = vmax.f32 %v1152, 0.0
        %v1173 = vmax.f32 %v1155, 0.0
        %v1174 = vpack.c.bf16 %v1159, %v1158
        %v1175 = vpack.c.bf16 %v1161, %v1160
        %v1176 = vpack.c.bf16 %v1163, %v1162
        %v1177 = vpack.c.bf16 %v1165, %v1164
        %v1178 = vpack.c.bf16 %v1167, %v1166
        %v1179 = vpack.c.bf16 %v1169, %v1168
        %v1180 = vpack.c.bf16 %v1171, %v1170
        %v1181 = vpack.c.bf16 %v1173, %v1172
        %v1182 = vld [vmem:[#allocation8] sm:$0xf]
        %v1183 = vld [vmem:[#allocation8 + $0x4] sm:$0xf]
        %v1184 = vld [vmem:[#allocation8 + $0x8] sm:$0xf]
        %v1185 = vld [vmem:[#allocation8 + $0xc] sm:$0xf]
        %v1186 = vld [vmem:[#allocation8 + $0x10] sm:$0xf]
        %v1187 = vld [vmem:[#allocation8 + $0x14] sm:$0xf]
        %v1188 = vld [vmem:[#allocation8 + $0x18] sm:$0xf]
        %v1189 = vld [vmem:[#allocation8 + $0x1c] sm:$0xf]
        %v1190 = vld [vmem:[#allocation8 + $0x20] sm:$0xf]
        %v1191 = vld [vmem:[#allocation8 + $0x24] sm:$0xf]
        %v1192 = vld [vmem:[#allocation8 + $0x28] sm:$0xf]
        %v1193 = vld [vmem:[#allocation8 + $0x2c] sm:$0xf]
        %v1194 = vld [vmem:[#allocation8 + $0x30] sm:$0xf]
        %v1195 = vld [vmem:[#allocation8 + $0x34] sm:$0xf]
        %v1196 = vld [vmem:[#allocation8 + $0x38] sm:$0xf]
        %v1197 = vld [vmem:[#allocation8 + $0x3c] sm:$0xf]
        %v1198 = vld [vmem:[%s6] sm:$0x1]
        %v1200 = vlaneseq
        %v1201 = vshrl.u32 %v1200, 7
        %v1202 = vsub.s32 0, %v1201
        %v1203 = vrot.slane %v1198, %v1202
        %v1221 = vunpack.c.l.b16 %v1182
        %v1222 = vunpack.c.l.b16 %v1183
        %v1223 = vunpack.c.l.b16 %v1184
        %v1224 = vunpack.c.l.b16 %v1185
        %v1225 = vunpack.c.l.b16 %v1186
        %v1226 = vunpack.c.l.b16 %v1187
        %v1227 = vunpack.c.l.b16 %v1188
        %v1228 = vunpack.c.l.b16 %v1189
        %v1229 = vunpack.c.l.b16 %v1190
        %v1230 = vunpack.c.l.b16 %v1191
        %v1231 = vunpack.c.l.b16 %v1192
        %v1232 = vunpack.c.l.b16 %v1193
        %v1233 = vunpack.c.l.b16 %v1194
        %v1234 = vunpack.c.l.b16 %v1195
        %v1235 = vunpack.c.l.b16 %v1196
        %v1236 = vunpack.c.l.b16 %v1197
        %v1237 = vpack.c.b16 %v1222, %v1221
        %v1238 = vpack.c.b16 %v1224, %v1223
        %v1239 = vpack.c.b16 %v1226, %v1225
        %v1240 = vpack.c.b16 %v1228, %v1227
        %v1241 = vpack.c.b16 %v1230, %v1229
        %v1242 = vpack.c.b16 %v1232, %v1231
        %v1243 = vpack.c.b16 %v1234, %v1233
        %v1244 = vpack.c.b16 %v1236, %v1235
        %1253 = vmatprep.subr.bf16.mxu0 0
        %1254 = vmatpush1.bf16.msra.mxu0 %v1237
        %1255 = vmatprep.subr.bf16.mxu0 0
        %1256 = vmatpush1.bf16.msra.mxu0 %v1238
        %1257 = vmatprep.subr.bf16.mxu0 0
        %1258 = vmatpush1.bf16.msra.mxu0 %v1239
        %1259 = vmatprep.subr.bf16.mxu0 0
        %1260 = vmatpush1.bf16.msra.mxu0 %v1240
        %1261 = vmatprep.subr.bf16.mxu0 0
        %1262 = vmatpush1.bf16.msra.mxu0 %v1241
        %1263 = vmatprep.subr.bf16.mxu0 0
        %1264 = vmatpush1.bf16.msra.mxu0 %v1242
        %1265 = vmatprep.subr.bf16.mxu0 0
        %1266 = vmatpush1.bf16.msra.mxu0 %v1243
        %1267 = vmatprep.subr.bf16.mxu0 0
        %1268 = vmatpush1.bf16.msra.mxu0 %v1244
        %1269 = vmatprep.subr.bf16.mxu0 0
        %1270 = vmatpush1.bf16.msra.mxu0 0
        %1271 = vmatprep.subr.bf16.mxu0 0
        %1272 = vmatpush1.bf16.msra.mxu0 0
        %1273 = vmatprep.subr.bf16.mxu0 0
        %1274 = vmatpush1.bf16.msra.mxu0 0
        %1275 = vmatprep.subr.bf16.mxu0 0
        %1276 = vmatpush1.bf16.msra.mxu0 0
        %1277 = vmatprep.subr.bf16.mxu0 0
        %1278 = vmatpush1.bf16.msra.mxu0 0
        %1279 = vmatprep.subr.bf16.mxu0 0
        %1280 = vmatpush1.bf16.msra.mxu0 0
        %1281 = vmatprep.subr.bf16.mxu0 0
        %1282 = vmatpush1.bf16.msra.mxu0 0
        %1283 = vmatprep.subr.bf16.mxu0 0
        %1284 = vmatpush1.bf16.msra.mxu0 0
        %1285 = vmatprep.mubr.bf16.mxu0 0
        %1286 = vmatmul.mubr.bf16.gmra.mrb[0].mxu0 %v1174
        %v1287 = vpop.f32.mrb[0].mxu0
        %v1288 = vadd.f32 %v1203, %v1287
        %v1289 = vpop.f32.mrb[0].mxu0
        %v1290 = vpop.f32.mrb[0].mxu0
        %v1291 = vadd.f32 %v1203, %v1290
        %v1292 = vpop.f32.mrb[0].mxu0
        %1293 = vmatprep.mubr.bf16.mxu0 0
        %1294 = vmatmul.mubr.bf16.gmra.mrb[0].mxu0 %v1175
        %v1295 = vpop.f32.mrb[0].mxu0
        %v1296 = vadd.f32 %v1203, %v1295
        %v1297 = vpop.f32.mrb[0].mxu0
        %v1298 = vpop.f32.mrb[0].mxu0
        %v1299 = vadd.f32 %v1203, %v1298
        %v1300 = vpop.f32.mrb[0].mxu0
        %1301 = vmatprep.mubr.bf16.mxu0 0
        %1302 = vmatmul.mubr.bf16.gmra.mrb[0].mxu0 %v1176
        %v1303 = vpop.f32.mrb[0].mxu0
        %v1304 = vadd.f32 %v1203, %v1303
        %v1305 = vpop.f32.mrb[0].mxu0
        %v1306 = vpop.f32.mrb[0].mxu0
        %v1307 = vadd.f32 %v1203, %v1306
        %v1308 = vpop.f32.mrb[0].mxu0
        %1309 = vmatprep.mubr.bf16.mxu0 0
        %1310 = vmatmul.mubr.bf16.gmra.mrb[0].mxu0 %v1177
        %v1311 = vpop.f32.mrb[0].mxu0
        %v1312 = vadd.f32 %v1203, %v1311
        %v1313 = vpop.f32.mrb[0].mxu0
        %v1314 = vpop.f32.mrb[0].mxu0
        %v1315 = vadd.f32 %v1203, %v1314
        %v1316 = vpop.f32.mrb[0].mxu0
        %1317 = vmatprep.mubr.bf16.mxu0 0
        %1318 = vmatmul.mubr.bf16.gmra.mrb[0].mxu0 %v1178
        %v1319 = vpop.f32.mrb[0].mxu0
        %v1320 = vadd.f32 %v1203, %v1319
        %v1321 = vpop.f32.mrb[0].mxu0
        %v1322 = vpop.f32.mrb[0].mxu0
        %v1323 = vadd.f32 %v1203, %v1322
        %v1324 = vpop.f32.mrb[0].mxu0
        %1325 = vmatprep.mubr.bf16.mxu0 0
        %1326 = vmatmul.mubr.bf16.gmra.mrb[0].mxu0 %v1179
        %v1327 = vpop.f32.mrb[0].mxu0
        %v1328 = vadd.f32 %v1203, %v1327
        %v1329 = vpop.f32.mrb[0].mxu0
        %v1330 = vpop.f32.mrb[0].mxu0
        %v1331 = vadd.f32 %v1203, %v1330
        %v1332 = vpop.f32.mrb[0].mxu0
        %1333 = vmatprep.mubr.bf16.mxu0 0
        %1334 = vmatmul.mubr.bf16.gmra.mrb[0].mxu0 %v1180
        %v1335 = vpop.f32.mrb[0].mxu0
        %v1336 = vadd.f32 %v1203, %v1335
        %v1337 = vpop.f32.mrb[0].mxu0
        %v1338 = vpop.f32.mrb[0].mxu0
        %v1339 = vadd.f32 %v1203, %v1338
        %v1340 = vpop.f32.mrb[0].mxu0
        %1341 = vmatprep.mubr.bf16.mxu0 0
        %1342 = vmatmul.mubr.bf16.gmra.mrb[0].mxu0 %v1181
        %v1343 = vpop.f32.mrb[0].mxu0
        %v1344 = vadd.f32 %v1203, %v1343
        %v1345 = vpop.f32.mrb[0].mxu0
        %v1346 = vpop.f32.mrb[0].mxu0
        %v1347 = vadd.f32 %v1203, %v1346
        %v1348 = vpop.f32.mrb[0].mxu0
        %1349 = vdwg.mxu0
        %v1350 = vmax.f32 %v1288, 0.0
        %v1351 = vmax.f32 %v1291, 0.0
        %v1352 = vmax.f32 %v1296, 0.0
        %v1353 = vmax.f32 %v1299, 0.0
        %v1354 = vmax.f32 %v1304, 0.0
        %v1355 = vmax.f32 %v1307, 0.0
        %v1356 = vmax.f32 %v1312, 0.0
        %v1357 = vmax.f32 %v1315, 0.0
        %v1358 = vmax.f32 %v1320, 0.0
        %v1359 = vmax.f32 %v1323, 0.0
        %v1360 = vmax.f32 %v1328, 0.0
        %v1361 = vmax.f32 %v1331, 0.0
        %v1362 = vmax.f32 %v1336, 0.0
        %v1363 = vmax.f32 %v1339, 0.0
        %v1364 = vmax.f32 %v1344, 0.0
        %v1365 = vmax.f32 %v1347, 0.0
        %v1366 = vpack.c.bf16 %v1351, %v1350
        %v1367 = vpack.c.bf16 %v1353, %v1352
        %v1368 = vpack.c.bf16 %v1355, %v1354
        %v1369 = vpack.c.bf16 %v1357, %v1356
        %v1370 = vpack.c.bf16 %v1359, %v1358
        %v1371 = vpack.c.bf16 %v1361, %v1360
        %v1372 = vpack.c.bf16 %v1363, %v1362
        %v1373 = vpack.c.bf16 %v1365, %v1364
        %v1374 = vld [vmem:[#allocation10] sm:$0xf]
        %v1375 = vld [vmem:[#allocation10 + $0x4] sm:$0xf]
        %v1376 = vld [vmem:[#allocation10 + $0x8] sm:$0xf]
        %v1377 = vld [vmem:[#allocation10 + $0xc] sm:$0xf]
        %v1378 = vld [vmem:[#allocation10 + $0x10] sm:$0xf]
        %v1379 = vld [vmem:[#allocation10 + $0x14] sm:$0xf]
        %v1380 = vld [vmem:[#allocation10 + $0x18] sm:$0xf]
        %v1381 = vld [vmem:[#allocation10 + $0x1c] sm:$0xf]
        %v1382 = vld [vmem:[#allocation10 + $0x20] sm:$0xf]
        %v1383 = vld [vmem:[#allocation10 + $0x24] sm:$0xf]
        %v1384 = vld [vmem:[#allocation10 + $0x28] sm:$0xf]
        %v1385 = vld [vmem:[#allocation10 + $0x2c] sm:$0xf]
        %v1386 = vld [vmem:[#allocation10 + $0x30] sm:$0xf]
        %v1387 = vld [vmem:[#allocation10 + $0x34] sm:$0xf]
        %v1388 = vld [vmem:[#allocation10 + $0x38] sm:$0xf]
        %v1389 = vld [vmem:[#allocation10 + $0x3c] sm:$0xf]
        %v1390 = vld [vmem:[%s8] sm:$0x1]
        %v1392 = vlaneseq
        %v1393 = vshrl.u32 %v1392, 7
        %v1394 = vsub.s32 0, %v1393
        %v1395 = vrot.slane %v1390, %v1394
        %v1413 = vunpack.c.l.b16 %v1374
        %v1414 = vunpack.c.l.b16 %v1375
        %v1415 = vunpack.c.l.b16 %v1376
        %v1416 = vunpack.c.l.b16 %v1377
        %v1417 = vunpack.c.l.b16 %v1378
        %v1418 = vunpack.c.l.b16 %v1379
        %v1419 = vunpack.c.l.b16 %v1380
        %v1420 = vunpack.c.l.b16 %v1381
        %v1421 = vunpack.c.l.b16 %v1382
        %v1422 = vunpack.c.l.b16 %v1383
        %v1423 = vunpack.c.l.b16 %v1384
        %v1424 = vunpack.c.l.b16 %v1385
        %v1425 = vunpack.c.l.b16 %v1386
        %v1426 = vunpack.c.l.b16 %v1387
        %v1427 = vunpack.c.l.b16 %v1388
        %v1428 = vunpack.c.l.b16 %v1389
        %v1429 = vpack.c.b16 %v1414, %v1413
        %v1430 = vpack.c.b16 %v1416, %v1415
        %v1431 = vpack.c.b16 %v1418, %v1417
        %v1432 = vpack.c.b16 %v1420, %v1419
        %v1433 = vpack.c.b16 %v1422, %v1421
        %v1434 = vpack.c.b16 %v1424, %v1423
        %v1435 = vpack.c.b16 %v1426, %v1425
        %v1436 = vpack.c.b16 %v1428, %v1427
        %1445 = vmatprep.subr.bf16.mxu0 0
        %1446 = vmatpush1.bf16.msra.mxu0 %v1429
        %1447 = vmatprep.subr.bf16.mxu0 0
        %1448 = vmatpush1.bf16.msra.mxu0 %v1430
        %1449 = vmatprep.subr.bf16.mxu0 0
        %1450 = vmatpush1.bf16.msra.mxu0 %v1431
        %1451 = vmatprep.subr.bf16.mxu0 0
        %1452 = vmatpush1.bf16.msra.mxu0 %v1432
        %1453 = vmatprep.subr.bf16.mxu0 0
        %1454 = vmatpush1.bf16.msra.mxu0 %v1433
        %1455 = vmatprep.subr.bf16.mxu0 0
        %1456 = vmatpush1.bf16.msra.mxu0 %v1434
        %1457 = vmatprep.subr.bf16.mxu0 0
        %1458 = vmatpush1.bf16.msra.mxu0 %v1435
        %1459 = vmatprep.subr.bf16.mxu0 0
        %1460 = vmatpush1.bf16.msra.mxu0 %v1436
        %1461 = vmatprep.subr.bf16.mxu0 0
        %1462 = vmatpush1.bf16.msra.mxu0 0
        %1463 = vmatprep.subr.bf16.mxu0 0
        %1464 = vmatpush1.bf16.msra.mxu0 0
        %1465 = vmatprep.subr.bf16.mxu0 0
        %1466 = vmatpush1.bf16.msra.mxu0 0
        %1467 = vmatprep.subr.bf16.mxu0 0
        %1468 = vmatpush1.bf16.msra.mxu0 0
        %1469 = vmatprep.subr.bf16.mxu0 0
        %1470 = vmatpush1.bf16.msra.mxu0 0
        %1471 = vmatprep.subr.bf16.mxu0 0
        %1472 = vmatpush1.bf16.msra.mxu0 0
        %1473 = vmatprep.subr.bf16.mxu0 0
        %1474 = vmatpush1.bf16.msra.mxu0 0
        %1475 = vmatprep.subr.bf16.mxu0 0
        %1476 = vmatpush1.bf16.msra.mxu0 0
        %1477 = vmatprep.mubr.bf16.mxu0 0
        %1478 = vmatmul.mubr.bf16.gmra.mrb[0].mxu0 %v1366
        %v1479 = vpop.f32.mrb[0].mxu0
        %v1480 = vadd.f32 %v1395, %v1479
        %v1481 = vpop.f32.mrb[0].mxu0
        %v1482 = vpop.f32.mrb[0].mxu0
        %v1483 = vadd.f32 %v1395, %v1482
        %v1484 = vpop.f32.mrb[0].mxu0
        %1485 = vmatprep.mubr.bf16.mxu0 0
        %1486 = vmatmul.mubr.bf16.gmra.mrb[0].mxu0 %v1367
        %v1487 = vpop.f32.mrb[0].mxu0
        %v1488 = vadd.f32 %v1395, %v1487
        %v1489 = vpop.f32.mrb[0].mxu0
        %v1490 = vpop.f32.mrb[0].mxu0
        %v1491 = vadd.f32 %v1395, %v1490
        %v1492 = vpop.f32.mrb[0].mxu0
        %1493 = vmatprep.mubr.bf16.mxu0 0
        %1494 = vmatmul.mubr.bf16.gmra.mrb[0].mxu0 %v1368
        %v1495 = vpop.f32.mrb[0].mxu0
        %v1496 = vadd.f32 %v1395, %v1495
        %v1497 = vpop.f32.mrb[0].mxu0
        %v1498 = vpop.f32.mrb[0].mxu0
        %v1499 = vadd.f32 %v1395, %v1498
        %v1500 = vpop.f32.mrb[0].mxu0
        %1501 = vmatprep.mubr.bf16.mxu0 0
        %1502 = vmatmul.mubr.bf16.gmra.mrb[0].mxu0 %v1369
        %v1503 = vpop.f32.mrb[0].mxu0
        %v1504 = vadd.f32 %v1395, %v1503
        %v1505 = vpop.f32.mrb[0].mxu0
        %v1506 = vpop.f32.mrb[0].mxu0
        %v1507 = vadd.f32 %v1395, %v1506
        %v1508 = vpop.f32.mrb[0].mxu0
        %1509 = vmatprep.mubr.bf16.mxu0 0
        %1510 = vmatmul.mubr.bf16.gmra.mrb[0].mxu0 %v1370
        %v1511 = vpop.f32.mrb[0].mxu0
        %v1512 = vadd.f32 %v1395, %v1511
        %v1513 = vpop.f32.mrb[0].mxu0
        %v1514 = vpop.f32.mrb[0].mxu0
        %v1515 = vadd.f32 %v1395, %v1514
        %v1516 = vpop.f32.mrb[0].mxu0
        %1517 = vmatprep.mubr.bf16.mxu0 0
        %1518 = vmatmul.mubr.bf16.gmra.mrb[0].mxu0 %v1371
        %v1519 = vpop.f32.mrb[0].mxu0
        %v1520 = vadd.f32 %v1395, %v1519
        %v1521 = vpop.f32.mrb[0].mxu0
        %v1522 = vpop.f32.mrb[0].mxu0
        %v1523 = vadd.f32 %v1395, %v1522
        %v1524 = vpop.f32.mrb[0].mxu0
        %1525 = vmatprep.mubr.bf16.mxu0 0
        %1526 = vmatmul.mubr.bf16.gmra.mrb[0].mxu0 %v1372
        %v1527 = vpop.f32.mrb[0].mxu0
        %v1528 = vadd.f32 %v1395, %v1527
        %v1529 = vpop.f32.mrb[0].mxu0
        %v1530 = vpop.f32.mrb[0].mxu0
        %v1531 = vadd.f32 %v1395, %v1530
        %v1532 = vpop.f32.mrb[0].mxu0
        %1533 = vmatprep.mubr.bf16.mxu0 0
        %1534 = vmatmul.mubr.bf16.gmra.mrb[0].mxu0 %v1373
        %v1535 = vpop.f32.mrb[0].mxu0
        %v1536 = vadd.f32 %v1395, %v1535
        %v1537 = vpop.f32.mrb[0].mxu0
        %v1538 = vpop.f32.mrb[0].mxu0
        %v1539 = vadd.f32 %v1395, %v1538
        %v1540 = vpop.f32.mrb[0].mxu0
        %1541 = vdwg.mxu0
        %1542 = vst [vmem:[%s409] sm:$0xff] %v1480
        %1543 = vst [vmem:[%s409 + $0x8] sm:$0xff] %v1483
        %1544 = vst [vmem:[%s409 + $0x10] sm:$0xff] %v1488
        %1545 = vst [vmem:[%s409 + $0x18] sm:$0xff] %v1491
        %1546 = vst [vmem:[%s409 + $0x20] sm:$0xff] %v1496
        %1547 = vst [vmem:[%s409 + $0x28] sm:$0xff] %v1499
        %1548 = vst [vmem:[%s409 + $0x30] sm:$0xff] %v1504
        %1549 = vst [vmem:[%s409 + $0x38] sm:$0xff] %v1507
        %1550 = vst [vmem:[%s409 + $0x40] sm:$0xff] %v1512
        %1551 = vst [vmem:[%s409 + $0x48] sm:$0xff] %v1515
        %1552 = vst [vmem:[%s409 + $0x50] sm:$0xff] %v1520
        %1553 = vst [vmem:[%s409 + $0x58] sm:$0xff] %v1523
        %1554 = vst [vmem:[%s409 + $0x60] sm:$0xff] %v1528
        %1555 = vst [vmem:[%s409 + $0x68] sm:$0xff] %v1531
        %1556 = vst [vmem:[%s409 + $0x70] sm:$0xff] %v1536
        %1557 = vst [vmem:[%s409 + $0x78] sm:$0xff] %v1539
        %s1558 = sand.u32 %s230, 1
        %s1559 = scalar_lea.sflag [#allocation4], %s1558
        %s1560 = sand.u32 %s230, 1
        %s1561 = smul.addr %s1560, 128
        %s1562 = scalar_lea.vmem [#allocation11], %s1561
        // Predicated region
        $region77: #{tpu_custom_call.1} parent=55 // pred_check
          %p1563 = pneg %p240
        $region78: #{tpu_custom_call.1} parent=55 // pred_check_branch
          %1565 = sbr.rel (%p1563) target = $region80
        $region79: #{tpu_custom_call.1} parent=55 // pred_region
          %s1566 = smul.u32 16, %s28
          %s1568 = ssub.s32 2048, 2048
          %1569 = vsyncadd %s1559, %s1568
          %s1570 = smul.addr %s1566, 128
          %s1571 = scalar_lea.hbm %s9, %s1570
          %s1572 = sshll.u32 %s1562, 4
          %s1573 = int_to_ptr.vmem [resolvable:$true] %s1572
          %1578 = dma.vmem_to_hbm [thread:$0]  %s1573, 2048, %s1571, %s1559, 128, 128, 8
        $region80: #{tpu_custom_call.1} parent=55 // pred_fallthru
          _
      $region56: #{tpu_custom_call.1} parent=5 // pred_fallthru
        _
      %p1579 = scmp.le.s32.totalorder 2, %s23
      // Predicated region
      $region81: #{tpu_custom_call.1} parent=5 // pred_check
        %p1580 = pneg %p1579
      $region82: #{tpu_custom_call.1} parent=5 // pred_check_branch
        %1582 = sbr.rel (%p1580) target = $region84
      $region83: #{tpu_custom_call.1} parent=5 // pred_region
        %s1583 = ssub.s32 %s23, 2
        // Predicated region
        $region85: #{tpu_custom_call.1} parent=83 // pred_check
          %p1584 = pneg %p246
        $region86: #{tpu_custom_call.1} parent=83 // pred_check_branch
          %1586 = sbr.rel (%p1584) target = $region88
        $region87: #{tpu_custom_call.1} parent=83 // pred_region
          %s1587 = sand.u32 %s231, 1
          %s1588 = scalar_lea.sflag [#allocation4], %s1587
          %s1589 = sand.u32 %s231, 1
          %s1590 = smul.addr %s1589, 128
          %s1591 = scalar_lea.vmem [#allocation11], %s1590
          %1592 = dma.done %s1588, 2048
        $region88: #{tpu_custom_call.1} parent=83 // pred_fallthru
          _
      $region84: #{tpu_custom_call.1} parent=5 // pred_fallthru
        _
    $region6: #{tpu_custom_call.1} parent=1 // loop_footer
      %s27 = sadd.s32 1, %s23
    $region7: #{tpu_custom_call.1} parent=1 // loop_footer_branch
      %22 = sbr.rel target = $region3
    $region8: #{tpu_custom_call.1} parent=1 // loop_exit
      _
    %1593 = vsyncpa [#allocation3], 1
    %s1594 = scalar_lea.sflag [#allocation3], 1
    %1595 = vsyncpa %s1594, 1
    %1596 = vsyncpa [#allocation6], 1
    %1597 = vsyncpa [#allocation9], 1
    %1598 = vsyncpa [#allocation4], 1
    %s1599 = scalar_lea.sflag [#allocation4], 1
    %1600 = vsyncpa %s1599, 1

</llo_original>
